<compile_context>
chip_gen: v6e
topology: v6e:2x2x1
jax: 0.10.0
libtpu: 0.0.40
codegen_flags: <defaults>
</compile_context>

<pallas_src>
import functools

import jax
import jax.numpy as jnp
from jax.experimental import pallas as pl
from jax.experimental.pallas import tpu as pltpu


# ----------------------------- fused Pallas kernel -----------------------------
# In-kernel layouts: spectral axis on sublanes, flattened patch (ps*ps = d) on
# lanes; channel-ganged slabs put (channel, patch) on lanes (C*d wide).


def _dual_branch_kernel(xtaps_ref, xlanes_ref, xstack_ref,
                        w_dw_ref, w_pw_ref, cb_vec_ref,
                        a_cat_ref, tbb_ref,
                        w_qkv_ref, w_rk_ref, w_rv_ref, w_co_ref, ln_ref, w_ffn_ref,
                        b_red_ref, w_hd_ref, hd_vec_ref, w_out_ref, out_vec_ref,
                        o_ref, *, heads, d, eps):
    bf16 = jnp.bfloat16
    f32 = jnp.float32
    br = b_red_ref.shape[0]

    # ---------------- conv branch: x + relu6(bn(pw(dw(x)))) ----------------
    # depthwise 3x3x3 conv: one (S, 3Cd) x (3Cd, Cd) dot (taps along lanes).
    dw = jnp.dot(xtaps_ref[0], w_dw_ref[...], preferred_element_type=f32)        # (S, Cd)
    # pointwise 1x1x1 conv as a lane-space matmul (kron(Wpw^T, I_d)).
    pwy = jnp.dot(dw.astype(bf16), w_pw_ref[...], preferred_element_type=f32)    # (S, Cd)
    # fused bias + BN + ReLU6 (slab-wide f32 FMA) + residual
    x_conv = xlanes_ref[0] + jnp.clip(
        pwy * cb_vec_ref[0, :] + cb_vec_ref[1, :], 0.0, 6.0)                      # (S, Cd) f32

    # ---------------- transformer branch ----------------
    # Conv3d(C->1, (1,1,7), pad (0,0,3)) ganged over channels: one (S, C*S) band matmul.
    t0 = jnp.dot(a_cat_ref[...], xstack_ref[0], preferred_element_type=f32)      # (S, d)
    t0 = t0 + tbb_ref[0]
    t0b = t0.astype(bf16)

    # SpectralAttention: ganged qkv projection (1/patch_size folded into q columns).
    qkv = jnp.dot(t0b, w_qkv_ref[...], preferred_element_type=f32)               # (S, 3H*d)
    oh = []
    for h in range(heads):
        q = qkv[:, h * d:(h + 1) * d].astype(bf16)
        k = qkv[:, (heads + h) * d:(heads + h + 1) * d].astype(bf16)
        v = qkv[:, (2 * heads + h) * d:(2 * heads + h + 1) * d].astype(bf16)
        kr = jnp.dot(w_rk_ref[h], k, preferred_element_type=f32)                 # (Sr, d)
        vr = jnp.dot(w_rv_ref[h], v, preferred_element_type=f32)                 # (Sr, d)
        dots = jax.lax.dot_general(q, kr.astype(bf16), (((1,), (1,)), ((), ())),
                                   preferred_element_type=f32)                   # (S, Sr)
        m = jnp.max(dots, axis=-1, keepdims=True)
        e = jnp.exp(dots - m)
        attn = e * pl.reciprocal(jnp.sum(e, axis=-1, keepdims=True), approx=True)
        oh.append(jnp.dot(attn.astype(bf16), vr.astype(bf16),
                          preferred_element_type=f32))                            # (S, d)
    # conv_out ganged over heads: (S, H*d) @ (H*d, d).
    oh_cat = jnp.concatenate(oh, axis=-1).astype(bf16)
    att = jnp.dot(oh_cat, w_co_ref[...], preferred_element_type=f32)             # (S, d)

    # LayerNorm over the (ps, ps) patch (lane axis) + residual.
    mu = jnp.mean(att, axis=-1, keepdims=True)
    ctr = att - mu
    var = jnp.mean(ctr * ctr, axis=-1, keepdims=True)
    t1 = t0 + (ctr * jax.lax.rsqrt(var + eps) * ln_ref[0, :] + ln_ref[1, :])      # (S, d)

    # FFN: 3x3 spatial conv (no bias) + ReLU6 + residual.
    ffn = jnp.dot(t1.astype(bf16), w_ffn_ref[...], preferred_element_type=f32)
    x_trans = t1 + jnp.clip(ffn, 0.0, 6.0)                                        # (S, d) f32

    # ---------------- output heads + channel concat + final 1x1x1 mix ----------------
    # Both (3,3,band_reduce) heads at once: per spectral tap r, a band-matrix row
    # select (MXU) followed by one block matrix mapping (C+1)*d -> 2C*d lanes.
    xall = jnp.concatenate([x_conv, x_trans], axis=-1).astype(bf16)               # (S, (C+1)d)
    n_cat = w_hd_ref.shape[2]
    So = o_ref.shape[1]
    hcat = jnp.zeros((So, n_cat), f32)
    for r in range(br):
        sl = jnp.dot(b_red_ref[r], xall, preferred_element_type=f32)             # (So, (C+1)d)
        hcat = hcat + jnp.dot(sl.astype(bf16), w_hd_ref[r],
                              preferred_element_type=f32)                          # (So, 2Cd)
    # fused head biases + BN + ReLU6 (per-channel vectors repeated along lanes).
    hcat = jnp.clip(hcat * hd_vec_ref[0, :] + hd_vec_ref[1, :], 0.0, 6.0)
    # final Conv3d(2C -> fc_dim, 1x1x1) + BN + ReLU6 as one (2Cd, Fd) matmul.
    y = jnp.dot(hcat.astype(bf16), w_out_ref[...], preferred_element_type=f32)   # (So, F*d)
    o_ref[0, :, :] = jnp.clip(y * out_vec_ref[0, :] + out_vec_ref[1, :], 0.0, 6.0)


# ----------------------------- pallas_call wrapper -----------------------------

def dual_branch_call(xtaps, xlanes, xstack, lw, *, heads, d, So):
    B, S, T3 = xtaps.shape
    Cd = xlanes.shape[2]
    CS = xstack.shape[1]
    Fd = lw['w_out'].shape[1]
    kern = functools.partial(_dual_branch_kernel, heads=heads, d=d, eps=1e-5)

    def rep(a):  # replicated (grid-invariant) VMEM operand
        nd = a.ndim
        return pl.BlockSpec(a.shape, lambda b: (0,) * nd)

    in_specs = [
        pl.BlockSpec((1, S, T3), lambda b: (b, 0, 0)),
        pl.BlockSpec((1, S, Cd), lambda b: (b, 0, 0)),
        pl.BlockSpec((1, CS, d), lambda b: (b, 0, 0)),
        rep(lw['w_dw']), rep(lw['w_pw']), rep(lw['cb_vec']),
        rep(lw['a_cat']),
        pl.BlockSpec(memory_space=pltpu.MemorySpace.SMEM),
        rep(lw['w_qkv']), rep(lw['w_rk']), rep(lw['w_rv']), rep(lw['w_co']),
        rep(lw['ln']), rep(lw['w_ffn']), rep(lw['b_red']), rep(lw['w_hd']),
        rep(lw['hd_vec']), rep(lw['w_out']), rep(lw['out_vec']),
    ]
    return pl.pallas_call(
        kern,
        out_shape=jax.ShapeDtypeStruct((B, So, Fd), jnp.float32),
        grid=(B,),
        in_specs=in_specs,
        out_specs=pl.BlockSpec((1, So, Fd), lambda b: (b, 0, 0)),
        compiler_params=pltpu.CompilerParams(dimension_semantics=("parallel",)),
    )(xtaps, xlanes, xstack,
      lw['w_dw'], lw['w_pw'], lw['cb_vec'], lw['a_cat'], lw['tbb'],
      lw['w_qkv'], lw['w_rk'], lw['w_rv'], lw['w_co'], lw['ln'], lw['w_ffn'],
      lw['b_red'], lw['w_hd'], lw['hd_vec'], lw['w_out'], lw['out_vec'])


# ----------------------------- conv -> matrix lowering (done once) -----------------------------

def _spatial_conv_basis(ps):
    """basis[a, b, q, p] = 1 iff input pixel q is the (a, b) tap of output pixel p
    for a 3x3 conv with padding 1 on a (ps, ps) patch flattened row-major."""
    d = ps * ps
    idx = jnp.arange(d)
    qx, qy = idx // ps, idx % ps
    dx = qx[:, None] - qx[None, :] + 1            # (q_in, p_out)
    dy = qy[:, None] - qy[None, :] + 1
    taps = jnp.arange(3)
    bx = dx[None, :, :] == taps[:, None, None]    # (3, d, d)
    by = dy[None, :, :] == taps[:, None, None]
    return (bx[:, None] & by[None, :]).astype(jnp.float32)   # (3, 3, d, d)


def _band_conv_basis(ksize, pad, stride, s_in, s_out):
    """basis[t, j, s] = 1 iff input position s is tap t of output position j."""
    t = jnp.arange(ksize)[:, None, None]
    j = jnp.arange(s_out)[None, :, None]
    s = jnp.arange(s_in)[None, None, :]
    return (s == stride * j + t - pad).astype(jnp.float32)   # (ksize, s_out, s_in)


def _bn_affine(bn, eps=1e-5):
    gamma, beta, mean, var = bn
    scale = gamma * jax.lax.rsqrt(var + eps)
    return scale, beta - mean * scale


def lower_params(p, *, channels, heads, patch_size, band_reduce, spectral_size):
    """Lower all conv weights to lane-dense matrices. Call ONCE outside the jitted forward."""
    C, H, ps, br, S = channels, heads, patch_size, band_reduce, spectral_size
    d = ps * ps
    Sr = (S + 2 - 3) // 4 + 1
    So = S - br + 1
    f32, bf16 = jnp.float32, jnp.bfloat16
    spb = _spatial_conv_basis(ps)                              # (3,3,d,d)
    spec7 = _band_conv_basis(7, 3, 1, S, S)                    # (7,S,S)
    red3 = _band_conv_basis(3, 1, 4, S, Sr)                    # (3,Sr,S)
    bred = _band_conv_basis(br, 0, 1, S, So)                   # (br,So,S)
    eyeC = jnp.eye(C, dtype=f32)
    eyed = jnp.eye(d, dtype=f32)

    # --- conv branch ---
    mdw = jnp.einsum('cxyz,xyde->czde', p['dw1_w'][:, 0], spb)           # (C,3,d,d)
    w_dw = jnp.einsum('ctqp,ce->tcqep', mdw, eyeC).reshape(3 * C * d, C * d).astype(bf16)
    pw = p['pw_w'][:, :, 0, 0, 0]                                         # (C_out, C_in)
    w_pw = jnp.einsum('oi,qp->iqop', pw, eyed).reshape(C * d, C * d).astype(bf16)
    bn1_s, bn1_b = _bn_affine(p['bn1'])
    b_eff = p['pw_b'] + pw @ p['dw1_b']                                   # dw bias folded through pw
    cb_vec = jnp.stack([jnp.repeat(bn1_s, d),
                        jnp.repeat(b_eff * bn1_s + bn1_b, d)]).astype(f32)

    # --- transformer branch ---
    a_m = jnp.einsum('ct,tjs->cjs', p['tb_w'][0, :, 0, 0, :], spec7)      # (C,S,S)
    a_cat = jnp.transpose(a_m, (1, 0, 2)).reshape(S, C * S).astype(bf16)
    mproj = jnp.einsum('oxy,xyde->ode', p['proj_w'][:, 0, :, :, 0], spb)  # (3H,d,d)
    qk_scale = jnp.where(jnp.arange(3 * H) < H, 1.0 / ps, 1.0)            # fold 1/ps into q
    mproj = mproj * qk_scale[:, None, None]
    w_qkv = jnp.transpose(mproj, (1, 0, 2)).reshape(d, 3 * H * d).astype(bf16)
    w_rk = jnp.einsum('ht,tjs->hjs', p['rk_w'][:, 0, :, 0], red3).astype(bf16)
    w_rv = jnp.einsum('ht,tjs->hjs', p['rv_w'][:, 0, :, 0], red3).astype(bf16)
    mco = jnp.einsum('hxy,xyde->hde', p['co_w'][0, :, :, :, 0], spb)      # (H,d,d)
    w_co = mco.reshape(H * d, d).astype(bf16)
    ln = jnp.stack([p['ln_w'].reshape(d), p['ln_b'].reshape(d)]).astype(f32)
    w_ffn = jnp.einsum('xy,xyde->de', p['ffn_w'][0, 0, :, :, 0], spb).astype(bf16)
    tbb = p['tb_b'].astype(f32)

    # --- output heads (conv head block-diag + transformer head, one matrix per tap) ---
    mcob = jnp.einsum('cxyr,xyde->crde', p['cob_w'][:, 0], spb)           # (C,br,d,d)
    mtob = jnp.einsum('cxyr,xyde->crde', p['tob_w'][:, 0], spb)           # (C,br,d,d)
    w_hd_conv = jnp.einsum('crqp,ce->rcqep', mcob, eyeC).reshape(br, C * d, C * d)
    w_hd_tr = jnp.transpose(mtob, (1, 2, 0, 3)).reshape(br, d, C * d)
    top = jnp.concatenate([w_hd_conv, jnp.zeros((br, C * d, C * d), f32)], axis=2)
    bot = jnp.concatenate([jnp.zeros((br, d, C * d), f32), w_hd_tr], axis=2)
    w_hd = jnp.concatenate([top, bot], axis=1).astype(bf16)               # (br,(C+1)d,2Cd)
    b_red = bred.astype(bf16)
    bnc_s, bnc_b = _bn_affine(p['bn_cob'])
    bnt_s, bnt_b = _bn_affine(p['bn_tob'])
    hd_vec = jnp.stack([
        jnp.concatenate([jnp.repeat(bnc_s, d), jnp.repeat(bnt_s, d)]),
        jnp.concatenate([jnp.repeat(p['cob_b'] * bnc_s + bnc_b, d),
                         jnp.repeat(p['tob_b'] * bnt_s + bnt_b, d)])]).astype(f32)
    outw = p['out_w'][:, :, 0, 0, 0]                                      # (F, 2C)
    w_out = jnp.einsum('fc,qp->cqfp', outw, eyed).reshape(2 * C * d, outw.shape[0] * d).astype(bf16)
    bno_s, bno_b = _bn_affine(p['bn_out'])
    out_vec = jnp.stack([jnp.repeat(bno_s, d),
                         jnp.repeat(p['out_b'] * bno_s + bno_b, d)]).astype(f32)

    return dict(w_dw=w_dw, w_pw=w_pw, cb_vec=cb_vec, a_cat=a_cat, tbb=tbb,
                w_qkv=w_qkv, w_rk=w_rk, w_rv=w_rv, w_co=w_co, ln=ln, w_ffn=w_ffn,
                b_red=b_red, w_hd=w_hd, hd_vec=hd_vec, w_out=w_out, out_vec=out_vec)


# ----------------------------- model forward -----------------------------

def forward(x, lw, *, heads, patch_size, band_reduce):
    B, C, _, _, S = x.shape
    ps = patch_size
    d = ps * ps
    So = S - band_reduce + 1
    # (B, C, X, Y, S) -> (B, C, S, d): spectral on sublanes, patch on lanes.
    x_r = jnp.transpose(x.astype(jnp.float32), (0, 1, 4, 2, 3)).reshape(B, C, S, d)
    xpad = jnp.pad(x_r, ((0, 0), (0, 0), (1, 1), (0, 0)))                  # spectral pad 1
    # depthwise-conv input: 3 spectral taps concatenated along lanes -> (B, S, 3*C*d)
    xtaps = jnp.stack([xpad[:, :, t:t + S, :] for t in range(3)], axis=2)  # (B,C,3,S,d)
    xtaps = jnp.transpose(xtaps, (0, 3, 2, 1, 4)).reshape(B, S, 3 * C * d).astype(jnp.bfloat16)
    # channel-on-lanes layout (f32) for the residual / conv-branch epilogue.
    xlanes = jnp.transpose(x_r, (0, 2, 1, 3)).reshape(B, S, C * d)
    # channel-stacked-rows layout for the ganged (1,1,7) spectral conv.
    xstack = x_r.reshape(B, C * S, d).astype(jnp.bfloat16)

    out = dual_branch_call(xtaps, xlanes, xstack, lw, heads=heads, d=d, So=So)  # (B,So,F*d)
    fc_dim = out.shape[-1] // d
    out = out.reshape(B, So, fc_dim, ps, ps)
    return jnp.transpose(out, (0, 2, 3, 4, 1))                                   # (B,F,ps,ps,So)


# ----------------------------- deterministic parameters (PyTorch layouts) -----------------------------

def make_params(key, C, H, ps, fc_dim, br):
    it = iter(jax.random.split(key, 48))

    def w(shape, scale=0.2):
        return jax.random.normal(next(it), shape, jnp.float32) * scale

    def bn(c):  # (gamma, beta, running_mean, running_var) -- eval-mode BatchNorm
        return (1.0 + 0.1 * jax.random.normal(next(it), (c,), jnp.float32),
                0.1 * jax.random.normal(next(it), (c,), jnp.float32),
                0.1 * jax.random.normal(next(it), (c,), jnp.float32),
                1.0 + 0.1 * jnp.abs(jax.random.normal(next(it), (c,), jnp.float32)))

    return {
        # DepthwiseConvBlock
        'dw1_w': w((C, 1, 3, 3, 3)), 'dw1_b': w((C,), 0.05),
        'pw_w': w((C, C, 1, 1, 1)), 'pw_b': w((C,), 0.05),
        'bn1': bn(C),
        # transformer branch: Conv3d(C, 1, (1,1,7), padding=(0,0,3))
        'tb_w': w((1, C, 1, 1, 7)), 'tb_b': w((1,), 0.05),
        # SpectralAttention
        'proj_w': w((3 * H, 1, 3, 3, 1)),
        'rk_w': w((H, 1, 3, 1)), 'rv_w': w((H, 1, 3, 1)),
        'co_w': w((1, H, 3, 3, 1)),
        'ln_w': 1.0 + 0.1 * jax.random.normal(next(it), (ps, ps), jnp.float32),
        'ln_b': 0.1 * jax.random.normal(next(it), (ps, ps), jnp.float32),
        # FFN
        'ffn_w': w((1, 1, 3, 3, 1)),
        # output heads
        'cob_w': w((C, 1, 3, 3, br)), 'cob_b': w((C,), 0.05), 'bn_cob': bn(C),
        'tob_w': w((C, 1, 3, 3, br)), 'tob_b': w((C,), 0.05), 'bn_tob': bn(C),
        'out_w': w((fc_dim, 2 * C, 1, 1, 1)), 'out_b': w((fc_dim,), 0.05), 'bn_out': bn(fc_dim),
    }


# ----------------------------- main -----------------------------

if __name__ == "__main__":
    B, C, ps, H, fc_dim, br, S = 2, 4, 4, 2, 8, 5, 16
    x = jax.random.normal(jax.random.PRNGKey(0), (B, C, ps, ps, S), jnp.float32)
    params = make_params(jax.random.PRNGKey(42), C, H, ps, fc_dim, br)

    # one-time weight lowering (hoisted out of the per-step jit)
    lowered = lower_params(params, channels=C, heads=H, patch_size=ps,
                           band_reduce=br, spectral_size=S)

    fwd = jax.jit(functools.partial(forward, heads=H, patch_size=ps, band_reduce=br))
    out = fwd(x, lowered)
    jax.block_until_ready(out)
    assert out.shape == (B, fc_dim, ps, ps, S - br + 1), out.shape
    assert bool(jnp.all(jnp.isfinite(out)))
    print("KERNEL_OK")
</pallas_src>

<mosaic_0001>
module attributes {stable_mosaic.version = 11 : i64} {
  func.func @_dual_branch_kernel(%arg0: i32, %arg1: memref<1x16x192xbf16, #tpu.memory_space<vmem>>, %arg2: memref<1x16x64xf32, #tpu.memory_space<vmem>>, %arg3: memref<1x64x16xbf16, #tpu.memory_space<vmem>>, %arg4: memref<192x64xbf16, #tpu.memory_space<vmem>>, %arg5: memref<64x64xbf16, #tpu.memory_space<vmem>>, %arg6: memref<2x64xf32, #tpu.memory_space<vmem>>, %arg7: memref<16x64xbf16, #tpu.memory_space<vmem>>, %arg8: memref<1xf32, #tpu.memory_space<smem>>, %arg9: memref<16x96xbf16, #tpu.memory_space<vmem>>, %arg10: memref<2x4x16xbf16, #tpu.memory_space<vmem>>, %arg11: memref<2x4x16xbf16, #tpu.memory_space<vmem>>, %arg12: memref<32x16xbf16, #tpu.memory_space<vmem>>, %arg13: memref<2x16xf32, #tpu.memory_space<vmem>>, %arg14: memref<16x16xbf16, #tpu.memory_space<vmem>>, %arg15: memref<5x12x16xbf16, #tpu.memory_space<vmem>>, %arg16: memref<5x80x128xbf16, #tpu.memory_space<vmem>>, %arg17: memref<2x128xf32, #tpu.memory_space<vmem>>, %arg18: memref<128x128xbf16, #tpu.memory_space<vmem>>, %arg19: memref<2x128xf32, #tpu.memory_space<vmem>>, %arg20: memref<1x12x128xf32, #tpu.memory_space<vmem>>) attributes {dimension_semantics = [#tpu.dimension_semantics<parallel>], iteration_bounds = array<i64: 2>, scalar_prefetch = 0 : i64, scratch_operands = 0 : i64, tpu.core_type = #tpu.core_type<tc>, window_params = [{transform_indices = @transform_0, window_bounds = array<i64: 1, 16, 192>}, {transform_indices = @transform_1, window_bounds = array<i64: 1, 16, 64>}, {transform_indices = @transform_2, window_bounds = array<i64: 1, 64, 16>}, {pipeline_mode = #tpu.pipeline_mode<synchronous>, transform_indices = @transform_3, window_bounds = array<i64: 192, 64>}, {pipeline_mode = #tpu.pipeline_mode<synchronous>, transform_indices = @transform_4, window_bounds = array<i64: 64, 64>}, {pipeline_mode = #tpu.pipeline_mode<synchronous>, transform_indices = @transform_5, window_bounds = array<i64: 2, 64>}, {pipeline_mode = #tpu.pipeline_mode<synchronous>, transform_indices = @transform_6, window_bounds = array<i64: 16, 64>}, {transform_indices = @transform_7, window_bounds = array<i64: 1>}, {pipeline_mode = #tpu.pipeline_mode<synchronous>, transform_indices = @transform_8, window_bounds = array<i64: 16, 96>}, {pipeline_mode = #tpu.pipeline_mode<synchronous>, transform_indices = @transform_9, window_bounds = array<i64: 2, 4, 16>}, {pipeline_mode = #tpu.pipeline_mode<synchronous>, transform_indices = @transform_10, window_bounds = array<i64: 2, 4, 16>}, {pipeline_mode = #tpu.pipeline_mode<synchronous>, transform_indices = @transform_11, window_bounds = array<i64: 32, 16>}, {pipeline_mode = #tpu.pipeline_mode<synchronous>, transform_indices = @transform_12, window_bounds = array<i64: 2, 16>}, {pipeline_mode = #tpu.pipeline_mode<synchronous>, transform_indices = @transform_13, window_bounds = array<i64: 16, 16>}, {pipeline_mode = #tpu.pipeline_mode<synchronous>, transform_indices = @transform_14, window_bounds = array<i64: 5, 12, 16>}, {pipeline_mode = #tpu.pipeline_mode<synchronous>, transform_indices = @transform_15, window_bounds = array<i64: 5, 80, 128>}, {pipeline_mode = #tpu.pipeline_mode<synchronous>, transform_indices = @transform_16, window_bounds = array<i64: 2, 128>}, {pipeline_mode = #tpu.pipeline_mode<synchronous>, transform_indices = @transform_17, window_bounds = array<i64: 128, 128>}, {pipeline_mode = #tpu.pipeline_mode<synchronous>, transform_indices = @transform_18, window_bounds = array<i64: 2, 128>}, {transform_indices = @transform_19, window_bounds = array<i64: 1, 12, 128>}]} {
    %c0 = arith.constant 0 : index
    %c0_0 = arith.constant 0 : index
    %c0_1 = arith.constant 0 : index
    %0 = vector.load %arg1[%c0, %c0_0, %c0_1] : memref<1x16x192xbf16, #tpu.memory_space<vmem>>, vector<1x16x192xbf16>
    %1 = vector.shape_cast %0 : vector<1x16x192xbf16> to vector<16x192xbf16>
    %c0_2 = arith.constant 0 : index
    %c0_3 = arith.constant 0 : index
    %2 = vector.load %arg4[%c0_2, %c0_3] : memref<192x64xbf16, #tpu.memory_space<vmem>>, vector<192x64xbf16>
    %cst = arith.constant dense<0.000000e+00> : vector<16x64xf32>
    %3 = tpu.matmul %1, %2, %cst {dimension_numbers = #tpu.dot_dimension_numbers<[1], [0], [0], [1], [0, 0, 1, 1], [], []>} : vector<16x192xbf16>, vector<192x64xbf16>, vector<16x64xf32> -> vector<16x64xf32>
    %4 = arith.truncf %3 : vector<16x64xf32> to vector<16x64xbf16>
    %c0_4 = arith.constant 0 : index
    %c0_5 = arith.constant 0 : index
    %5 = vector.load %arg5[%c0_4, %c0_5] : memref<64x64xbf16, #tpu.memory_space<vmem>>, vector<64x64xbf16>
    %cst_6 = arith.constant dense<0.000000e+00> : vector<16x64xf32>
    %6 = tpu.matmul %4, %5, %cst_6 {dimension_numbers = #tpu.dot_dimension_numbers<[1], [0], [0], [1], [0, 0, 1, 1], [], []>} : vector<16x64xbf16>, vector<64x64xbf16>, vector<16x64xf32> -> vector<16x64xf32>
    %c0_7 = arith.constant 0 : index
    %c0_8 = arith.constant 0 : index
    %c0_9 = arith.constant 0 : index
    %7 = vector.load %arg2[%c0_7, %c0_8, %c0_9] : memref<1x16x64xf32, #tpu.memory_space<vmem>>, vector<1x16x64xf32>
    %8 = vector.shape_cast %7 : vector<1x16x64xf32> to vector<16x64xf32>
    %c0_10 = arith.constant 0 : index
    %c0_11 = arith.constant 0 : index
    %9 = vector.load %arg6[%c0_10, %c0_11] : memref<2x64xf32, #tpu.memory_space<vmem>>, vector<1x64xf32>
    %10 = vector.shape_cast %9 : vector<1x64xf32> to vector<64xf32>
    %11 = vector.shape_cast %10 : vector<64xf32> to vector<1x64xf32>
    %12 = vector.broadcast %11 : vector<1x64xf32> to vector<16x64xf32>
    %13 = arith.mulf %6, %12 : vector<16x64xf32>
    %c1 = arith.constant 1 : index
    %c0_12 = arith.constant 0 : index
    %14 = vector.load %arg6[%c1, %c0_12] : memref<2x64xf32, #tpu.memory_space<vmem>>, vector<1x64xf32>
    %15 = vector.shape_cast %14 : vector<1x64xf32> to vector<64xf32>
    %16 = vector.shape_cast %15 : vector<64xf32> to vector<1x64xf32>
    %17 = vector.broadcast %16 : vector<1x64xf32> to vector<16x64xf32>
    %18 = arith.addf %13, %17 : vector<16x64xf32>
    %cst_13 = arith.constant 0.000000e+00 : f32
    %cst_14 = arith.constant 6.000000e+00 : f32
    %19 = vector.broadcast %cst_13 : f32 to vector<16x64xf32>
    %20 = arith.maximumf %19, %18 : vector<16x64xf32>
    %21 = vector.broadcast %cst_14 : f32 to vector<16x64xf32>
    %22 = arith.minimumf %21, %20 : vector<16x64xf32>
    %23 = arith.addf %8, %22 : vector<16x64xf32>
    %c0_15 = arith.constant 0 : index
    %c0_16 = arith.constant 0 : index
    %24 = vector.load %arg7[%c0_15, %c0_16] : memref<16x64xbf16, #tpu.memory_space<vmem>>, vector<16x64xbf16>
    %c0_17 = arith.constant 0 : index
    %c0_18 = arith.constant 0 : index
    %c0_19 = arith.constant 0 : index
    %25 = vector.load %arg3[%c0_17, %c0_18, %c0_19] : memref<1x64x16xbf16, #tpu.memory_space<vmem>>, vector<1x64x16xbf16>
    %26 = vector.shape_cast %25 : vector<1x64x16xbf16> to vector<64x16xbf16>
    %cst_20 = arith.constant dense<0.000000e+00> : vector<16x16xf32>
    %27 = tpu.matmul %24, %26, %cst_20 {dimension_numbers = #tpu.dot_dimension_numbers<[1], [0], [0], [1], [0, 0, 1, 1], [], []>} : vector<16x64xbf16>, vector<64x16xbf16>, vector<16x16xf32> -> vector<16x16xf32>
    %c0_21 = arith.constant 0 : index
    %28 = memref.load %arg8[%c0_21] : memref<1xf32, #tpu.memory_space<smem>>
    %29 = vector.broadcast %28 : f32 to vector<16x16xf32>
    %30 = arith.addf %27, %29 : vector<16x16xf32>
    %31 = arith.truncf %30 : vector<16x16xf32> to vector<16x16xbf16>
    %c0_22 = arith.constant 0 : index
    %c0_23 = arith.constant 0 : index
    %32 = vector.load %arg9[%c0_22, %c0_23] : memref<16x96xbf16, #tpu.memory_space<vmem>>, vector<16x96xbf16>
    %cst_24 = arith.constant dense<0.000000e+00> : vector<16x96xf32>
    %33 = tpu.matmul %31, %32, %cst_24 {dimension_numbers = #tpu.dot_dimension_numbers<[1], [0], [0], [1], [0, 0, 1, 1], [], []>} : vector<16x16xbf16>, vector<16x96xbf16>, vector<16x96xf32> -> vector<16x96xf32>
    %34 = vector.extract_strided_slice %33 {offsets = [0, 0], sizes = [16, 16], strides = [1, 1]} : vector<16x96xf32> to vector<16x16xf32>
    %35 = arith.truncf %34 : vector<16x16xf32> to vector<16x16xbf16>
    %36 = vector.extract_strided_slice %33 {offsets = [0, 32], sizes = [16, 16], strides = [1, 1]} : vector<16x96xf32> to vector<16x16xf32>
    %37 = arith.truncf %36 : vector<16x16xf32> to vector<16x16xbf16>
    %38 = vector.extract_strided_slice %33 {offsets = [0, 64], sizes = [16, 16], strides = [1, 1]} : vector<16x96xf32> to vector<16x16xf32>
    %39 = arith.truncf %38 : vector<16x16xf32> to vector<16x16xbf16>
    %c0_25 = arith.constant 0 : index
    %c0_26 = arith.constant 0 : index
    %c0_27 = arith.constant 0 : index
    %40 = vector.load %arg10[%c0_25, %c0_26, %c0_27] : memref<2x4x16xbf16, #tpu.memory_space<vmem>>, vector<1x4x16xbf16>
    %41 = vector.shape_cast %40 : vector<1x4x16xbf16> to vector<4x16xbf16>
    %cst_28 = arith.constant dense<0.000000e+00> : vector<4x16xf32>
    %42 = tpu.matmul %41, %37, %cst_28 {dimension_numbers = #tpu.dot_dimension_numbers<[1], [0], [0], [1], [0, 0, 1, 1], [], []>} : vector<4x16xbf16>, vector<16x16xbf16>, vector<4x16xf32> -> vector<4x16xf32>
    %c0_29 = arith.constant 0 : index
    %c0_30 = arith.constant 0 : index
    %c0_31 = arith.constant 0 : index
    %43 = vector.load %arg11[%c0_29, %c0_30, %c0_31] : memref<2x4x16xbf16, #tpu.memory_space<vmem>>, vector<1x4x16xbf16>
    %44 = vector.shape_cast %43 : vector<1x4x16xbf16> to vector<4x16xbf16>
    %cst_32 = arith.constant dense<0.000000e+00> : vector<4x16xf32>
    %45 = tpu.matmul %44, %39, %cst_32 {dimension_numbers = #tpu.dot_dimension_numbers<[1], [0], [0], [1], [0, 0, 1, 1], [], []>} : vector<4x16xbf16>, vector<16x16xbf16>, vector<4x16xf32> -> vector<4x16xf32>
    %46 = arith.truncf %42 : vector<4x16xf32> to vector<4x16xbf16>
    %cst_33 = arith.constant dense<0.000000e+00> : vector<16x4xf32>
    %47 = tpu.matmul %35, %46, %cst_33 {dimension_numbers = #tpu.dot_dimension_numbers<[1], [1], [0], [0], [0, 0, 1, 0], [], []>} : vector<16x16xbf16>, vector<4x16xbf16>, vector<16x4xf32> -> vector<16x4xf32>
    %cst_34 = arith.constant dense<0xFF800000> : vector<16xf32>
    %48 = vector.multi_reduction <maximumf>, %47, %cst_34 [1] : vector<16x4xf32> to vector<16xf32>
    %49 = vector.shape_cast %48 : vector<16xf32> to vector<16x1xf32>
    %50 = vector.broadcast %49 : vector<16x1xf32> to vector<16x4xf32>
    %51 = arith.subf %47, %50 : vector<16x4xf32>
    %52 = math.exp %51 : vector<16x4xf32>
    %cst_35 = arith.constant dense<0.000000e+00> : vector<16xf32>
    %53 = vector.multi_reduction <add>, %52, %cst_35 [1] : vector<16x4xf32> to vector<16xf32>
    %54 = vector.shape_cast %53 : vector<16xf32> to vector<16x1xf32>
    %55 = tpu.reciprocal %54 {approx = true} : vector<16x1xf32> -> vector<16x1xf32>
    %56 = vector.broadcast %55 : vector<16x1xf32> to vector<16x4xf32>
    %57 = arith.mulf %52, %56 : vector<16x4xf32>
    %58 = arith.truncf %57 : vector<16x4xf32> to vector<16x4xbf16>
    %59 = arith.truncf %45 : vector<4x16xf32> to vector<4x16xbf16>
    %cst_36 = arith.constant dense<0.000000e+00> : vector<16x16xf32>
    %60 = tpu.matmul %58, %59, %cst_36 {dimension_numbers = #tpu.dot_dimension_numbers<[1], [0], [0], [1], [0, 0, 1, 1], [], []>} : vector<16x4xbf16>, vector<4x16xbf16>, vector<16x16xf32> -> vector<16x16xf32>
    %61 = vector.extract_strided_slice %33 {offsets = [0, 16], sizes = [16, 16], strides = [1, 1]} : vector<16x96xf32> to vector<16x16xf32>
    %62 = arith.truncf %61 : vector<16x16xf32> to vector<16x16xbf16>
    %63 = vector.extract_strided_slice %33 {offsets = [0, 48], sizes = [16, 16], strides = [1, 1]} : vector<16x96xf32> to vector<16x16xf32>
    %64 = arith.truncf %63 : vector<16x16xf32> to vector<16x16xbf16>
    %65 = vector.extract_strided_slice %33 {offsets = [0, 80], sizes = [16, 16], strides = [1, 1]} : vector<16x96xf32> to vector<16x16xf32>
    %66 = arith.truncf %65 : vector<16x16xf32> to vector<16x16xbf16>
    %c1_37 = arith.constant 1 : index
    %c0_38 = arith.constant 0 : index
    %c0_39 = arith.constant 0 : index
    %67 = vector.load %arg10[%c1_37, %c0_38, %c0_39] : memref<2x4x16xbf16, #tpu.memory_space<vmem>>, vector<1x4x16xbf16>
    %68 = vector.shape_cast %67 : vector<1x4x16xbf16> to vector<4x16xbf16>
    %cst_40 = arith.constant dense<0.000000e+00> : vector<4x16xf32>
    %69 = tpu.matmul %68, %64, %cst_40 {dimension_numbers = #tpu.dot_dimension_numbers<[1], [0], [0], [1], [0, 0, 1, 1], [], []>} : vector<4x16xbf16>, vector<16x16xbf16>, vector<4x16xf32> -> vector<4x16xf32>
    %c1_41 = arith.constant 1 : index
    %c0_42 = arith.constant 0 : index
    %c0_43 = arith.constant 0 : index
    %70 = vector.load %arg11[%c1_41, %c0_42, %c0_43] : memref<2x4x16xbf16, #tpu.memory_space<vmem>>, vector<1x4x16xbf16>
    %71 = vector.shape_cast %70 : vector<1x4x16xbf16> to vector<4x16xbf16>
    %cst_44 = arith.constant dense<0.000000e+00> : vector<4x16xf32>
    %72 = tpu.matmul %71, %66, %cst_44 {dimension_numbers = #tpu.dot_dimension_numbers<[1], [0], [0], [1], [0, 0, 1, 1], [], []>} : vector<4x16xbf16>, vector<16x16xbf16>, vector<4x16xf32> -> vector<4x16xf32>
    %73 = arith.truncf %69 : vector<4x16xf32> to vector<4x16xbf16>
    %cst_45 = arith.constant dense<0.000000e+00> : vector<16x4xf32>
    %74 = tpu.matmul %62, %73, %cst_45 {dimension_numbers = #tpu.dot_dimension_numbers<[1], [1], [0], [0], [0, 0, 1, 0], [], []>} : vector<16x16xbf16>, vector<4x16xbf16>, vector<16x4xf32> -> vector<16x4xf32>
    %cst_46 = arith.constant dense<0xFF800000> : vector<16xf32>
    %75 = vector.multi_reduction <maximumf>, %74, %cst_46 [1] : vector<16x4xf32> to vector<16xf32>
    %76 = vector.shape_cast %75 : vector<16xf32> to vector<16x1xf32>
    %77 = vector.broadcast %76 : vector<16x1xf32> to vector<16x4xf32>
    %78 = arith.subf %74, %77 : vector<16x4xf32>
    %79 = math.exp %78 : vector<16x4xf32>
    %cst_47 = arith.constant dense<0.000000e+00> : vector<16xf32>
    %80 = vector.multi_reduction <add>, %79, %cst_47 [1] : vector<16x4xf32> to vector<16xf32>
    %81 = vector.shape_cast %80 : vector<16xf32> to vector<16x1xf32>
    %82 = tpu.reciprocal %81 {approx = true} : vector<16x1xf32> -> vector<16x1xf32>
    %83 = vector.broadcast %82 : vector<16x1xf32> to vector<16x4xf32>
    %84 = arith.mulf %79, %83 : vector<16x4xf32>
    %85 = arith.truncf %84 : vector<16x4xf32> to vector<16x4xbf16>
    %86 = arith.truncf %72 : vector<4x16xf32> to vector<4x16xbf16>
    %cst_48 = arith.constant dense<0.000000e+00> : vector<16x16xf32>
    %87 = tpu.matmul %85, %86, %cst_48 {dimension_numbers = #tpu.dot_dimension_numbers<[1], [0], [0], [1], [0, 0, 1, 1], [], []>} : vector<16x4xbf16>, vector<4x16xbf16>, vector<16x16xf32> -> vector<16x16xf32>
    %88 = tpu.concatenate %60, %87 in 1 : vector<16x16xf32>, vector<16x16xf32> -> vector<16x32xf32>
    %89 = arith.truncf %88 : vector<16x32xf32> to vector<16x32xbf16>
    %c0_49 = arith.constant 0 : index
    %c0_50 = arith.constant 0 : index
    %90 = vector.load %arg12[%c0_49, %c0_50] : memref<32x16xbf16, #tpu.memory_space<vmem>>, vector<32x16xbf16>
    %cst_51 = arith.constant dense<0.000000e+00> : vector<16x16xf32>
    %91 = tpu.matmul %89, %90, %cst_51 {dimension_numbers = #tpu.dot_dimension_numbers<[1], [0], [0], [1], [0, 0, 1, 1], [], []>} : vector<16x32xbf16>, vector<32x16xbf16>, vector<16x16xf32> -> vector<16x16xf32>
    %cst_52 = arith.constant dense<0.000000e+00> : vector<16xf32>
    %92 = vector.multi_reduction <add>, %91, %cst_52 [1] : vector<16x16xf32> to vector<16xf32>
    %93 = vector.shape_cast %92 : vector<16xf32> to vector<16x1xf32>
    %cst_53 = arith.constant 1.600000e+01 : f32
    %94 = vector.broadcast %cst_53 : f32 to vector<16x1xf32>
    %95 = arith.divf %93, %94 : vector<16x1xf32>
    %96 = vector.broadcast %95 : vector<16x1xf32> to vector<16x16xf32>
    %97 = arith.subf %91, %96 : vector<16x16xf32>
    %98 = arith.mulf %97, %97 : vector<16x16xf32>
    %cst_54 = arith.constant dense<0.000000e+00> : vector<16xf32>
    %99 = vector.multi_reduction <add>, %98, %cst_54 [1] : vector<16x16xf32> to vector<16xf32>
    %100 = vector.shape_cast %99 : vector<16xf32> to vector<16x1xf32>
    %cst_55 = arith.constant 1.600000e+01 : f32
    %101 = vector.broadcast %cst_55 : f32 to vector<16x1xf32>
    %102 = arith.divf %100, %101 : vector<16x1xf32>
    %cst_56 = arith.constant 9.99999974E-6 : f32
    %103 = vector.broadcast %cst_56 : f32 to vector<16x1xf32>
    %104 = arith.addf %102, %103 : vector<16x1xf32>
    %105 = math.rsqrt %104 : vector<16x1xf32>
    %106 = vector.broadcast %105 : vector<16x1xf32> to vector<16x16xf32>
    %107 = arith.mulf %97, %106 : vector<16x16xf32>
    %c0_57 = arith.constant 0 : index
    %c0_58 = arith.constant 0 : index
    %108 = vector.load %arg13[%c0_57, %c0_58] : memref<2x16xf32, #tpu.memory_space<vmem>>, vector<1x16xf32>
    %109 = vector.shape_cast %108 : vector<1x16xf32> to vector<16xf32>
    %110 = vector.shape_cast %109 : vector<16xf32> to vector<1x16xf32>
    %111 = vector.broadcast %110 : vector<1x16xf32> to vector<16x16xf32>
    %112 = arith.mulf %107, %111 : vector<16x16xf32>
    %c1_59 = arith.constant 1 : index
    %c0_60 = arith.constant 0 : index
    %113 = vector.load %arg13[%c1_59, %c0_60] : memref<2x16xf32, #tpu.memory_space<vmem>>, vector<1x16xf32>
    %114 = vector.shape_cast %113 : vector<1x16xf32> to vector<16xf32>
    %115 = vector.shape_cast %114 : vector<16xf32> to vector<1x16xf32>
    %116 = vector.broadcast %115 : vector<1x16xf32> to vector<16x16xf32>
    %117 = arith.addf %112, %116 : vector<16x16xf32>
    %118 = arith.addf %30, %117 : vector<16x16xf32>
    %119 = arith.truncf %118 : vector<16x16xf32> to vector<16x16xbf16>
    %c0_61 = arith.constant 0 : index
    %c0_62 = arith.constant 0 : index
    %120 = vector.load %arg14[%c0_61, %c0_62] : memref<16x16xbf16, #tpu.memory_space<vmem>>, vector<16x16xbf16>
    %cst_63 = arith.constant dense<0.000000e+00> : vector<16x16xf32>
    %121 = tpu.matmul %119, %120, %cst_63 {dimension_numbers = #tpu.dot_dimension_numbers<[1], [0], [0], [1], [0, 0, 1, 1], [], []>} : vector<16x16xbf16>, vector<16x16xbf16>, vector<16x16xf32> -> vector<16x16xf32>
    %cst_64 = arith.constant 0.000000e+00 : f32
    %cst_65 = arith.constant 6.000000e+00 : f32
    %122 = vector.broadcast %cst_64 : f32 to vector<16x16xf32>
    %123 = arith.maximumf %122, %121 : vector<16x16xf32>
    %124 = vector.broadcast %cst_65 : f32 to vector<16x16xf32>
    %125 = arith.minimumf %124, %123 : vector<16x16xf32>
    %126 = arith.addf %118, %125 : vector<16x16xf32>
    %127 = tpu.concatenate %23, %126 in 1 : vector<16x64xf32>, vector<16x16xf32> -> vector<16x80xf32>
    %128 = arith.truncf %127 : vector<16x80xf32> to vector<16x80xbf16>
    %cst_66 = arith.constant 0.000000e+00 : f32
    %129 = vector.broadcast %cst_66 : f32 to vector<12x128xf32>
    %c0_67 = arith.constant 0 : index
    %c0_68 = arith.constant 0 : index
    %c0_69 = arith.constant 0 : index
    %130 = vector.load %arg15[%c0_67, %c0_68, %c0_69] : memref<5x12x16xbf16, #tpu.memory_space<vmem>>, vector<1x12x16xbf16>
    %131 = vector.shape_cast %130 : vector<1x12x16xbf16> to vector<12x16xbf16>
    %cst_70 = arith.constant dense<0.000000e+00> : vector<12x80xf32>
    %132 = tpu.matmul %131, %128, %cst_70 {dimension_numbers = #tpu.dot_dimension_numbers<[1], [0], [0], [1], [0, 0, 1, 1], [], []>} : vector<12x16xbf16>, vector<16x80xbf16>, vector<12x80xf32> -> vector<12x80xf32>
    %133 = arith.truncf %132 : vector<12x80xf32> to vector<12x80xbf16>
    %c0_71 = arith.constant 0 : index
    %c0_72 = arith.constant 0 : index
    %c0_73 = arith.constant 0 : index
    %134 = vector.load %arg16[%c0_71, %c0_72, %c0_73] : memref<5x80x128xbf16, #tpu.memory_space<vmem>>, vector<1x80x128xbf16>
    %135 = vector.shape_cast %134 : vector<1x80x128xbf16> to vector<80x128xbf16>
    %cst_74 = arith.constant dense<0.000000e+00> : vector<12x128xf32>
    %136 = tpu.matmul %133, %135, %cst_74 {dimension_numbers = #tpu.dot_dimension_numbers<[1], [0], [0], [1], [0, 0, 1, 1], [], []>} : vector<12x80xbf16>, vector<80x128xbf16>, vector<12x128xf32> -> vector<12x128xf32>
    %137 = arith.addf %129, %136 : vector<12x128xf32>
    %c1_75 = arith.constant 1 : index
    %c0_76 = arith.constant 0 : index
    %c0_77 = arith.constant 0 : index
    %138 = vector.load %arg15[%c1_75, %c0_76, %c0_77] : memref<5x12x16xbf16, #tpu.memory_space<vmem>>, vector<1x12x16xbf16>
    %139 = vector.shape_cast %138 : vector<1x12x16xbf16> to vector<12x16xbf16>
    %cst_78 = arith.constant dense<0.000000e+00> : vector<12x80xf32>
    %140 = tpu.matmul %139, %128, %cst_78 {dimension_numbers = #tpu.dot_dimension_numbers<[1], [0], [0], [1], [0, 0, 1, 1], [], []>} : vector<12x16xbf16>, vector<16x80xbf16>, vector<12x80xf32> -> vector<12x80xf32>
    %141 = arith.truncf %140 : vector<12x80xf32> to vector<12x80xbf16>
    %c1_79 = arith.constant 1 : index
    %c0_80 = arith.constant 0 : index
    %c0_81 = arith.constant 0 : index
    %142 = vector.load %arg16[%c1_79, %c0_80, %c0_81] : memref<5x80x128xbf16, #tpu.memory_space<vmem>>, vector<1x80x128xbf16>
    %143 = vector.shape_cast %142 : vector<1x80x128xbf16> to vector<80x128xbf16>
    %cst_82 = arith.constant dense<0.000000e+00> : vector<12x128xf32>
    %144 = tpu.matmul %141, %143, %cst_82 {dimension_numbers = #tpu.dot_dimension_numbers<[1], [0], [0], [1], [0, 0, 1, 1], [], []>} : vector<12x80xbf16>, vector<80x128xbf16>, vector<12x128xf32> -> vector<12x128xf32>
    %145 = arith.addf %137, %144 : vector<12x128xf32>
    %c2 = arith.constant 2 : index
    %c0_83 = arith.constant 0 : index
    %c0_84 = arith.constant 0 : index
    %146 = vector.load %arg15[%c2, %c0_83, %c0_84] : memref<5x12x16xbf16, #tpu.memory_space<vmem>>, vector<1x12x16xbf16>
    %147 = vector.shape_cast %146 : vector<1x12x16xbf16> to vector<12x16xbf16>
    %cst_85 = arith.constant dense<0.000000e+00> : vector<12x80xf32>
    %148 = tpu.matmul %147, %128, %cst_85 {dimension_numbers = #tpu.dot_dimension_numbers<[1], [0], [0], [1], [0, 0, 1, 1], [], []>} : vector<12x16xbf16>, vector<16x80xbf16>, vector<12x80xf32> -> vector<12x80xf32>
    %149 = arith.truncf %148 : vector<12x80xf32> to vector<12x80xbf16>
    %c2_86 = arith.constant 2 : index
    %c0_87 = arith.constant 0 : index
    %c0_88 = arith.constant 0 : index
    %150 = vector.load %arg16[%c2_86, %c0_87, %c0_88] : memref<5x80x128xbf16, #tpu.memory_space<vmem>>, vector<1x80x128xbf16>
    %151 = vector.shape_cast %150 : vector<1x80x128xbf16> to vector<80x128xbf16>
    %cst_89 = arith.constant dense<0.000000e+00> : vector<12x128xf32>
    %152 = tpu.matmul %149, %151, %cst_89 {dimension_numbers = #tpu.dot_dimension_numbers<[1], [0], [0], [1], [0, 0, 1, 1], [], []>} : vector<12x80xbf16>, vector<80x128xbf16>, vector<12x128xf32> -> vector<12x128xf32>
    %153 = arith.addf %145, %152 : vector<12x128xf32>
    %c3 = arith.constant 3 : index
    %c0_90 = arith.constant 0 : index
    %c0_91 = arith.constant 0 : index
    %154 = vector.load %arg15[%c3, %c0_90, %c0_91] : memref<5x12x16xbf16, #tpu.memory_space<vmem>>, vector<1x12x16xbf16>
    %155 = vector.shape_cast %154 : vector<1x12x16xbf16> to vector<12x16xbf16>
    %cst_92 = arith.constant dense<0.000000e+00> : vector<12x80xf32>
    %156 = tpu.matmul %155, %128, %cst_92 {dimension_numbers = #tpu.dot_dimension_numbers<[1], [0], [0], [1], [0, 0, 1, 1], [], []>} : vector<12x16xbf16>, vector<16x80xbf16>, vector<12x80xf32> -> vector<12x80xf32>
    %157 = arith.truncf %156 : vector<12x80xf32> to vector<12x80xbf16>
    %c3_93 = arith.constant 3 : index
    %c0_94 = arith.constant 0 : index
    %c0_95 = arith.constant 0 : index
    %158 = vector.load %arg16[%c3_93, %c0_94, %c0_95] : memref<5x80x128xbf16, #tpu.memory_space<vmem>>, vector<1x80x128xbf16>
    %159 = vector.shape_cast %158 : vector<1x80x128xbf16> to vector<80x128xbf16>
    %cst_96 = arith.constant dense<0.000000e+00> : vector<12x128xf32>
    %160 = tpu.matmul %157, %159, %cst_96 {dimension_numbers = #tpu.dot_dimension_numbers<[1], [0], [0], [1], [0, 0, 1, 1], [], []>} : vector<12x80xbf16>, vector<80x128xbf16>, vector<12x128xf32> -> vector<12x128xf32>
    %161 = arith.addf %153, %160 : vector<12x128xf32>
    %c4 = arith.constant 4 : index
    %c0_97 = arith.constant 0 : index
    %c0_98 = arith.constant 0 : index
    %162 = vector.load %arg15[%c4, %c0_97, %c0_98] : memref<5x12x16xbf16, #tpu.memory_space<vmem>>, vector<1x12x16xbf16>
    %163 = vector.shape_cast %162 : vector<1x12x16xbf16> to vector<12x16xbf16>
    %cst_99 = arith.constant dense<0.000000e+00> : vector<12x80xf32>
    %164 = tpu.matmul %163, %128, %cst_99 {dimension_numbers = #tpu.dot_dimension_numbers<[1], [0], [0], [1], [0, 0, 1, 1], [], []>} : vector<12x16xbf16>, vector<16x80xbf16>, vector<12x80xf32> -> vector<12x80xf32>
    %165 = arith.truncf %164 : vector<12x80xf32> to vector<12x80xbf16>
    %c4_100 = arith.constant 4 : index
    %c0_101 = arith.constant 0 : index
    %c0_102 = arith.constant 0 : index
    %166 = vector.load %arg16[%c4_100, %c0_101, %c0_102] : memref<5x80x128xbf16, #tpu.memory_space<vmem>>, vector<1x80x128xbf16>
    %167 = vector.shape_cast %166 : vector<1x80x128xbf16> to vector<80x128xbf16>
    %cst_103 = arith.constant dense<0.000000e+00> : vector<12x128xf32>
    %168 = tpu.matmul %165, %167, %cst_103 {dimension_numbers = #tpu.dot_dimension_numbers<[1], [0], [0], [1], [0, 0, 1, 1], [], []>} : vector<12x80xbf16>, vector<80x128xbf16>, vector<12x128xf32> -> vector<12x128xf32>
    %169 = arith.addf %161, %168 : vector<12x128xf32>
    %c0_104 = arith.constant 0 : index
    %c0_105 = arith.constant 0 : index
    %170 = vector.load %arg17[%c0_104, %c0_105] : memref<2x128xf32, #tpu.memory_space<vmem>>, vector<1x128xf32>
    %171 = vector.shape_cast %170 : vector<1x128xf32> to vector<128xf32>
    %172 = vector.shape_cast %171 : vector<128xf32> to vector<1x128xf32>
    %173 = vector.broadcast %172 : vector<1x128xf32> to vector<12x128xf32>
    %174 = arith.mulf %169, %173 : vector<12x128xf32>
    %c1_106 = arith.constant 1 : index
    %c0_107 = arith.constant 0 : index
    %175 = vector.load %arg17[%c1_106, %c0_107] : memref<2x128xf32, #tpu.memory_space<vmem>>, vector<1x128xf32>
    %176 = vector.shape_cast %175 : vector<1x128xf32> to vector<128xf32>
    %177 = vector.shape_cast %176 : vector<128xf32> to vector<1x128xf32>
    %178 = vector.broadcast %177 : vector<1x128xf32> to vector<12x128xf32>
    %179 = arith.addf %174, %178 : vector<12x128xf32>
    %cst_108 = arith.constant 0.000000e+00 : f32
    %cst_109 = arith.constant 6.000000e+00 : f32
    %180 = vector.broadcast %cst_108 : f32 to vector<12x128xf32>
    %181 = arith.maximumf %180, %179 : vector<12x128xf32>
    %182 = vector.broadcast %cst_109 : f32 to vector<12x128xf32>
    %183 = arith.minimumf %182, %181 : vector<12x128xf32>
    %184 = arith.truncf %183 : vector<12x128xf32> to vector<12x128xbf16>
    %c0_110 = arith.constant 0 : index
    %c0_111 = arith.constant 0 : index
    %185 = vector.load %arg18[%c0_110, %c0_111] : memref<128x128xbf16, #tpu.memory_space<vmem>>, vector<128x128xbf16>
    %cst_112 = arith.constant dense<0.000000e+00> : vector<12x128xf32>
    %186 = tpu.matmul %184, %185, %cst_112 {dimension_numbers = #tpu.dot_dimension_numbers<[1], [0], [0], [1], [0, 0, 1, 1], [], []>} : vector<12x128xbf16>, vector<128x128xbf16>, vector<12x128xf32> -> vector<12x128xf32>
    %c0_113 = arith.constant 0 : index
    %c0_114 = arith.constant 0 : index
    %187 = vector.load %arg19[%c0_113, %c0_114] : memref<2x128xf32, #tpu.memory_space<vmem>>, vector<1x128xf32>
    %188 = vector.shape_cast %187 : vector<1x128xf32> to vector<128xf32>
    %189 = vector.shape_cast %188 : vector<128xf32> to vector<1x128xf32>
    %190 = vector.broadcast %189 : vector<1x128xf32> to vector<12x128xf32>
    %191 = arith.mulf %186, %190 : vector<12x128xf32>
    %c1_115 = arith.constant 1 : index
    %c0_116 = arith.constant 0 : index
    %192 = vector.load %arg19[%c1_115, %c0_116] : memref<2x128xf32, #tpu.memory_space<vmem>>, vector<1x128xf32>
    %193 = vector.shape_cast %192 : vector<1x128xf32> to vector<128xf32>
    %194 = vector.shape_cast %193 : vector<128xf32> to vector<1x128xf32>
    %195 = vector.broadcast %194 : vector<1x128xf32> to vector<12x128xf32>
    %196 = arith.addf %191, %195 : vector<12x128xf32>
    %cst_117 = arith.constant 0.000000e+00 : f32
    %cst_118 = arith.constant 6.000000e+00 : f32
    %197 = vector.broadcast %cst_117 : f32 to vector<12x128xf32>
    %198 = arith.maximumf %197, %196 : vector<12x128xf32>
    %199 = vector.broadcast %cst_118 : f32 to vector<12x128xf32>
    %200 = arith.minimumf %199, %198 : vector<12x128xf32>
    %c0_119 = arith.constant 0 : index
    %c0_120 = arith.constant 0 : index
    %c0_121 = arith.constant 0 : index
    %201 = vector.load %arg20[%c0_119, %c0_120, %c0_121] : memref<1x12x128xf32, #tpu.memory_space<vmem>>, vector<1x12x128xf32>
    %202 = vector.shape_cast %201 : vector<1x12x128xf32> to vector<12x128xf32>
    %203 = vector.shape_cast %200 : vector<12x128xf32> to vector<1x12x128xf32>
    tpu.vector_store %arg20[%c0_119, %c0_120, %c0_121], %203 {strides = array<i32>} : memref<1x12x128xf32, #tpu.memory_space<vmem>>, vector<1x12x128xf32>,
    return
  }
  func.func @transform_0(%arg0: i32) -> (i32, i32, i32) {
    %c0_i32 = arith.constant 0 : i32
    %c0_i32_0 = arith.constant 0 : i32
    %c0_i32_1 = arith.constant 0 : i32
    return %arg0, %c0_i32, %c0_i32_0 : i32, i32, i32
  }
  func.func @transform_1(%arg0: i32) -> (i32, i32, i32) {
    %c0_i32 = arith.constant 0 : i32
    %c0_i32_0 = arith.constant 0 : i32
    %c0_i32_1 = arith.constant 0 : i32
    return %arg0, %c0_i32, %c0_i32_0 : i32, i32, i32
  }
  func.func @transform_2(%arg0: i32) -> (i32, i32, i32) {
    %c0_i32 = arith.constant 0 : i32
    %c0_i32_0 = arith.constant 0 : i32
    %c0_i32_1 = arith.constant 0 : i32
    return %arg0, %c0_i32, %c0_i32_0 : i32, i32, i32
  }
  func.func @transform_3(%arg0: i32) -> (i32, i32) {
    %c0_i32 = arith.constant 0 : i32
    %c0_i32_0 = arith.constant 0 : i32
    %c0_i32_1 = arith.constant 0 : i32
    return %c0_i32, %c0_i32_0 : i32, i32
  }
  func.func @transform_4(%arg0: i32) -> (i32, i32) {
    %c0_i32 = arith.constant 0 : i32
    %c0_i32_0 = arith.constant 0 : i32
    %c0_i32_1 = arith.constant 0 : i32
    return %c0_i32, %c0_i32_0 : i32, i32
  }
  func.func @transform_5(%arg0: i32) -> (i32, i32) {
    %c0_i32 = arith.constant 0 : i32
    %c0_i32_0 = arith.constant 0 : i32
    %c0_i32_1 = arith.constant 0 : i32
    return %c0_i32, %c0_i32_0 : i32, i32
  }
  func.func @transform_6(%arg0: i32) -> (i32, i32) {
    %c0_i32 = arith.constant 0 : i32
    %c0_i32_0 = arith.constant 0 : i32
    %c0_i32_1 = arith.constant 0 : i32
    return %c0_i32, %c0_i32_0 : i32, i32
  }
  func.func @transform_7(%arg0: i32) -> i32 {
    %c0_i32 = arith.constant 0 : i32
    %c0_i32_0 = arith.constant 0 : i32
    return %c0_i32 : i32
  }
  func.func @transform_8(%arg0: i32) -> (i32, i32) {
    %c0_i32 = arith.constant 0 : i32
    %c0_i32_0 = arith.constant 0 : i32
    %c0_i32_1 = arith.constant 0 : i32
    return %c0_i32, %c0_i32_0 : i32, i32
  }
  func.func @transform_9(%arg0: i32) -> (i32, i32, i32) {
    %c0_i32 = arith.constant 0 : i32
    %c0_i32_0 = arith.constant 0 : i32
    %c0_i32_1 = arith.constant 0 : i32
    %c0_i32_2 = arith.constant 0 : i32
    return %c0_i32, %c0_i32_0, %c0_i32_1 : i32, i32, i32
  }
  func.func @transform_10(%arg0: i32) -> (i32, i32, i32) {
    %c0_i32 = arith.constant 0 : i32
    %c0_i32_0 = arith.constant 0 : i32
    %c0_i32_1 = arith.constant 0 : i32
    %c0_i32_2 = arith.constant 0 : i32
    return %c0_i32, %c0_i32_0, %c0_i32_1 : i32, i32, i32
  }
  func.func @transform_11(%arg0: i32) -> (i32, i32) {
    %c0_i32 = arith.constant 0 : i32
    %c0_i32_0 = arith.constant 0 : i32
    %c0_i32_1 = arith.constant 0 : i32
    return %c0_i32, %c0_i32_0 : i32, i32
  }
  func.func @transform_12(%arg0: i32) -> (i32, i32) {
    %c0_i32 = arith.constant 0 : i32
    %c0_i32_0 = arith.constant 0 : i32
    %c0_i32_1 = arith.constant 0 : i32
    return %c0_i32, %c0_i32_0 : i32, i32
  }
  func.func @transform_13(%arg0: i32) -> (i32, i32) {
    %c0_i32 = arith.constant 0 : i32
    %c0_i32_0 = arith.constant 0 : i32
    %c0_i32_1 = arith.constant 0 : i32
    return %c0_i32, %c0_i32_0 : i32, i32
  }
  func.func @transform_14(%arg0: i32) -> (i32, i32, i32) {
    %c0_i32 = arith.constant 0 : i32
    %c0_i32_0 = arith.constant 0 : i32
    %c0_i32_1 = arith.constant 0 : i32
    %c0_i32_2 = arith.constant 0 : i32
    return %c0_i32, %c0_i32_0, %c0_i32_1 : i32, i32, i32
  }
  func.func @transform_15(%arg0: i32) -> (i32, i32, i32) {
    %c0_i32 = arith.constant 0 : i32
    %c0_i32_0 = arith.constant 0 : i32
    %c0_i32_1 = arith.constant 0 : i32
    %c0_i32_2 = arith.constant 0 : i32
    return %c0_i32, %c0_i32_0, %c0_i32_1 : i32, i32, i32
  }
  func.func @transform_16(%arg0: i32) -> (i32, i32) {
    %c0_i32 = arith.constant 0 : i32
    %c0_i32_0 = arith.constant 0 : i32
    %c0_i32_1 = arith.constant 0 : i32
    return %c0_i32, %c0_i32_0 : i32, i32
  }
  func.func @transform_17(%arg0: i32) -> (i32, i32) {
    %c0_i32 = arith.constant 0 : i32
    %c0_i32_0 = arith.constant 0 : i32
    %c0_i32_1 = arith.constant 0 : i32
    return %c0_i32, %c0_i32_0 : i32, i32
  }
  func.func @transform_18(%arg0: i32) -> (i32, i32) {
    %c0_i32 = arith.constant 0 : i32
    %c0_i32_0 = arith.constant 0 : i32
    %c0_i32_1 = arith.constant 0 : i32
    return %c0_i32, %c0_i32_0 : i32, i32
  }
  func.func @transform_19(%arg0: i32) -> (i32, i32, i32) {
    %c0_i32 = arith.constant 0 : i32
    %c0_i32_0 = arith.constant 0 : i32
    %c0_i32_1 = arith.constant 0 : i32
    return %arg0, %c0_i32, %c0_i32_0 : i32, i32, i32
  }
}

</mosaic_0001>

<llo_original>
// kernel: forward.1
$region0: #{forward.1}
  #allocation0 [shape = 'u32[]', space=smem, size = 0x4, offset = 0x4, fixed_abs, tag = 'smem constant byte address 0x4 - core index']
  #allocation1 [shape = 'u32[144,128]{1,0:T(1,128)}', space=vmem, size = 0x12000, scoped, tag = 'internal scratch']
  #allocation2 [shape = 'f32[1]{0:T(128)S(6)}', space=smem, size = 0x200, scoped, tag = 'scoped memory for forward.1']
  %s0 = inlined_call_operand.vmem [shape: bf16[2,16,192], index: 0, kind: input, shape index: {}]
  %s1 = inlined_call_operand.vmem [shape: f32[2,16,64], index: 1, kind: input, shape index: {}]
  %s2 = inlined_call_operand.vmem [shape: bf16[2,64,16], index: 2, kind: input, shape index: {}]
  %s3 = inlined_call_operand.vmem [shape: bf16[192,64], index: 3, kind: input, shape index: {}]
  %s4 = inlined_call_operand.vmem [shape: bf16[64,64], index: 4, kind: input, shape index: {}]
  %s5 = inlined_call_operand.vmem [shape: f32[2,64], index: 5, kind: input, shape index: {}]
  %s6 = inlined_call_operand.vmem [shape: bf16[16,64], index: 6, kind: input, shape index: {}]
  %s7 = inlined_call_operand.<no memory space> [shape: f32[1], index: 7, kind: input, shape index: {}]
  %s8 = inlined_call_operand.vmem [shape: bf16[16,96], index: 8, kind: input, shape index: {}]
  %s9 = inlined_call_operand.vmem [shape: bf16[2,4,16], index: 9, kind: input, shape index: {}]
  %s10 = inlined_call_operand.vmem [shape: bf16[2,4,16], index: 10, kind: input, shape index: {}]
  %s11 = inlined_call_operand.vmem [shape: bf16[32,16], index: 11, kind: input, shape index: {}]
  %s12 = inlined_call_operand.vmem [shape: f32[2,16], index: 12, kind: input, shape index: {}]
  %s13 = inlined_call_operand.vmem [shape: bf16[16,16], index: 13, kind: input, shape index: {}]
  %s14 = inlined_call_operand.vmem [shape: bf16[5,12,16], index: 14, kind: input, shape index: {}]
  %s15 = inlined_call_operand.vmem [shape: bf16[5,80,128], index: 15, kind: input, shape index: {}]
  %s16 = inlined_call_operand.vmem [shape: f32[2,128], index: 16, kind: input, shape index: {}]
  %s17 = inlined_call_operand.vmem [shape: bf16[128,128], index: 17, kind: input, shape index: {}]
  %s18 = inlined_call_operand.vmem [shape: f32[2,128], index: 18, kind: input, shape index: {}]
  %s19 = inlined_call_operand.vmem [shape: f32[2,12,128], index: 19, kind: output, shape index: {}]
  %s20 = sld [smem:[#allocation0]]
  $region109: #{forward.1} parent=0
    _
  %s22 = ssub.s32 1, %s20
  %s23 = scalar_select 0, %s22, %s20
  %24 = sst [smem:[#allocation2]] %s7
  loop: start=0, step=1, limit=4
  $region2: #{forward.1} parent=0 // loop_pre_header
    _
  $region3: #{forward.1} parent=0 // loop_header
    %s26 = sphi 0, %s30
    %p27 = scmp.ge.s32.totalorder %s26, 4
    %s36 = sphi 0, %s38
    %s39 = sphi 0, %s36
    %s40 = sphi 0, %s39
    %s56 = sphi 0, %s40
    %s62 = sphi 0, %s64
    %s65 = sphi 0, %s62
    %s66 = sphi 0, %s65
    %s82 = sphi 0, %s66
    %s88 = sphi 0, %s90
    %s91 = sphi 0, %s88
    %s92 = sphi 0, %s91
    %s108 = sphi 0, %s92
    %s112 = sphi 0, %s112
    %s114 = sphi 0, %s112
    %s115 = sphi 0, %s114
    %s129 = sphi 0, %s115
    %s133 = sphi 0, %s133
    %s135 = sphi 0, %s133
    %s136 = sphi 0, %s135
    %s150 = sphi 0, %s136
    %s154 = sphi 0, %s154
    %s156 = sphi 0, %s154
    %s157 = sphi 0, %s156
    %s171 = sphi 0, %s157
    %s175 = sphi 0, %s175
    %s177 = sphi 0, %s175
    %s178 = sphi 0, %s177
    %s192 = sphi 0, %s178
    %s196 = sphi 0, %s196
    %s198 = sphi 0, %s196
    %s199 = sphi 0, %s198
    %s213 = sphi 0, %s199
    %s217 = sphi 0, %s217
    %s219 = sphi 0, %s217
    %s220 = sphi 0, %s219
    %s234 = sphi 0, %s220
    %s238 = sphi 0, %s238
    %s240 = sphi 0, %s238
    %s241 = sphi 0, %s240
    %s255 = sphi 0, %s241
    %s259 = sphi 0, %s259
    %s261 = sphi 0, %s259
    %s262 = sphi 0, %s261
    %s276 = sphi 0, %s262
    %s280 = sphi 0, %s280
    %s282 = sphi 0, %s280
    %s283 = sphi 0, %s282
    %s297 = sphi 0, %s283
    %s301 = sphi 0, %s301
    %s303 = sphi 0, %s301
    %s304 = sphi 0, %s303
    %s318 = sphi 0, %s304
    %s322 = sphi 0, %s322
    %s324 = sphi 0, %s322
    %s325 = sphi 0, %s324
    %s339 = sphi 0, %s325
    %s343 = sphi 0, %s343
    %s345 = sphi 0, %s343
    %s346 = sphi 0, %s345
    %s360 = sphi 0, %s346
    %s364 = sphi 0, %s364
    %s366 = sphi 0, %s364
    %s367 = sphi 0, %s366
    %s381 = sphi 0, %s367
    %s385 = sphi 0, %s385
    %s387 = sphi 0, %s385
    %s388 = sphi 0, %s387
    %s402 = sphi 0, %s388
    %s406 = sphi 0, %s406
    %s408 = sphi 0, %s406
    %s409 = sphi 0, %s408
    %s423 = sphi 0, %s409
    %s427 = sphi 0, %s427
    %s429 = sphi 0, %s427
    %s430 = sphi 0, %s429
    %s444 = sphi 0, %s430
    %s450 = sphi 0, %s452
    %s453 = sphi 0, %s450
    %s454 = sphi 0, %s453
    %s470 = sphi 0, %s454
  $region4: #{forward.1} parent=0 // loop_header_branch
    %29 = sbr.rel (%p27) target = $region8
  $region5: #{forward.1} parent=0 // loop_body
    %s31 = ssub.s32 %s26, 1
    %s32 = ssub.s32 %s26, 2
    %s33 = sadd.s32 %s26, 1
    %s34 = ssub.s32 %s26, %s33
    %p35 = scmp.eq.s32.totalorder %s34, 0
    %s37 = sadd.s32 %s36, 1
    %s38 = scalar_select %p35, %s36, %s37
    %p41 = pneg %p35
    %p42 = scmp.eq.s32.totalorder %s26, 1
    %p43 = por %p41, %p42
    %p44 = scmp.ne.s32.totalorder %s36, %s39
    %p45 = scmp.eq.s32.totalorder %s26, 0
    %p46 = por %p44, %p45
    %p47 = scmp.ne.s32.totalorder %s36, %s39
    %p48 = scmp.eq.s32.totalorder %s31, 1
    %p49 = por %p47, %p48
    %p50 = scmp.ne.s32.totalorder %s39, %s40
    %p51 = scmp.eq.s32.totalorder %s31, 0
    %p52 = por %p50, %p51
    %p53 = scmp.ne.s32.totalorder %s39, %s40
    %p54 = scmp.eq.s32.totalorder %s32, 1
    %p55 = por %p53, %p54
    %p57 = scmp.ne.s32.totalorder %s40, %s56
    %p58 = scmp.eq.s32.totalorder %s32, 0
    %p59 = por %p57, %p58
    %s60 = ssub.s32 %s26, %s33
    %p61 = scmp.eq.s32.totalorder %s60, 0
    %s63 = sadd.s32 %s62, 1
    %s64 = scalar_select %p61, %s62, %s63
    %p67 = pneg %p61
    %p68 = scmp.eq.s32.totalorder %s26, 1
    %p69 = por %p67, %p68
    %p70 = scmp.ne.s32.totalorder %s62, %s65
    %p71 = scmp.eq.s32.totalorder %s26, 0
    %p72 = por %p70, %p71
    %p73 = scmp.ne.s32.totalorder %s62, %s65
    %p74 = scmp.eq.s32.totalorder %s31, 1
    %p75 = por %p73, %p74
    %p76 = scmp.ne.s32.totalorder %s65, %s66
    %p77 = scmp.eq.s32.totalorder %s31, 0
    %p78 = por %p76, %p77
    %p79 = scmp.ne.s32.totalorder %s65, %s66
    %p80 = scmp.eq.s32.totalorder %s32, 1
    %p81 = por %p79, %p80
    %p83 = scmp.ne.s32.totalorder %s66, %s82
    %p84 = scmp.eq.s32.totalorder %s32, 0
    %p85 = por %p83, %p84
    %s86 = ssub.s32 %s26, %s33
    %p87 = scmp.eq.s32.totalorder %s86, 0
    %s89 = sadd.s32 %s88, 1
    %s90 = scalar_select %p87, %s88, %s89
    %p93 = pneg %p87
    %p94 = scmp.eq.s32.totalorder %s26, 1
    %p95 = por %p93, %p94
    %p96 = scmp.ne.s32.totalorder %s88, %s91
    %p97 = scmp.eq.s32.totalorder %s26, 0
    %p98 = por %p96, %p97
    %p99 = scmp.ne.s32.totalorder %s88, %s91
    %p100 = scmp.eq.s32.totalorder %s31, 1
    %p101 = por %p99, %p100
    %p102 = scmp.ne.s32.totalorder %s91, %s92
    %p103 = scmp.eq.s32.totalorder %s31, 0
    %p104 = por %p102, %p103
    %p105 = scmp.ne.s32.totalorder %s91, %s92
    %p106 = scmp.eq.s32.totalorder %s32, 1
    %p107 = por %p105, %p106
    %p109 = scmp.ne.s32.totalorder %s92, %s108
    %p110 = scmp.eq.s32.totalorder %s32, 0
    %p111 = por %p109, %p110
    %s113 = sadd.s32 %s112, 1
    %p116 = scmp.eq.s32.totalorder %s26, 1
    %p117 = scmp.ne.s32.totalorder %s112, %s114
    %p118 = scmp.eq.s32.totalorder %s26, 0
    %p119 = por %p117, %p118
    %p120 = scmp.ne.s32.totalorder %s112, %s114
    %p121 = scmp.eq.s32.totalorder %s31, 1
    %p122 = por %p120, %p121
    %p123 = scmp.ne.s32.totalorder %s114, %s115
    %p124 = scmp.eq.s32.totalorder %s31, 0
    %p125 = por %p123, %p124
    %p126 = scmp.ne.s32.totalorder %s114, %s115
    %p127 = scmp.eq.s32.totalorder %s32, 1
    %p128 = por %p126, %p127
    %p130 = scmp.ne.s32.totalorder %s115, %s129
    %p131 = scmp.eq.s32.totalorder %s32, 0
    %p132 = por %p130, %p131
    %s134 = sadd.s32 %s133, 1
    %p137 = scmp.eq.s32.totalorder %s26, 1
    %p138 = scmp.ne.s32.totalorder %s133, %s135
    %p139 = scmp.eq.s32.totalorder %s26, 0
    %p140 = por %p138, %p139
    %p141 = scmp.ne.s32.totalorder %s133, %s135
    %p142 = scmp.eq.s32.totalorder %s31, 1
    %p143 = por %p141, %p142
    %p144 = scmp.ne.s32.totalorder %s135, %s136
    %p145 = scmp.eq.s32.totalorder %s31, 0
    %p146 = por %p144, %p145
    %p147 = scmp.ne.s32.totalorder %s135, %s136
    %p148 = scmp.eq.s32.totalorder %s32, 1
    %p149 = por %p147, %p148
    %p151 = scmp.ne.s32.totalorder %s136, %s150
    %p152 = scmp.eq.s32.totalorder %s32, 0
    %p153 = por %p151, %p152
    %s155 = sadd.s32 %s154, 1
    %p158 = scmp.eq.s32.totalorder %s26, 1
    %p159 = scmp.ne.s32.totalorder %s154, %s156
    %p160 = scmp.eq.s32.totalorder %s26, 0
    %p161 = por %p159, %p160
    %p162 = scmp.ne.s32.totalorder %s154, %s156
    %p163 = scmp.eq.s32.totalorder %s31, 1
    %p164 = por %p162, %p163
    %p165 = scmp.ne.s32.totalorder %s156, %s157
    %p166 = scmp.eq.s32.totalorder %s31, 0
    %p167 = por %p165, %p166
    %p168 = scmp.ne.s32.totalorder %s156, %s157
    %p169 = scmp.eq.s32.totalorder %s32, 1
    %p170 = por %p168, %p169
    %p172 = scmp.ne.s32.totalorder %s157, %s171
    %p173 = scmp.eq.s32.totalorder %s32, 0
    %p174 = por %p172, %p173
    %s176 = sadd.s32 %s175, 1
    %p179 = scmp.eq.s32.totalorder %s26, 1
    %p180 = scmp.ne.s32.totalorder %s175, %s177
    %p181 = scmp.eq.s32.totalorder %s26, 0
    %p182 = por %p180, %p181
    %p183 = scmp.ne.s32.totalorder %s175, %s177
    %p184 = scmp.eq.s32.totalorder %s31, 1
    %p185 = por %p183, %p184
    %p186 = scmp.ne.s32.totalorder %s177, %s178
    %p187 = scmp.eq.s32.totalorder %s31, 0
    %p188 = por %p186, %p187
    %p189 = scmp.ne.s32.totalorder %s177, %s178
    %p190 = scmp.eq.s32.totalorder %s32, 1
    %p191 = por %p189, %p190
    %p193 = scmp.ne.s32.totalorder %s178, %s192
    %p194 = scmp.eq.s32.totalorder %s32, 0
    %p195 = por %p193, %p194
    %s197 = sadd.s32 %s196, 1
    %p200 = scmp.eq.s32.totalorder %s26, 1
    %p201 = scmp.ne.s32.totalorder %s196, %s198
    %p202 = scmp.eq.s32.totalorder %s26, 0
    %p203 = por %p201, %p202
    %p204 = scmp.ne.s32.totalorder %s196, %s198
    %p205 = scmp.eq.s32.totalorder %s31, 1
    %p206 = por %p204, %p205
    %p207 = scmp.ne.s32.totalorder %s198, %s199
    %p208 = scmp.eq.s32.totalorder %s31, 0
    %p209 = por %p207, %p208
    %p210 = scmp.ne.s32.totalorder %s198, %s199
    %p211 = scmp.eq.s32.totalorder %s32, 1
    %p212 = por %p210, %p211
    %p214 = scmp.ne.s32.totalorder %s199, %s213
    %p215 = scmp.eq.s32.totalorder %s32, 0
    %p216 = por %p214, %p215
    %s218 = sadd.s32 %s217, 1
    %p221 = scmp.eq.s32.totalorder %s26, 1
    %p222 = scmp.ne.s32.totalorder %s217, %s219
    %p223 = scmp.eq.s32.totalorder %s26, 0
    %p224 = por %p222, %p223
    %p225 = scmp.ne.s32.totalorder %s217, %s219
    %p226 = scmp.eq.s32.totalorder %s31, 1
    %p227 = por %p225, %p226
    %p228 = scmp.ne.s32.totalorder %s219, %s220
    %p229 = scmp.eq.s32.totalorder %s31, 0
    %p230 = por %p228, %p229
    %p231 = scmp.ne.s32.totalorder %s219, %s220
    %p232 = scmp.eq.s32.totalorder %s32, 1
    %p233 = por %p231, %p232
    %p235 = scmp.ne.s32.totalorder %s220, %s234
    %p236 = scmp.eq.s32.totalorder %s32, 0
    %p237 = por %p235, %p236
    %s239 = sadd.s32 %s238, 1
    %p242 = scmp.eq.s32.totalorder %s26, 1
    %p243 = scmp.ne.s32.totalorder %s238, %s240
    %p244 = scmp.eq.s32.totalorder %s26, 0
    %p245 = por %p243, %p244
    %p246 = scmp.ne.s32.totalorder %s238, %s240
    %p247 = scmp.eq.s32.totalorder %s31, 1
    %p248 = por %p246, %p247
    %p249 = scmp.ne.s32.totalorder %s240, %s241
    %p250 = scmp.eq.s32.totalorder %s31, 0
    %p251 = por %p249, %p250
    %p252 = scmp.ne.s32.totalorder %s240, %s241
    %p253 = scmp.eq.s32.totalorder %s32, 1
    %p254 = por %p252, %p253
    %p256 = scmp.ne.s32.totalorder %s241, %s255
    %p257 = scmp.eq.s32.totalorder %s32, 0
    %p258 = por %p256, %p257
    %s260 = sadd.s32 %s259, 1
    %p263 = scmp.eq.s32.totalorder %s26, 1
    %p264 = scmp.ne.s32.totalorder %s259, %s261
    %p265 = scmp.eq.s32.totalorder %s26, 0
    %p266 = por %p264, %p265
    %p267 = scmp.ne.s32.totalorder %s259, %s261
    %p268 = scmp.eq.s32.totalorder %s31, 1
    %p269 = por %p267, %p268
    %p270 = scmp.ne.s32.totalorder %s261, %s262
    %p271 = scmp.eq.s32.totalorder %s31, 0
    %p272 = por %p270, %p271
    %p273 = scmp.ne.s32.totalorder %s261, %s262
    %p274 = scmp.eq.s32.totalorder %s32, 1
    %p275 = por %p273, %p274
    %p277 = scmp.ne.s32.totalorder %s262, %s276
    %p278 = scmp.eq.s32.totalorder %s32, 0
    %p279 = por %p277, %p278
    %s281 = sadd.s32 %s280, 1
    %p284 = scmp.eq.s32.totalorder %s26, 1
    %p285 = scmp.ne.s32.totalorder %s280, %s282
    %p286 = scmp.eq.s32.totalorder %s26, 0
    %p287 = por %p285, %p286
    %p288 = scmp.ne.s32.totalorder %s280, %s282
    %p289 = scmp.eq.s32.totalorder %s31, 1
    %p290 = por %p288, %p289
    %p291 = scmp.ne.s32.totalorder %s282, %s283
    %p292 = scmp.eq.s32.totalorder %s31, 0
    %p293 = por %p291, %p292
    %p294 = scmp.ne.s32.totalorder %s282, %s283
    %p295 = scmp.eq.s32.totalorder %s32, 1
    %p296 = por %p294, %p295
    %p298 = scmp.ne.s32.totalorder %s283, %s297
    %p299 = scmp.eq.s32.totalorder %s32, 0
    %p300 = por %p298, %p299
    %s302 = sadd.s32 %s301, 1
    %p305 = scmp.eq.s32.totalorder %s26, 1
    %p306 = scmp.ne.s32.totalorder %s301, %s303
    %p307 = scmp.eq.s32.totalorder %s26, 0
    %p308 = por %p306, %p307
    %p309 = scmp.ne.s32.totalorder %s301, %s303
    %p310 = scmp.eq.s32.totalorder %s31, 1
    %p311 = por %p309, %p310
    %p312 = scmp.ne.s32.totalorder %s303, %s304
    %p313 = scmp.eq.s32.totalorder %s31, 0
    %p314 = por %p312, %p313
    %p315 = scmp.ne.s32.totalorder %s303, %s304
    %p316 = scmp.eq.s32.totalorder %s32, 1
    %p317 = por %p315, %p316
    %p319 = scmp.ne.s32.totalorder %s304, %s318
    %p320 = scmp.eq.s32.totalorder %s32, 0
    %p321 = por %p319, %p320
    %s323 = sadd.s32 %s322, 1
    %p326 = scmp.eq.s32.totalorder %s26, 1
    %p327 = scmp.ne.s32.totalorder %s322, %s324
    %p328 = scmp.eq.s32.totalorder %s26, 0
    %p329 = por %p327, %p328
    %p330 = scmp.ne.s32.totalorder %s322, %s324
    %p331 = scmp.eq.s32.totalorder %s31, 1
    %p332 = por %p330, %p331
    %p333 = scmp.ne.s32.totalorder %s324, %s325
    %p334 = scmp.eq.s32.totalorder %s31, 0
    %p335 = por %p333, %p334
    %p336 = scmp.ne.s32.totalorder %s324, %s325
    %p337 = scmp.eq.s32.totalorder %s32, 1
    %p338 = por %p336, %p337
    %p340 = scmp.ne.s32.totalorder %s325, %s339
    %p341 = scmp.eq.s32.totalorder %s32, 0
    %p342 = por %p340, %p341
    %s344 = sadd.s32 %s343, 1
    %p347 = scmp.eq.s32.totalorder %s26, 1
    %p348 = scmp.ne.s32.totalorder %s343, %s345
    %p349 = scmp.eq.s32.totalorder %s26, 0
    %p350 = por %p348, %p349
    %p351 = scmp.ne.s32.totalorder %s343, %s345
    %p352 = scmp.eq.s32.totalorder %s31, 1
    %p353 = por %p351, %p352
    %p354 = scmp.ne.s32.totalorder %s345, %s346
    %p355 = scmp.eq.s32.totalorder %s31, 0
    %p356 = por %p354, %p355
    %p357 = scmp.ne.s32.totalorder %s345, %s346
    %p358 = scmp.eq.s32.totalorder %s32, 1
    %p359 = por %p357, %p358
    %p361 = scmp.ne.s32.totalorder %s346, %s360
    %p362 = scmp.eq.s32.totalorder %s32, 0
    %p363 = por %p361, %p362
    %s365 = sadd.s32 %s364, 1
    %p368 = scmp.eq.s32.totalorder %s26, 1
    %p369 = scmp.ne.s32.totalorder %s364, %s366
    %p370 = scmp.eq.s32.totalorder %s26, 0
    %p371 = por %p369, %p370
    %p372 = scmp.ne.s32.totalorder %s364, %s366
    %p373 = scmp.eq.s32.totalorder %s31, 1
    %p374 = por %p372, %p373
    %p375 = scmp.ne.s32.totalorder %s366, %s367
    %p376 = scmp.eq.s32.totalorder %s31, 0
    %p377 = por %p375, %p376
    %p378 = scmp.ne.s32.totalorder %s366, %s367
    %p379 = scmp.eq.s32.totalorder %s32, 1
    %p380 = por %p378, %p379
    %p382 = scmp.ne.s32.totalorder %s367, %s381
    %p383 = scmp.eq.s32.totalorder %s32, 0
    %p384 = por %p382, %p383
    %s386 = sadd.s32 %s385, 1
    %p389 = scmp.eq.s32.totalorder %s26, 1
    %p390 = scmp.ne.s32.totalorder %s385, %s387
    %p391 = scmp.eq.s32.totalorder %s26, 0
    %p392 = por %p390, %p391
    %p393 = scmp.ne.s32.totalorder %s385, %s387
    %p394 = scmp.eq.s32.totalorder %s31, 1
    %p395 = por %p393, %p394
    %p396 = scmp.ne.s32.totalorder %s387, %s388
    %p397 = scmp.eq.s32.totalorder %s31, 0
    %p398 = por %p396, %p397
    %p399 = scmp.ne.s32.totalorder %s387, %s388
    %p400 = scmp.eq.s32.totalorder %s32, 1
    %p401 = por %p399, %p400
    %p403 = scmp.ne.s32.totalorder %s388, %s402
    %p404 = scmp.eq.s32.totalorder %s32, 0
    %p405 = por %p403, %p404
    %s407 = sadd.s32 %s406, 1
    %p410 = scmp.eq.s32.totalorder %s26, 1
    %p411 = scmp.ne.s32.totalorder %s406, %s408
    %p412 = scmp.eq.s32.totalorder %s26, 0
    %p413 = por %p411, %p412
    %p414 = scmp.ne.s32.totalorder %s406, %s408
    %p415 = scmp.eq.s32.totalorder %s31, 1
    %p416 = por %p414, %p415
    %p417 = scmp.ne.s32.totalorder %s408, %s409
    %p418 = scmp.eq.s32.totalorder %s31, 0
    %p419 = por %p417, %p418
    %p420 = scmp.ne.s32.totalorder %s408, %s409
    %p421 = scmp.eq.s32.totalorder %s32, 1
    %p422 = por %p420, %p421
    %p424 = scmp.ne.s32.totalorder %s409, %s423
    %p425 = scmp.eq.s32.totalorder %s32, 0
    %p426 = por %p424, %p425
    %s428 = sadd.s32 %s427, 1
    %p431 = scmp.eq.s32.totalorder %s26, 1
    %p432 = scmp.ne.s32.totalorder %s427, %s429
    %p433 = scmp.eq.s32.totalorder %s26, 0
    %p434 = por %p432, %p433
    %p435 = scmp.ne.s32.totalorder %s427, %s429
    %p436 = scmp.eq.s32.totalorder %s31, 1
    %p437 = por %p435, %p436
    %p438 = scmp.ne.s32.totalorder %s429, %s430
    %p439 = scmp.eq.s32.totalorder %s31, 0
    %p440 = por %p438, %p439
    %p441 = scmp.ne.s32.totalorder %s429, %s430
    %p442 = scmp.eq.s32.totalorder %s32, 1
    %p443 = por %p441, %p442
    %p445 = scmp.ne.s32.totalorder %s430, %s444
    %p446 = scmp.eq.s32.totalorder %s32, 0
    %p447 = por %p445, %p446
    %s448 = ssub.s32 %s26, %s33
    %p449 = scmp.eq.s32.totalorder %s448, 0
    %s451 = sadd.s32 %s450, 1
    %s452 = scalar_select %p449, %s450, %s451
    %p455 = pneg %p449
    %p456 = scmp.eq.s32.totalorder %s26, 1
    %p457 = por %p455, %p456
    %p458 = scmp.ne.s32.totalorder %s450, %s453
    %p459 = scmp.eq.s32.totalorder %s26, 0
    %p460 = por %p458, %p459
    %p461 = scmp.ne.s32.totalorder %s450, %s453
    %p462 = scmp.eq.s32.totalorder %s31, 1
    %p463 = por %p461, %p462
    %p464 = scmp.ne.s32.totalorder %s453, %s454
    %p465 = scmp.eq.s32.totalorder %s31, 0
    %p466 = por %p464, %p465
    %p467 = scmp.ne.s32.totalorder %s453, %s454
    %p468 = scmp.eq.s32.totalorder %s32, 1
    %p469 = por %p467, %p468
    %p471 = scmp.ne.s32.totalorder %s454, %s470
    %p472 = scmp.eq.s32.totalorder %s32, 0
    %p473 = por %p471, %p472
    %p474 = scmp.le.s32.totalorder 1, %s26
    %p475 = scmp.lt.s32.totalorder %s26, 3
    %p476 = pnand %p474, %p475
    %p477 = pneg %p476
    // Predicated region
    $region9: #{forward.1} parent=5 // pred_check
      _
    $region10: #{forward.1} parent=5 // pred_check_branch
      %479 = sbr.rel (%p476) target = $region12
    $region11: #{forward.1} parent=5 // pred_region
      %s480 = ssub.s32 %s26, 1
      // Predicated region
      $region13: #{forward.1} parent=11 // pred_check
        %p481 = pneg %p125
      $region14: #{forward.1} parent=11 // pred_check_branch
        %483 = sbr.rel (%p481) target = $region16
      $region15: #{forward.1} parent=11 // pred_region
        _
      $region16: #{forward.1} parent=11 // pred_fallthru
        _
      // Predicated region
      $region17: #{forward.1} parent=11 // pred_check
        %p484 = pneg %p146
      $region18: #{forward.1} parent=11 // pred_check_branch
        %486 = sbr.rel (%p484) target = $region20
      $region19: #{forward.1} parent=11 // pred_region
        _
      $region20: #{forward.1} parent=11 // pred_fallthru
        _
      // Predicated region
      $region21: #{forward.1} parent=11 // pred_check
        %p487 = pneg %p167
      $region22: #{forward.1} parent=11 // pred_check_branch
        %489 = sbr.rel (%p487) target = $region24
      $region23: #{forward.1} parent=11 // pred_region
        _
      $region24: #{forward.1} parent=11 // pred_fallthru
        _
      // Predicated region
      $region25: #{forward.1} parent=11 // pred_check
        %p490 = pneg %p188
      $region26: #{forward.1} parent=11 // pred_check_branch
        %492 = sbr.rel (%p490) target = $region28
      $region27: #{forward.1} parent=11 // pred_region
        _
      $region28: #{forward.1} parent=11 // pred_fallthru
        _
      // Predicated region
      $region29: #{forward.1} parent=11 // pred_check
        %p493 = pneg %p209
      $region30: #{forward.1} parent=11 // pred_check_branch
        %495 = sbr.rel (%p493) target = $region32
      $region31: #{forward.1} parent=11 // pred_region
        _
      $region32: #{forward.1} parent=11 // pred_fallthru
        _
      // Predicated region
      $region33: #{forward.1} parent=11 // pred_check
        %p496 = pneg %p230
      $region34: #{forward.1} parent=11 // pred_check_branch
        %498 = sbr.rel (%p496) target = $region36
      $region35: #{forward.1} parent=11 // pred_region
        _
      $region36: #{forward.1} parent=11 // pred_fallthru
        _
      // Predicated region
      $region37: #{forward.1} parent=11 // pred_check
        %p499 = pneg %p251
      $region38: #{forward.1} parent=11 // pred_check_branch
        %501 = sbr.rel (%p499) target = $region40
      $region39: #{forward.1} parent=11 // pred_region
        _
      $region40: #{forward.1} parent=11 // pred_fallthru
        _
      // Predicated region
      $region41: #{forward.1} parent=11 // pred_check
        %p502 = pneg %p272
      $region42: #{forward.1} parent=11 // pred_check_branch
        %504 = sbr.rel (%p502) target = $region44
      $region43: #{forward.1} parent=11 // pred_region
        _
      $region44: #{forward.1} parent=11 // pred_fallthru
        _
      // Predicated region
      $region45: #{forward.1} parent=11 // pred_check
        %p505 = pneg %p293
      $region46: #{forward.1} parent=11 // pred_check_branch
        %507 = sbr.rel (%p505) target = $region48
      $region47: #{forward.1} parent=11 // pred_region
        _
      $region48: #{forward.1} parent=11 // pred_fallthru
        _
      // Predicated region
      $region49: #{forward.1} parent=11 // pred_check
        %p508 = pneg %p314
      $region50: #{forward.1} parent=11 // pred_check_branch
        %510 = sbr.rel (%p508) target = $region52
      $region51: #{forward.1} parent=11 // pred_region
        _
      $region52: #{forward.1} parent=11 // pred_fallthru
        _
      // Predicated region
      $region53: #{forward.1} parent=11 // pred_check
        %p511 = pneg %p335
      $region54: #{forward.1} parent=11 // pred_check_branch
        %513 = sbr.rel (%p511) target = $region56
      $region55: #{forward.1} parent=11 // pred_region
        _
      $region56: #{forward.1} parent=11 // pred_fallthru
        _
      // Predicated region
      $region57: #{forward.1} parent=11 // pred_check
        %p514 = pneg %p356
      $region58: #{forward.1} parent=11 // pred_check_branch
        %516 = sbr.rel (%p514) target = $region60
      $region59: #{forward.1} parent=11 // pred_region
        _
      $region60: #{forward.1} parent=11 // pred_fallthru
        _
      // Predicated region
      $region61: #{forward.1} parent=11 // pred_check
        %p517 = pneg %p377
      $region62: #{forward.1} parent=11 // pred_check_branch
        %519 = sbr.rel (%p517) target = $region64
      $region63: #{forward.1} parent=11 // pred_region
        _
      $region64: #{forward.1} parent=11 // pred_fallthru
        _
      // Predicated region
      $region65: #{forward.1} parent=11 // pred_check
        %p520 = pneg %p398
      $region66: #{forward.1} parent=11 // pred_check_branch
        %522 = sbr.rel (%p520) target = $region68
      $region67: #{forward.1} parent=11 // pred_region
        _
      $region68: #{forward.1} parent=11 // pred_fallthru
        _
      // Predicated region
      $region69: #{forward.1} parent=11 // pred_check
        %p523 = pneg %p419
      $region70: #{forward.1} parent=11 // pred_check_branch
        %525 = sbr.rel (%p523) target = $region72
      $region71: #{forward.1} parent=11 // pred_region
        _
      $region72: #{forward.1} parent=11 // pred_fallthru
        _
      // Predicated region
      $region73: #{forward.1} parent=11 // pred_check
        %p526 = pneg %p440
      $region74: #{forward.1} parent=11 // pred_check_branch
        %528 = sbr.rel (%p526) target = $region76
      $region75: #{forward.1} parent=11 // pred_region
        _
      $region76: #{forward.1} parent=11 // pred_fallthru
        _
    $region12: #{forward.1} parent=5 // pred_fallthru
      _
    %p529 = scmp.lt.s32.totalorder %s26, 2
    // Predicated region
    $region77: #{forward.1} parent=5 // pred_check
      %p530 = pneg %p529
    $region78: #{forward.1} parent=5 // pred_check_branch
      %532 = sbr.rel (%p530) target = $region80
    $region79: #{forward.1} parent=5 // pred_region
      // Predicated region
      $region81: #{forward.1} parent=79 // pred_check
        %p533 = pneg %p46
      $region82: #{forward.1} parent=79 // pred_check_branch
        %535 = sbr.rel (%p533) target = $region84
      $region83: #{forward.1} parent=79 // pred_region
        %p536 = scmp.lt.s32.totalorder %s26, 1
        %s537 = scalar_select %p536, %s26, 1
        %s538 = smul.addr %s537, 4
        %s539 = smul.addr %s538, 4
        %s540 = scalar_lea.vmem %s0, %s539
      $region84: #{forward.1} parent=79 // pred_fallthru
        _
      // Predicated region
      $region85: #{forward.1} parent=79 // pred_check
        %p541 = pneg %p72
      $region86: #{forward.1} parent=79 // pred_check_branch
        %543 = sbr.rel (%p541) target = $region88
      $region87: #{forward.1} parent=79 // pred_region
        %p544 = scmp.lt.s32.totalorder %s26, 1
        %s545 = scalar_select %p544, %s26, 1
        %s546 = smul.addr %s545, 2
        %s547 = smul.addr %s546, 8
        %s548 = scalar_lea.vmem %s1, %s547
      $region88: #{forward.1} parent=79 // pred_fallthru
        _
      // Predicated region
      $region89: #{forward.1} parent=79 // pred_check
        %p549 = pneg %p98
      $region90: #{forward.1} parent=79 // pred_check_branch
        %551 = sbr.rel (%p549) target = $region92
      $region91: #{forward.1} parent=79 // pred_region
        %p552 = scmp.lt.s32.totalorder %s26, 1
        %s553 = scalar_select %p552, %s26, 1
        %s554 = smul.addr %s553, 8
        %s555 = smul.addr %s554, 4
        %s556 = scalar_lea.vmem %s2, %s555
      $region92: #{forward.1} parent=79 // pred_fallthru
        _
    $region80: #{forward.1} parent=5 // pred_fallthru
      _
    %p557 = scmp.le.s32.totalorder 1, %s26
    %p558 = scmp.lt.s32.totalorder %s26, 3
    %p559 = pnand %p557, %p558
    %p560 = pneg %p559
    // Predicated region
    $region93: #{forward.1} parent=5 // pred_check
      _
    $region94: #{forward.1} parent=5 // pred_check_branch
      %562 = sbr.rel (%p559) target = $region96
    $region95: #{forward.1} parent=5 // pred_region
      %s563 = ssub.s32 %s26, 1
      %p564 = scmp.lt.s32.totalorder %s31, 1
      %s565 = scalar_select %p564, %s31, 1
      %s566 = smul.addr %s565, 4
      %s567 = smul.addr %s566, 4
      %s568 = scalar_lea.vmem %s0, %s567
      %p569 = pneg %p52
      %p570 = pneg %p49
      %p571 = scmp.lt.s32.totalorder %s31, 1
      %s572 = scalar_select %p571, %s31, 1
      %s573 = smul.addr %s572, 2
      %s574 = smul.addr %s573, 8
      %s575 = scalar_lea.vmem %s1, %s574
      %p576 = pneg %p78
      %p577 = pneg %p75
      %p578 = scmp.lt.s32.totalorder %s31, 1
      %s579 = scalar_select %p578, %s31, 1
      %s580 = smul.addr %s579, 8
      %s581 = smul.addr %s580, 4
      %s582 = scalar_lea.vmem %s2, %s581
      %p583 = pneg %p104
      %p584 = pneg %p101
      %p585 = pneg %p125
      %p586 = pneg %p122
      %p587 = pneg %p146
      %p588 = pneg %p143
      %p589 = pneg %p167
      %p590 = pneg %p164
      %p591 = pneg %p188
      %p592 = pneg %p185
      %p593 = pneg %p209
      %p594 = pneg %p206
      %p595 = pneg %p230
      %p596 = pneg %p227
      %p597 = pneg %p251
      %p598 = pneg %p248
      %p599 = pneg %p272
      %p600 = pneg %p269
      %p601 = pneg %p293
      %p602 = pneg %p290
      %p603 = pneg %p314
      %p604 = pneg %p311
      %p605 = pneg %p335
      %p606 = pneg %p332
      %p607 = pneg %p356
      %p608 = pneg %p353
      %p609 = pneg %p377
      %p610 = pneg %p374
      %p611 = pneg %p398
      %p612 = pneg %p395
      %p613 = pneg %p419
      %p614 = pneg %p416
      %p615 = pneg %p440
      %p616 = pneg %p437
      %p617 = pneg %p466
      %p618 = pneg %p463
      %p619 = scmp.lt.s32.totalorder %s31, 1
      %s620 = scalar_select %p619, %s31, 1
      %s621 = smul.addr %s620, 2
      %s622 = smul.addr %s621, 8
      %s623 = scalar_lea.vmem %s19, %s622
      %p624 = scmp.lt.s32.totalorder %s31, 1
      %s625 = scalar_select %p624, %s31, 1
      %s626 = smul.addr %s625, 4
      %s627 = smul.addr %s626, 4
      %s628 = scalar_lea.vmem %s0, %s627
      %p629 = scmp.lt.s32.totalorder %s31, 1
      %s630 = scalar_select %p629, %s31, 1
      %s631 = smul.addr %s630, 2
      %s632 = smul.addr %s631, 8
      %s633 = scalar_lea.vmem %s1, %s632
      %p634 = scmp.lt.s32.totalorder %s31, 1
      %s635 = scalar_select %p634, %s31, 1
      %s636 = smul.addr %s635, 8
      %s637 = smul.addr %s636, 4
      %s638 = scalar_lea.vmem %s2, %s637
      %p639 = scmp.lt.s32.totalorder %s31, 1
      %s640 = scalar_select %p639, %s31, 1
      %s641 = smul.addr %s640, 2
      %s642 = smul.addr %s641, 8
      %s643 = scalar_lea.vmem %s19, %s642
      %v645 = vld [vmem:[%s628] sm:$0xff]
      %v646 = vld [vmem:[%s628 + $0x8] sm:$0xff]
      %v647 = vld [vmem:[%s3] sm:$0xf]
      %v648 = vld [vmem:[%s3 + $0x4] sm:$0xf]
      %v649 = vld [vmem:[%s3 + $0x8] sm:$0xf]
      %v650 = vld [vmem:[%s3 + $0xc] sm:$0xf]
      %v651 = vld [vmem:[%s3 + $0x10] sm:$0xf]
      %v652 = vld [vmem:[%s3 + $0x14] sm:$0xf]
      %v653 = vld [vmem:[%s3 + $0x18] sm:$0xf]
      %v654 = vld [vmem:[%s3 + $0x1c] sm:$0xf]
      %v655 = vld [vmem:[%s3 + $0x20] sm:$0xf]
      %v656 = vld [vmem:[%s3 + $0x24] sm:$0xf]
      %v657 = vld [vmem:[%s3 + $0x28] sm:$0xf]
      %v658 = vld [vmem:[%s3 + $0x2c] sm:$0xf]
      %v659 = vld [vmem:[%s3 + $0x30] sm:$0xf]
      %v660 = vld [vmem:[%s3 + $0x34] sm:$0xf]
      %v661 = vld [vmem:[%s3 + $0x38] sm:$0xf]
      %v662 = vld [vmem:[%s3 + $0x3c] sm:$0xf]
      %v663 = vld [vmem:[%s3 + $0x40] sm:$0xf]
      %v664 = vld [vmem:[%s3 + $0x44] sm:$0xf]
      %v665 = vld [vmem:[%s3 + $0x48] sm:$0xf]
      %v666 = vld [vmem:[%s3 + $0x4c] sm:$0xf]
      %v667 = vld [vmem:[%s3 + $0x50] sm:$0xf]
      %v668 = vld [vmem:[%s3 + $0x54] sm:$0xf]
      %v669 = vld [vmem:[%s3 + $0x58] sm:$0xf]
      %v670 = vld [vmem:[%s3 + $0x5c] sm:$0xf]
      %v673 = vunpack.c.l.b16 %v645
      %v674 = vunpack.c.h.b16 %v645
      %v675 = vunpack.c.l.b16 %v646
      %v676 = vunpack.c.h.b16 %v646
      %v677 = vpack.c.b16 %v675, %v673
      %v678 = vpack.c.b16 %v676, %v674
      %v704 = vunpack.c.l.b16 %v647
      %v705 = vunpack.c.l.b16 %v648
      %v706 = vunpack.c.l.b16 %v649
      %v707 = vunpack.c.l.b16 %v650
      %v708 = vunpack.c.l.b16 %v651
      %v709 = vunpack.c.l.b16 %v652
      %v710 = vunpack.c.l.b16 %v653
      %v711 = vunpack.c.l.b16 %v654
      %v712 = vunpack.c.l.b16 %v655
      %v713 = vunpack.c.l.b16 %v656
      %v714 = vunpack.c.l.b16 %v657
      %v715 = vunpack.c.l.b16 %v658
      %v716 = vunpack.c.l.b16 %v659
      %v717 = vunpack.c.l.b16 %v660
      %v718 = vunpack.c.l.b16 %v661
      %v719 = vunpack.c.l.b16 %v662
      %v720 = vunpack.c.l.b16 %v663
      %v721 = vunpack.c.l.b16 %v664
      %v722 = vunpack.c.l.b16 %v665
      %v723 = vunpack.c.l.b16 %v666
      %v724 = vunpack.c.l.b16 %v667
      %v725 = vunpack.c.l.b16 %v668
      %v726 = vunpack.c.l.b16 %v669
      %v727 = vunpack.c.l.b16 %v670
      %v728 = vpack.c.b16 %v705, %v704
      %v729 = vpack.c.b16 %v707, %v706
      %v730 = vpack.c.b16 %v709, %v708
      %v731 = vpack.c.b16 %v711, %v710
      %v732 = vpack.c.b16 %v713, %v712
      %v733 = vpack.c.b16 %v715, %v714
      %v734 = vpack.c.b16 %v717, %v716
      %v735 = vpack.c.b16 %v719, %v718
      %v736 = vpack.c.b16 %v721, %v720
      %v737 = vpack.c.b16 %v723, %v722
      %v738 = vpack.c.b16 %v725, %v724
      %v739 = vpack.c.b16 %v727, %v726
      %vm752 = vcmask 523264
      %v754 = vsel %vm752, %v678, 0
      %756 = vmatprep.subr.bf16.mxu0 0
      %757 = vmatpush1.bf16.msra.mxu0 %v735
      %758 = vmatprep.subr.bf16.mxu0 0
      %759 = vmatpush1.bf16.msra.mxu0 %v734
      %760 = vmatprep.subr.bf16.mxu0 0
      %761 = vmatpush1.bf16.msra.mxu0 %v733
      %762 = vmatprep.subr.bf16.mxu0 0
      %763 = vmatpush1.bf16.msra.mxu0 %v732
      %764 = vmatprep.subr.bf16.mxu0 0
      %765 = vmatpush1.bf16.msra.mxu0 %v731
      %766 = vmatprep.subr.bf16.mxu0 0
      %767 = vmatpush1.bf16.msra.mxu0 %v730
      %768 = vmatprep.subr.bf16.mxu0 0
      %769 = vmatpush1.bf16.msra.mxu0 %v729
      %770 = vmatprep.subr.bf16.mxu0 0
      %771 = vmatpush1.bf16.msra.mxu0 %v728
      %772 = vmatprep.subr.bf16.mxu0 0
      %773 = vmatpush2.bf16.msra.mxu0 0
      %774 = vmatprep.subr.bf16.mxu0 0
      %775 = vmatpush2.bf16.msra.mxu0 0
      %776 = vmatprep.subr.bf16.mxu0 0
      %777 = vmatpush2.bf16.msra.mxu0 0
      %778 = vmatprep.subr.bf16.mxu0 0
      %779 = vmatpush2.bf16.msra.mxu0 0
      %780 = vmatprep.subr.bf16.mxu0 0
      %781 = vmatpush2.bf16.msra.mxu0 %v739
      %782 = vmatprep.subr.bf16.mxu0 0
      %783 = vmatpush2.bf16.msra.mxu0 %v738
      %784 = vmatprep.subr.bf16.mxu0 0
      %785 = vmatpush2.bf16.msra.mxu0 %v737
      %786 = vmatprep.subr.bf16.mxu0 0
      %787 = vmatpush2.bf16.msra.mxu0 %v736
      %788 = vmatprep.mubr.bf16.mxu0 %v754
      %789 = vmatmul.mubr.bf16.gmra.mxu0 %v677
      %v790 = vpop.f32.mrf.mxu0
      %v791 = vadd.f32 0.0, %v790
      %v792 = vpop.f32.mrf.mxu0
      %v793 = vpop.f32.mrf.mxu0
      %v794 = vadd.f32 0.0, %v793
      %v795 = vpop.f32.mrf.mxu0
      %796 = vdwg.mxu0
      %v797 = vpack.c.bf16 %v794, %v791
      %v798 = vld [vmem:[%s4] sm:$0xf]
      %v799 = vld [vmem:[%s4 + $0x4] sm:$0xf]
      %v800 = vld [vmem:[%s4 + $0x8] sm:$0xf]
      %v801 = vld [vmem:[%s4 + $0xc] sm:$0xf]
      %v802 = vld [vmem:[%s4 + $0x10] sm:$0xf]
      %v803 = vld [vmem:[%s4 + $0x14] sm:$0xf]
      %v804 = vld [vmem:[%s4 + $0x18] sm:$0xf]
      %v805 = vld [vmem:[%s4 + $0x1c] sm:$0xf]
      %v814 = vunpack.c.l.b16 %v798
      %v815 = vunpack.c.l.b16 %v799
      %v816 = vunpack.c.l.b16 %v800
      %v817 = vunpack.c.l.b16 %v801
      %v818 = vunpack.c.l.b16 %v802
      %v819 = vunpack.c.l.b16 %v803
      %v820 = vunpack.c.l.b16 %v804
      %v821 = vunpack.c.l.b16 %v805
      %v822 = vpack.c.b16 %v815, %v814
      %v823 = vpack.c.b16 %v817, %v816
      %v824 = vpack.c.b16 %v819, %v818
      %v825 = vpack.c.b16 %v821, %v820
      %v831 = vsel %vm752, %v797, 0
      %833 = vmatprep.subr.bf16.mxu0 0
      %834 = vmatpush1.bf16.msra.mxu0 0
      %835 = vmatprep.subr.bf16.mxu0 0
      %836 = vmatpush1.bf16.msra.mxu0 0
      %837 = vmatprep.subr.bf16.mxu0 0
      %838 = vmatpush1.bf16.msra.mxu0 0
      %839 = vmatprep.subr.bf16.mxu0 0
      %840 = vmatpush1.bf16.msra.mxu0 0
      %841 = vmatprep.subr.bf16.mxu0 0
      %842 = vmatpush1.bf16.msra.mxu0 %v825
      %843 = vmatprep.subr.bf16.mxu0 0
      %844 = vmatpush1.bf16.msra.mxu0 %v824
      %845 = vmatprep.subr.bf16.mxu0 0
      %846 = vmatpush1.bf16.msra.mxu0 %v823
      %847 = vmatprep.subr.bf16.mxu0 0
      %848 = vmatpush1.bf16.msra.mxu0 %v822
      %849 = vmatprep.subr.bf16.mxu0 0
      %850 = vmatpush2.bf16.msra.mxu0 0
      %851 = vmatprep.subr.bf16.mxu0 0
      %852 = vmatpush2.bf16.msra.mxu0 0
      %853 = vmatprep.subr.bf16.mxu0 0
      %854 = vmatpush2.bf16.msra.mxu0 0
      %855 = vmatprep.subr.bf16.mxu0 0
      %856 = vmatpush2.bf16.msra.mxu0 0
      %857 = vmatprep.subr.bf16.mxu0 0
      %858 = vmatpush2.bf16.msra.mxu0 0
      %859 = vmatprep.subr.bf16.mxu0 0
      %860 = vmatpush2.bf16.msra.mxu0 0
      %861 = vmatprep.subr.bf16.mxu0 0
      %862 = vmatpush2.bf16.msra.mxu0 0
      %863 = vmatprep.subr.bf16.mxu0 0
      %864 = vmatpush2.bf16.msra.mxu0 0
      %865 = vmatprep.mubr.bf16.mxu0 0
      %866 = vmatmul.mubr.bf16.gmra.mxu0 %v831
      %v867 = vpop.f32.mrf.mxu0
      %v868 = vadd.f32 0.0, %v867
      %v869 = vpop.f32.mrf.mxu0
      %v870 = vpop.f32.mrf.mxu0
      %v871 = vadd.f32 0.0, %v870
      %v872 = vpop.f32.mrf.mxu0
      %873 = vdwg.mxu0
      %v874 = vld [vmem:[%s633] sm:$0xff]
      %v875 = vld [vmem:[%s633 + $0x8] sm:$0xff]
      %v876 = vld [vmem:[%s5] sm:$0x1]
      %v877 = vlaneseq
      %v878 = vshrl.u32 %v877, 7
      %v879 = vsub.s32 0, %v878
      %v880 = vrot.slane %v876, %v879
      %v881 = vmul.f32 %v868, %v880
      %v882 = vmul.f32 %v871, %v880
      %v883 = vld [vmem:[%s5 + $0x1] sm:$0x1]
      %v884 = vlaneseq
      %v885 = vshrl.u32 %v884, 7
      %v886 = vsub.s32 0, %v885
      %v887 = vrot.slane %v883, %v886
      %v888 = vadd.f32 %v881, %v887
      %v889 = vadd.f32 %v882, %v887
      %v890 = vmax.f32 %v888, 0.0
      %v891 = vmax.f32 %v889, 0.0
      %v892 = vmin.f32 %v890, 6.0
      %v893 = vmin.f32 %v891, 6.0
      %v894 = vadd.f32 %v874, %v892
      %v895 = vadd.f32 %v875, %v893
      %v896 = vld [vmem:[%s6] sm:$0xf]
      %v897 = vld [vmem:[%s6 + $0x4] sm:$0xf]
      %v898 = vld [vmem:[%s638] sm:$0xf]
      %v899 = vld [vmem:[%s638 + $0x4] sm:$0xf]
      %v900 = vld [vmem:[%s638 + $0x8] sm:$0xf]
      %v901 = vld [vmem:[%s638 + $0xc] sm:$0xf]
      %v902 = vld [vmem:[%s638 + $0x10] sm:$0xf]
      %v903 = vld [vmem:[%s638 + $0x14] sm:$0xf]
      %v904 = vld [vmem:[%s638 + $0x18] sm:$0xf]
      %v905 = vld [vmem:[%s638 + $0x1c] sm:$0xf]
      %s906 = sld [smem:[#allocation2]]
      %v907 = vstv %s906
      %v910 = vunpack.c.l.b16 %v896
      %v911 = vunpack.c.l.b16 %v897
      %v912 = vpack.c.b16 %v911, %v910
      %v921 = vunpack.c.l.b16 %v898
      %v922 = vunpack.c.l.b16 %v899
      %v923 = vunpack.c.l.b16 %v900
      %v924 = vunpack.c.l.b16 %v901
      %v925 = vunpack.c.l.b16 %v902
      %v926 = vunpack.c.l.b16 %v903
      %v927 = vunpack.c.l.b16 %v904
      %v928 = vunpack.c.l.b16 %v905
      %v929 = vpack.c.b16 %v922, %v921
      %v930 = vpack.c.b16 %v924, %v923
      %v931 = vpack.c.b16 %v926, %v925
      %v932 = vpack.c.b16 %v928, %v927
      %v938 = vsel %vm752, %v912, 0
      %940 = vmatprep.subr.bf16.mxu0 0
      %941 = vmatpush1.bf16.msra.mxu0 0
      %942 = vmatprep.subr.bf16.mxu0 0
      %943 = vmatpush1.bf16.msra.mxu0 0
      %944 = vmatprep.subr.bf16.mxu0 0
      %945 = vmatpush1.bf16.msra.mxu0 0
      %946 = vmatprep.subr.bf16.mxu0 0
      %947 = vmatpush1.bf16.msra.mxu0 0
      %948 = vmatprep.subr.bf16.mxu0 0
      %949 = vmatpush1.bf16.msra.mxu0 %v932
      %950 = vmatprep.subr.bf16.mxu0 0
      %951 = vmatpush1.bf16.msra.mxu0 %v931
      %952 = vmatprep.subr.bf16.mxu0 0
      %953 = vmatpush1.bf16.msra.mxu0 %v930
      %954 = vmatprep.subr.bf16.mxu0 0
      %955 = vmatpush1.bf16.msra.mxu0 %v929
      %956 = vmatprep.subr.bf16.mxu0 0
      %957 = vmatpush2.bf16.msra.mxu0 0
      %958 = vmatprep.subr.bf16.mxu0 0
      %959 = vmatpush2.bf16.msra.mxu0 0
      %960 = vmatprep.subr.bf16.mxu0 0
      %961 = vmatpush2.bf16.msra.mxu0 0
      %962 = vmatprep.subr.bf16.mxu0 0
      %963 = vmatpush2.bf16.msra.mxu0 0
      %964 = vmatprep.subr.bf16.mxu0 0
      %965 = vmatpush2.bf16.msra.mxu0 0
      %966 = vmatprep.subr.bf16.mxu0 0
      %967 = vmatpush2.bf16.msra.mxu0 0
      %968 = vmatprep.subr.bf16.mxu0 0
      %969 = vmatpush2.bf16.msra.mxu0 0
      %970 = vmatprep.subr.bf16.mxu0 0
      %971 = vmatpush2.bf16.msra.mxu0 0
      %972 = vmatprep.mubr.bf16.mxu0 0
      %973 = vmatmul.mubr.bf16.gmra.mxu0 %v938
      %v974 = vpop.f32.mrf.mxu0
      %v975 = vadd.f32 %v907, %v974
      %v976 = vpop.f32.mrf.mxu0
      %v977 = vpop.f32.mrf.mxu0
      %v978 = vadd.f32 %v907, %v977
      %v979 = vpop.f32.mrf.mxu0
      %980 = vdwg.mxu0
      %v981 = vpack.c.bf16 %v978, %v975
      %v982 = vld [vmem:[%s8] sm:$0xf]
      %v983 = vld [vmem:[%s8 + $0x4] sm:$0xf]
      %v986 = vunpack.c.l.b16 %v982
      %v987 = vunpack.c.l.b16 %v983
      %v988 = vpack.c.b16 %v987, %v986
      %vm990 = vcmask 130048
      %v992 = vsel %vm990, %v981, 0
      %994 = vmatprep.subr.bf16.mxu0 0
      %995 = vmatpush1.bf16.msra.mxu0 0
      %996 = vmatprep.subr.bf16.mxu0 0
      %997 = vmatpush1.bf16.msra.mxu0 0
      %998 = vmatprep.subr.bf16.mxu0 0
      %999 = vmatpush1.bf16.msra.mxu0 0
      %1000 = vmatprep.subr.bf16.mxu0 0
      %1001 = vmatpush1.bf16.msra.mxu0 0
      %1002 = vmatprep.subr.bf16.mxu0 0
      %1003 = vmatpush1.bf16.msra.mxu0 0
      %1004 = vmatprep.subr.bf16.mxu0 0
      %1005 = vmatpush1.bf16.msra.mxu0 0
      %1006 = vmatprep.subr.bf16.mxu0 0
      %1007 = vmatpush1.bf16.msra.mxu0 0
      %1008 = vmatprep.subr.bf16.mxu0 0
      %1009 = vmatpush1.bf16.msra.mxu0 %v988
      %1010 = vmatprep.subr.bf16.mxu0 0
      %1011 = vmatpush2.bf16.msra.mxu0 0
      %1012 = vmatprep.subr.bf16.mxu0 0
      %1013 = vmatpush2.bf16.msra.mxu0 0
      %1014 = vmatprep.subr.bf16.mxu0 0
      %1015 = vmatpush2.bf16.msra.mxu0 0
      %1016 = vmatprep.subr.bf16.mxu0 0
      %1017 = vmatpush2.bf16.msra.mxu0 0
      %1018 = vmatprep.subr.bf16.mxu0 0
      %1019 = vmatpush2.bf16.msra.mxu0 0
      %1020 = vmatprep.subr.bf16.mxu0 0
      %1021 = vmatpush2.bf16.msra.mxu0 0
      %1022 = vmatprep.subr.bf16.mxu0 0
      %1023 = vmatpush2.bf16.msra.mxu0 0
      %1024 = vmatprep.subr.bf16.mxu0 0
      %1025 = vmatpush2.bf16.msra.mxu0 0
      %1026 = vmatprep.mubr.bf16.mxu0 0
      %1027 = vmatmul.mubr.bf16.gmra.mxu0 %v992
      %v1028 = vpop.f32.mrf.mxu0
      %v1029 = vadd.f32 0.0, %v1028
      %v1030 = vpop.f32.mrf.mxu0
      %v1031 = vpop.f32.mrf.mxu0
      %v1032 = vadd.f32 0.0, %v1031
      %v1033 = vpop.f32.mrf.mxu0
      %1034 = vdwg.mxu0
      %v1035 = vpack.c.bf16 %v1032, %v1029
      %v1036 = vld [vmem:[%s9] sm:$0x3]
      %1038 = vrot.lane.b32.xlu0 %v1035, 96
      %v1039 = vpop.permute.xlu0 %1038
      %v1042 = vsel %vm990, %v1036, 0
      %1044 = vmatprep.subr.bf16.mxu0 0
      %1045 = vmatpush1.bf16.msra.mxu0 0
      %1046 = vmatprep.subr.bf16.mxu0 0
      %1047 = vmatpush1.bf16.msra.mxu0 0
      %1048 = vmatprep.subr.bf16.mxu0 0
      %1049 = vmatpush1.bf16.msra.mxu0 0
      %1050 = vmatprep.subr.bf16.mxu0 0
      %1051 = vmatpush1.bf16.msra.mxu0 0
      %1052 = vmatprep.subr.bf16.mxu0 0
      %1053 = vmatpush1.bf16.msra.mxu0 0
      %1054 = vmatprep.subr.bf16.mxu0 0
      %1055 = vmatpush1.bf16.msra.mxu0 0
      %1056 = vmatprep.subr.bf16.mxu0 0
      %1057 = vmatpush1.bf16.msra.mxu0 0
      %1058 = vmatprep.subr.bf16.mxu0 0
      %1059 = vmatpush1.bf16.msra.mxu0 %v1039
      %1060 = vmatprep.subr.bf16.mxu0 0
      %1061 = vmatpush2.bf16.msra.mxu0 0
      %1062 = vmatprep.subr.bf16.mxu0 0
      %1063 = vmatpush2.bf16.msra.mxu0 0
      %1064 = vmatprep.subr.bf16.mxu0 0
      %1065 = vmatpush2.bf16.msra.mxu0 0
      %1066 = vmatprep.subr.bf16.mxu0 0
      %1067 = vmatpush2.bf16.msra.mxu0 0
      %1068 = vmatprep.subr.bf16.mxu0 0
      %1069 = vmatpush2.bf16.msra.mxu0 0
      %1070 = vmatprep.subr.bf16.mxu0 0
      %1071 = vmatpush2.bf16.msra.mxu0 0
      %1072 = vmatprep.subr.bf16.mxu0 0
      %1073 = vmatpush2.bf16.msra.mxu0 0
      %1074 = vmatprep.subr.bf16.mxu0 0
      %1075 = vmatpush2.bf16.msra.mxu0 0
      %1076 = vmatprep.mubr.bf16.mxu0 0
      %1077 = vmatmul.mubr.bf16.gmra.mxu0 %v1042
      %v1078 = vpop.f32.mrf.mxu0
      %v1079 = vadd.f32 0.0, %v1078
      %v1080 = vpop.f32.mrf.mxu0
      %v1081 = vpop.f32.mrf.mxu0
      %v1082 = vpop.f32.mrf.mxu0
      %1083 = vdwg.mxu0
      %v1084 = vld [vmem:[%s10] sm:$0x3]
      %1085 = vrot.lane.b32.xlu0 %v1035, 64
      %v1086 = vpop.permute.xlu0 %1085
      %v1089 = vsel %vm990, %v1084, 0
      %1091 = vmatprep.subr.bf16.mxu0 0
      %1092 = vmatpush1.bf16.msra.mxu0 0
      %1093 = vmatprep.subr.bf16.mxu0 0
      %1094 = vmatpush1.bf16.msra.mxu0 0
      %1095 = vmatprep.subr.bf16.mxu0 0
      %1096 = vmatpush1.bf16.msra.mxu0 0
      %1097 = vmatprep.subr.bf16.mxu0 0
      %1098 = vmatpush1.bf16.msra.mxu0 0
      %1099 = vmatprep.subr.bf16.mxu0 0
      %1100 = vmatpush1.bf16.msra.mxu0 0
      %1101 = vmatprep.subr.bf16.mxu0 0
      %1102 = vmatpush1.bf16.msra.mxu0 0
      %1103 = vmatprep.subr.bf16.mxu0 0
      %1104 = vmatpush1.bf16.msra.mxu0 0
      %1105 = vmatprep.subr.bf16.mxu0 0
      %1106 = vmatpush1.bf16.msra.mxu0 %v1086
      %1107 = vmatprep.subr.bf16.mxu0 0
      %1108 = vmatpush2.bf16.msra.mxu0 0
      %1109 = vmatprep.subr.bf16.mxu0 0
      %1110 = vmatpush2.bf16.msra.mxu0 0
      %1111 = vmatprep.subr.bf16.mxu0 0
      %1112 = vmatpush2.bf16.msra.mxu0 0
      %1113 = vmatprep.subr.bf16.mxu0 0
      %1114 = vmatpush2.bf16.msra.mxu0 0
      %1115 = vmatprep.subr.bf16.mxu0 0
      %1116 = vmatpush2.bf16.msra.mxu0 0
      %1117 = vmatprep.subr.bf16.mxu0 0
      %1118 = vmatpush2.bf16.msra.mxu0 0
      %1119 = vmatprep.subr.bf16.mxu0 0
      %1120 = vmatpush2.bf16.msra.mxu0 0
      %1121 = vmatprep.subr.bf16.mxu0 0
      %1122 = vmatpush2.bf16.msra.mxu0 0
      %1123 = vmatprep.mubr.bf16.mxu0 0
      %1124 = vmatmul.mubr.bf16.gmra.mxu0 %v1089
      %v1125 = vpop.f32.mrf.mxu0
      %v1126 = vadd.f32 0.0, %v1125
      %v1127 = vpop.f32.mrf.mxu0
      %v1128 = vpop.f32.mrf.mxu0
      %v1129 = vpop.f32.mrf.mxu0
      %1130 = vdwg.mxu0
      %v1131 = vpack.c.bf16 %v1079, %v1079
      %v1133 = vsel %vm990, %v1035, 0
      %v1136 = vsel %vm990, %v1131, 0
      %1138 = vmatprep.subr.bf16.mxu0 0
      %1139 = vmatpush1.bf16.xpose.msra.mxu0 0
      %1140 = vmatprep.subr.bf16.mxu0 0
      %1141 = vmatpush1.bf16.xpose.msra.mxu0 0
      %1142 = vmatprep.subr.bf16.mxu0 0
      %1143 = vmatpush1.bf16.xpose.msra.mxu0 0
      %1144 = vmatprep.subr.bf16.mxu0 0
      %1145 = vmatpush1.bf16.xpose.msra.mxu0 0
      %1146 = vmatprep.subr.bf16.mxu0 0
      %1147 = vmatpush1.bf16.xpose.msra.mxu0 0
      %1148 = vmatprep.subr.bf16.mxu0 0
      %1149 = vmatpush1.bf16.xpose.msra.mxu0 0
      %1150 = vmatprep.subr.bf16.mxu0 0
      %1151 = vmatpush1.bf16.xpose.msra.mxu0 0
      %1152 = vmatprep.subr.bf16.mxu0 0
      %1153 = vmatpush1.bf16.xpose.msra.mxu0 %v1136
      %1154 = vmatprep.subr.bf16.mxu0 0
      %1155 = vmatpush2.bf16.xpose.msra.mxu0 0
      %1156 = vmatprep.subr.bf16.mxu0 0
      %1157 = vmatpush2.bf16.xpose.msra.mxu0 0
      %1158 = vmatprep.subr.bf16.mxu0 0
      %1159 = vmatpush2.bf16.xpose.msra.mxu0 0
      %1160 = vmatprep.subr.bf16.mxu0 0
      %1161 = vmatpush2.bf16.xpose.msra.mxu0 0
      %1162 = vmatprep.subr.bf16.mxu0 0
      %1163 = vmatpush2.bf16.xpose.msra.mxu0 0
      %1164 = vmatprep.subr.bf16.mxu0 0
      %1165 = vmatpush2.bf16.xpose.msra.mxu0 0
      %1166 = vmatprep.subr.bf16.mxu0 0
      %1167 = vmatpush2.bf16.xpose.msra.mxu0 0
      %1168 = vmatprep.subr.bf16.mxu0 0
      %1169 = vmatpush2.bf16.xpose.msra.mxu0 0
      %1170 = vmatprep.mubr.bf16.mxu0 0
      %1171 = vmatmul.mubr.bf16.gmra.mxu0 %v1133
      %v1172 = vpop.f32.mrf.mxu0
      %v1173 = vadd.f32 0.0, %v1172
      %v1174 = vpop.f32.mrf.mxu0
      %v1175 = vpop.f32.mrf.mxu0
      %v1176 = vadd.f32 0.0, %v1175
      %v1177 = vpop.f32.mrf.mxu0
      %1178 = vdwg.mxu0
      %vm1179 = vcmask 31744
      %v1180 = vsel %vm1179, %v1173, -inf
      %1181 = vmax.xlane.f32.xlu0 %v1180
      %v1182 = vpop.xlane.xlu0 %1181
      %v1183 = vsel %vm1179, %v1176, -inf
      %1184 = vmax.xlane.f32.xlu0 %v1183
      %v1185 = vpop.xlane.xlu0 %1184
      %v1186 = vsub.f32 %v1173, %v1182
      %v1187 = vsub.f32 %v1176, %v1185
      %v1188 = vmul.f32 %v1186, 1.442695
      %v1189 = vpow.pop %v1188
      %v1190 = vmul.f32 %v1187, 1.442695
      %v1191 = vpow.pop %v1190
      %v1192 = vsel %vm1179, %v1189, 0.0
      %1193 = vadd.xlane.f32.xlu0 %v1192
      %v1194 = vpop.xlane.xlu0 %1193
      %v1195 = vsel %vm1179, %v1191, 0.0
      %1196 = vadd.xlane.f32.xlu0 %v1195
      %v1197 = vpop.xlane.xlu0 %1196
      %v1198 = vrcp.pop %v1194
      %v1199 = vrcp.pop %v1197
      %v1200 = vmul.f32 %v1189, %v1198
      %v1201 = vmul.f32 %v1191, %v1199
      %v1202 = vpack.c.bf16 %v1201, %v1200
      %v1203 = vpack.c.bf16 %v1126, %v1126
      %v1205 = vsel %vm1179, %v1202, 0
      %vm1207 = vcmask 1041408
      %v1209 = vsel %vm1207, %v1203, 0
      %1211 = vmatprep.subr.bf16.mxu0 0
      %1212 = vmatpush1.bf16.msra.mxu0 0
      %1213 = vmatprep.subr.bf16.mxu0 0
      %1214 = vmatpush1.bf16.msra.mxu0 0
      %1215 = vmatprep.subr.bf16.mxu0 0
      %1216 = vmatpush1.bf16.msra.mxu0 0
      %1217 = vmatprep.subr.bf16.mxu0 0
      %1218 = vmatpush1.bf16.msra.mxu0 0
      %1219 = vmatprep.subr.bf16.mxu0 0
      %1220 = vmatpush1.bf16.msra.mxu0 0
      %1221 = vmatprep.subr.bf16.mxu0 0
      %1222 = vmatpush1.bf16.msra.mxu0 0
      %1223 = vmatprep.subr.bf16.mxu0 0
      %1224 = vmatpush1.bf16.msra.mxu0 0
      %1225 = vmatprep.subr.bf16.mxu0 0
      %1226 = vmatpush1.bf16.msra.mxu0 %v1209
      %1227 = vmatprep.subr.bf16.mxu0 0
      %1228 = vmatpush2.bf16.msra.mxu0 0
      %1229 = vmatprep.subr.bf16.mxu0 0
      %1230 = vmatpush2.bf16.msra.mxu0 0
      %1231 = vmatprep.subr.bf16.mxu0 0
      %1232 = vmatpush2.bf16.msra.mxu0 0
      %1233 = vmatprep.subr.bf16.mxu0 0
      %1234 = vmatpush2.bf16.msra.mxu0 0
      %1235 = vmatprep.subr.bf16.mxu0 0
      %1236 = vmatpush2.bf16.msra.mxu0 0
      %1237 = vmatprep.subr.bf16.mxu0 0
      %1238 = vmatpush2.bf16.msra.mxu0 0
      %1239 = vmatprep.subr.bf16.mxu0 0
      %1240 = vmatpush2.bf16.msra.mxu0 0
      %1241 = vmatprep.subr.bf16.mxu0 0
      %1242 = vmatpush2.bf16.msra.mxu0 0
      %1243 = vmatprep.mubr.bf16.mxu0 0
      %1244 = vmatmul.mubr.bf16.gmra.mxu0 %v1205
      %v1245 = vpop.f32.mrf.mxu0
      %v1246 = vadd.f32 0.0, %v1245
      %v1247 = vpop.f32.mrf.mxu0
      %v1248 = vpop.f32.mrf.mxu0
      %v1249 = vadd.f32 0.0, %v1248
      %v1250 = vpop.f32.mrf.mxu0
      %1251 = vdwg.mxu0
      %s1252 = scalar_lea.vmem %s9, 2
      %v1253 = vld [vmem:[%s1252] sm:$0x3]
      %1254 = vrot.lane.b32.xlu0 %v1035, 80
      %v1255 = vpop.permute.xlu0 %1254
      %v1258 = vsel %vm990, %v1253, 0
      %1260 = vmatprep.subr.bf16.mxu0 0
      %1261 = vmatpush1.bf16.msra.mxu0 0
      %1262 = vmatprep.subr.bf16.mxu0 0
      %1263 = vmatpush1.bf16.msra.mxu0 0
      %1264 = vmatprep.subr.bf16.mxu0 0
      %1265 = vmatpush1.bf16.msra.mxu0 0
      %1266 = vmatprep.subr.bf16.mxu0 0
      %1267 = vmatpush1.bf16.msra.mxu0 0
      %1268 = vmatprep.subr.bf16.mxu0 0
      %1269 = vmatpush1.bf16.msra.mxu0 0
      %1270 = vmatprep.subr.bf16.mxu0 0
      %1271 = vmatpush1.bf16.msra.mxu0 0
      %1272 = vmatprep.subr.bf16.mxu0 0
      %1273 = vmatpush1.bf16.msra.mxu0 0
      %1274 = vmatprep.subr.bf16.mxu0 0
      %1275 = vmatpush1.bf16.msra.mxu0 %v1255
      %1276 = vmatprep.subr.bf16.mxu0 0
      %1277 = vmatpush2.bf16.msra.mxu0 0
      %1278 = vmatprep.subr.bf16.mxu0 0
      %1279 = vmatpush2.bf16.msra.mxu0 0
      %1280 = vmatprep.subr.bf16.mxu0 0
      %1281 = vmatpush2.bf16.msra.mxu0 0
      %1282 = vmatprep.subr.bf16.mxu0 0
      %1283 = vmatpush2.bf16.msra.mxu0 0
      %1284 = vmatprep.subr.bf16.mxu0 0
      %1285 = vmatpush2.bf16.msra.mxu0 0
      %1286 = vmatprep.subr.bf16.mxu0 0
      %1287 = vmatpush2.bf16.msra.mxu0 0
      %1288 = vmatprep.subr.bf16.mxu0 0
      %1289 = vmatpush2.bf16.msra.mxu0 0
      %1290 = vmatprep.subr.bf16.mxu0 0
      %1291 = vmatpush2.bf16.msra.mxu0 0
      %1292 = vmatprep.mubr.bf16.mxu0 0
      %1293 = vmatmul.mubr.bf16.gmra.mxu0 %v1258
      %v1294 = vpop.f32.mrf.mxu0
      %v1295 = vadd.f32 0.0, %v1294
      %v1296 = vpop.f32.mrf.mxu0
      %v1297 = vpop.f32.mrf.mxu0
      %v1298 = vpop.f32.mrf.mxu0
      %1299 = vdwg.mxu0
      %s1300 = scalar_lea.vmem %s10, 2
      %v1301 = vld [vmem:[%s1300] sm:$0x3]
      %1302 = vrot.lane.b32.xlu0 %v1035, 48
      %v1303 = vpop.permute.xlu0 %1302
      %v1306 = vsel %vm990, %v1301, 0
      %1308 = vmatprep.subr.bf16.mxu0 0
      %1309 = vmatpush1.bf16.msra.mxu0 0
      %1310 = vmatprep.subr.bf16.mxu0 0
      %1311 = vmatpush1.bf16.msra.mxu0 0
      %1312 = vmatprep.subr.bf16.mxu0 0
      %1313 = vmatpush1.bf16.msra.mxu0 0
      %1314 = vmatprep.subr.bf16.mxu0 0
      %1315 = vmatpush1.bf16.msra.mxu0 0
      %1316 = vmatprep.subr.bf16.mxu0 0
      %1317 = vmatpush1.bf16.msra.mxu0 0
      %1318 = vmatprep.subr.bf16.mxu0 0
      %1319 = vmatpush1.bf16.msra.mxu0 0
      %1320 = vmatprep.subr.bf16.mxu0 0
      %1321 = vmatpush1.bf16.msra.mxu0 0
      %1322 = vmatprep.subr.bf16.mxu0 0
      %1323 = vmatpush1.bf16.msra.mxu0 %v1303
      %1324 = vmatprep.subr.bf16.mxu0 0
      %1325 = vmatpush2.bf16.msra.mxu0 0
      %1326 = vmatprep.subr.bf16.mxu0 0
      %1327 = vmatpush2.bf16.msra.mxu0 0
      %1328 = vmatprep.subr.bf16.mxu0 0
      %1329 = vmatpush2.bf16.msra.mxu0 0
      %1330 = vmatprep.subr.bf16.mxu0 0
      %1331 = vmatpush2.bf16.msra.mxu0 0
      %1332 = vmatprep.subr.bf16.mxu0 0
      %1333 = vmatpush2.bf16.msra.mxu0 0
      %1334 = vmatprep.subr.bf16.mxu0 0
      %1335 = vmatpush2.bf16.msra.mxu0 0
      %1336 = vmatprep.subr.bf16.mxu0 0
      %1337 = vmatpush2.bf16.msra.mxu0 0
      %1338 = vmatprep.subr.bf16.mxu0 0
      %1339 = vmatpush2.bf16.msra.mxu0 0
      %1340 = vmatprep.mubr.bf16.mxu0 0
      %1341 = vmatmul.mubr.bf16.gmra.mxu0 %v1306
      %v1342 = vpop.f32.mrf.mxu0
      %v1343 = vadd.f32 0.0, %v1342
      %v1344 = vpop.f32.mrf.mxu0
      %v1345 = vpop.f32.mrf.mxu0
      %v1346 = vpop.f32.mrf.mxu0
      %1347 = vdwg.mxu0
      %v1348 = vpack.c.bf16 %v1295, %v1295
      %1349 = vrot.lane.b32.xlu0 %v1035, 112
      %v1350 = vpop.permute.xlu0 %1349
      %v1352 = vsel %vm990, %v1350, 0
      %v1355 = vsel %vm990, %v1348, 0
      %1357 = vmatprep.subr.bf16.mxu0 0
      %1358 = vmatpush1.bf16.xpose.msra.mxu0 0
      %1359 = vmatprep.subr.bf16.mxu0 0
      %1360 = vmatpush1.bf16.xpose.msra.mxu0 0
      %1361 = vmatprep.subr.bf16.mxu0 0
      %1362 = vmatpush1.bf16.xpose.msra.mxu0 0
      %1363 = vmatprep.subr.bf16.mxu0 0
      %1364 = vmatpush1.bf16.xpose.msra.mxu0 0
      %1365 = vmatprep.subr.bf16.mxu0 0
      %1366 = vmatpush1.bf16.xpose.msra.mxu0 0
      %1367 = vmatprep.subr.bf16.mxu0 0
      %1368 = vmatpush1.bf16.xpose.msra.mxu0 0
      %1369 = vmatprep.subr.bf16.mxu0 0
      %1370 = vmatpush1.bf16.xpose.msra.mxu0 0
      %1371 = vmatprep.subr.bf16.mxu0 0
      %1372 = vmatpush1.bf16.xpose.msra.mxu0 %v1355
      %1373 = vmatprep.subr.bf16.mxu0 0
      %1374 = vmatpush2.bf16.xpose.msra.mxu0 0
      %1375 = vmatprep.subr.bf16.mxu0 0
      %1376 = vmatpush2.bf16.xpose.msra.mxu0 0
      %1377 = vmatprep.subr.bf16.mxu0 0
      %1378 = vmatpush2.bf16.xpose.msra.mxu0 0
      %1379 = vmatprep.subr.bf16.mxu0 0
      %1380 = vmatpush2.bf16.xpose.msra.mxu0 0
      %1381 = vmatprep.subr.bf16.mxu0 0
      %1382 = vmatpush2.bf16.xpose.msra.mxu0 0
      %1383 = vmatprep.subr.bf16.mxu0 0
      %1384 = vmatpush2.bf16.xpose.msra.mxu0 0
      %1385 = vmatprep.subr.bf16.mxu0 0
      %1386 = vmatpush2.bf16.xpose.msra.mxu0 0
      %1387 = vmatprep.subr.bf16.mxu0 0
      %1388 = vmatpush2.bf16.xpose.msra.mxu0 0
      %1389 = vmatprep.mubr.bf16.mxu0 0
      %1390 = vmatmul.mubr.bf16.gmra.mxu0 %v1352
      %v1391 = vpop.f32.mrf.mxu0
      %v1392 = vadd.f32 0.0, %v1391
      %v1393 = vpop.f32.mrf.mxu0
      %v1394 = vpop.f32.mrf.mxu0
      %v1395 = vadd.f32 0.0, %v1394
      %v1396 = vpop.f32.mrf.mxu0
      %1397 = vdwg.mxu0
      %v1398 = vsel %vm1179, %v1392, -inf
      %1399 = vmax.xlane.f32.xlu0 %v1398
      %v1400 = vpop.xlane.xlu0 %1399
      %v1401 = vsel %vm1179, %v1395, -inf
      %1402 = vmax.xlane.f32.xlu0 %v1401
      %v1403 = vpop.xlane.xlu0 %1402
      %v1404 = vsub.f32 %v1392, %v1400
      %v1405 = vsub.f32 %v1395, %v1403
      %v1406 = vmul.f32 %v1404, 1.442695
      %v1407 = vpow.pop %v1406
      %v1408 = vmul.f32 %v1405, 1.442695
      %v1409 = vpow.pop %v1408
      %v1410 = vsel %vm1179, %v1407, 0.0
      %1411 = vadd.xlane.f32.xlu0 %v1410
      %v1412 = vpop.xlane.xlu0 %1411
      %v1413 = vsel %vm1179, %v1409, 0.0
      %1414 = vadd.xlane.f32.xlu0 %v1413
      %v1415 = vpop.xlane.xlu0 %1414
      %v1416 = vrcp.pop %v1412
      %v1417 = vrcp.pop %v1415
      %v1418 = vmul.f32 %v1407, %v1416
      %v1419 = vmul.f32 %v1409, %v1417
      %v1420 = vpack.c.bf16 %v1419, %v1418
      %v1421 = vpack.c.bf16 %v1343, %v1343
      %v1423 = vsel %vm1179, %v1420, 0
      %v1426 = vsel %vm1207, %v1421, 0
      %1428 = vmatprep.subr.bf16.mxu0 0
      %1429 = vmatpush1.bf16.msra.mxu0 0
      %1430 = vmatprep.subr.bf16.mxu0 0
      %1431 = vmatpush1.bf16.msra.mxu0 0
      %1432 = vmatprep.subr.bf16.mxu0 0
      %1433 = vmatpush1.bf16.msra.mxu0 0
      %1434 = vmatprep.subr.bf16.mxu0 0
      %1435 = vmatpush1.bf16.msra.mxu0 0
      %1436 = vmatprep.subr.bf16.mxu0 0
      %1437 = vmatpush1.bf16.msra.mxu0 0
      %1438 = vmatprep.subr.bf16.mxu0 0
      %1439 = vmatpush1.bf16.msra.mxu0 0
      %1440 = vmatprep.subr.bf16.mxu0 0
      %1441 = vmatpush1.bf16.msra.mxu0 0
      %1442 = vmatprep.subr.bf16.mxu0 0
      %1443 = vmatpush1.bf16.msra.mxu0 %v1426
      %1444 = vmatprep.subr.bf16.mxu0 0
      %1445 = vmatpush2.bf16.msra.mxu0 0
      %1446 = vmatprep.subr.bf16.mxu0 0
      %1447 = vmatpush2.bf16.msra.mxu0 0
      %1448 = vmatprep.subr.bf16.mxu0 0
      %1449 = vmatpush2.bf16.msra.mxu0 0
      %1450 = vmatprep.subr.bf16.mxu0 0
      %1451 = vmatpush2.bf16.msra.mxu0 0
      %1452 = vmatprep.subr.bf16.mxu0 0
      %1453 = vmatpush2.bf16.msra.mxu0 0
      %1454 = vmatprep.subr.bf16.mxu0 0
      %1455 = vmatpush2.bf16.msra.mxu0 0
      %1456 = vmatprep.subr.bf16.mxu0 0
      %1457 = vmatpush2.bf16.msra.mxu0 0
      %1458 = vmatprep.subr.bf16.mxu0 0
      %1459 = vmatpush2.bf16.msra.mxu0 0
      %1460 = vmatprep.mubr.bf16.mxu0 0
      %1461 = vmatmul.mubr.bf16.gmra.mxu0 %v1423
      %v1462 = vpop.f32.mrf.mxu0
      %v1463 = vadd.f32 0.0, %v1462
      %v1464 = vpop.f32.mrf.mxu0
      %v1465 = vpop.f32.mrf.mxu0
      %v1466 = vadd.f32 0.0, %v1465
      %v1467 = vpop.f32.mrf.mxu0
      %1468 = vdwg.mxu0
      %1471 = vrot.lane.b32.xlu0 %v1463, 16
      %v1472 = vpop.permute.xlu0 %1471
      %1473 = vrot.lane.b32.xlu0 %v1466, 16
      %v1474 = vpop.permute.xlu0 %1473
      %v1477 = vsel %vm990, %v1246, %v1472
      %v1478 = vsel %vm990, %v1249, %v1474
      %v1479 = vpack.c.bf16 %v1478, %v1477
      %v1480 = vld [vmem:[%s11] sm:$0xf]
      %v1481 = vld [vmem:[%s11 + $0x4] sm:$0xf]
      %v1482 = vld [vmem:[%s11 + $0x8] sm:$0xf]
      %v1483 = vld [vmem:[%s11 + $0xc] sm:$0xf]
      %v1488 = vunpack.c.l.b16 %v1480
      %v1489 = vunpack.c.l.b16 %v1481
      %v1490 = vunpack.c.l.b16 %v1482
      %v1491 = vunpack.c.l.b16 %v1483
      %v1492 = vpack.c.b16 %v1489, %v1488
      %v1493 = vpack.c.b16 %v1491, %v1490
      %vm1496 = vcmask 261120
      %v1498 = vsel %vm1496, %v1479, 0
      %1500 = vmatprep.subr.bf16.mxu0 0
      %1501 = vmatpush1.bf16.msra.mxu0 0
      %1502 = vmatprep.subr.bf16.mxu0 0
      %1503 = vmatpush1.bf16.msra.mxu0 0
      %1504 = vmatprep.subr.bf16.mxu0 0
      %1505 = vmatpush1.bf16.msra.mxu0 0
      %1506 = vmatprep.subr.bf16.mxu0 0
      %1507 = vmatpush1.bf16.msra.mxu0 0
      %1508 = vmatprep.subr.bf16.mxu0 0
      %1509 = vmatpush1.bf16.msra.mxu0 0
      %1510 = vmatprep.subr.bf16.mxu0 0
      %1511 = vmatpush1.bf16.msra.mxu0 0
      %1512 = vmatprep.subr.bf16.mxu0 0
      %1513 = vmatpush1.bf16.msra.mxu0 %v1493
      %1514 = vmatprep.subr.bf16.mxu0 0
      %1515 = vmatpush1.bf16.msra.mxu0 %v1492
      %1516 = vmatprep.subr.bf16.mxu0 0
      %1517 = vmatpush2.bf16.msra.mxu0 0
      %1518 = vmatprep.subr.bf16.mxu0 0
      %1519 = vmatpush2.bf16.msra.mxu0 0
      %1520 = vmatprep.subr.bf16.mxu0 0
      %1521 = vmatpush2.bf16.msra.mxu0 0
      %1522 = vmatprep.subr.bf16.mxu0 0
      %1523 = vmatpush2.bf16.msra.mxu0 0
      %1524 = vmatprep.subr.bf16.mxu0 0
      %1525 = vmatpush2.bf16.msra.mxu0 0
      %1526 = vmatprep.subr.bf16.mxu0 0
      %1527 = vmatpush2.bf16.msra.mxu0 0
      %1528 = vmatprep.subr.bf16.mxu0 0
      %1529 = vmatpush2.bf16.msra.mxu0 0
      %1530 = vmatprep.subr.bf16.mxu0 0
      %1531 = vmatpush2.bf16.msra.mxu0 0
      %1532 = vmatprep.mubr.bf16.mxu0 0
      %1533 = vmatmul.mubr.bf16.gmra.mxu0 %v1498
      %v1534 = vpop.f32.mrf.mxu0
      %v1535 = vadd.f32 0.0, %v1534
      %v1536 = vpop.f32.mrf.mxu0
      %v1537 = vpop.f32.mrf.mxu0
      %v1538 = vadd.f32 0.0, %v1537
      %v1539 = vpop.f32.mrf.mxu0
      %1540 = vdwg.mxu0
      %v1541 = vsel %vm990, %v1535, 0.0
      %1542 = vadd.xlane.f32.xlu0 %v1541
      %v1543 = vpop.xlane.xlu0 %1542
      %v1544 = vsel %vm990, %v1538, 0.0
      %1545 = vadd.xlane.f32.xlu0 %v1544
      %v1546 = vpop.xlane.xlu0 %1545
      %v1547 = vrcp.pop 16.0
      %v1548 = vmul.f32 %v1543, %v1547
      %v1549 = vmul.f32 %v1546, %v1547
      %v1550 = vsub.f32 %v1535, %v1548
      %v1551 = vsub.f32 %v1538, %v1549
      %v1552 = vmul.f32 %v1550, %v1550
      %v1553 = vmul.f32 %v1551, %v1551
      %v1554 = vsel %vm990, %v1552, 0.0
      %1555 = vadd.xlane.f32.xlu0 %v1554
      %v1556 = vpop.xlane.xlu0 %1555
      %v1557 = vsel %vm990, %v1553, 0.0
      %1558 = vadd.xlane.f32.xlu0 %v1557
      %v1559 = vpop.xlane.xlu0 %1558
      %v1560 = vmul.f32 %v1556, %v1547
      %v1561 = vmul.f32 %v1559, %v1547
      %v1562 = vadd.f32 %v1560, 1e-05
      %v1563 = vadd.f32 %v1561, 1e-05
      %v1564 = vrsqrt.pop %v1562
      %v1565 = vrsqrt.pop %v1563
      %v1566 = vmul.f32 %v1550, %v1564
      %v1567 = vmul.f32 %v1551, %v1565
      %v1568 = vld [vmem:[%s12] sm:$0x1]
      %v1569 = vlaneseq
      %v1570 = vshrl.u32 %v1569, 7
      %v1571 = vsub.s32 0, %v1570
      %v1572 = vrot.slane %v1568, %v1571
      %v1573 = vmul.f32 %v1566, %v1572
      %v1574 = vmul.f32 %v1567, %v1572
      %v1575 = vld [vmem:[%s12 + $0x1] sm:$0x1]
      %v1576 = vlaneseq
      %v1577 = vshrl.u32 %v1576, 7
      %v1578 = vsub.s32 0, %v1577
      %v1579 = vrot.slane %v1575, %v1578
      %v1580 = vadd.f32 %v1573, %v1579
      %v1581 = vadd.f32 %v1574, %v1579
      %v1582 = vadd.f32 %v975, %v1580
      %v1583 = vadd.f32 %v978, %v1581
      %v1584 = vpack.c.bf16 %v1583, %v1582
      %v1585 = vld [vmem:[%s13] sm:$0xf]
      %v1586 = vld [vmem:[%s13 + $0x4] sm:$0xf]
      %v1589 = vunpack.c.l.b16 %v1585
      %v1590 = vunpack.c.l.b16 %v1586
      %v1591 = vpack.c.b16 %v1590, %v1589
      %v1594 = vsel %vm990, %v1584, 0
      %1596 = vmatprep.subr.bf16.mxu0 0
      %1597 = vmatpush1.bf16.msra.mxu0 0
      %1598 = vmatprep.subr.bf16.mxu0 0
      %1599 = vmatpush1.bf16.msra.mxu0 0
      %1600 = vmatprep.subr.bf16.mxu0 0
      %1601 = vmatpush1.bf16.msra.mxu0 0
      %1602 = vmatprep.subr.bf16.mxu0 0
      %1603 = vmatpush1.bf16.msra.mxu0 0
      %1604 = vmatprep.subr.bf16.mxu0 0
      %1605 = vmatpush1.bf16.msra.mxu0 0
      %1606 = vmatprep.subr.bf16.mxu0 0
      %1607 = vmatpush1.bf16.msra.mxu0 0
      %1608 = vmatprep.subr.bf16.mxu0 0
      %1609 = vmatpush1.bf16.msra.mxu0 0
      %1610 = vmatprep.subr.bf16.mxu0 0
      %1611 = vmatpush1.bf16.msra.mxu0 %v1591
      %1612 = vmatprep.subr.bf16.mxu0 0
      %1613 = vmatpush2.bf16.msra.mxu0 0
      %1614 = vmatprep.subr.bf16.mxu0 0
      %1615 = vmatpush2.bf16.msra.mxu0 0
      %1616 = vmatprep.subr.bf16.mxu0 0
      %1617 = vmatpush2.bf16.msra.mxu0 0
      %1618 = vmatprep.subr.bf16.mxu0 0
      %1619 = vmatpush2.bf16.msra.mxu0 0
      %1620 = vmatprep.subr.bf16.mxu0 0
      %1621 = vmatpush2.bf16.msra.mxu0 0
      %1622 = vmatprep.subr.bf16.mxu0 0
      %1623 = vmatpush2.bf16.msra.mxu0 0
      %1624 = vmatprep.subr.bf16.mxu0 0
      %1625 = vmatpush2.bf16.msra.mxu0 0
      %1626 = vmatprep.subr.bf16.mxu0 0
      %1627 = vmatpush2.bf16.msra.mxu0 0
      %1628 = vmatprep.mubr.bf16.mxu0 0
      %1629 = vmatmul.mubr.bf16.gmra.mxu0 %v1594
      %v1630 = vpop.f32.mrf.mxu0
      %v1631 = vadd.f32 0.0, %v1630
      %v1632 = vpop.f32.mrf.mxu0
      %v1633 = vpop.f32.mrf.mxu0
      %v1634 = vadd.f32 0.0, %v1633
      %v1635 = vpop.f32.mrf.mxu0
      %1636 = vdwg.mxu0
      %v1637 = vmax.f32 %v1631, 0.0
      %v1638 = vmax.f32 %v1634, 0.0
      %v1639 = vmin.f32 %v1637, 6.0
      %v1640 = vmin.f32 %v1638, 6.0
      %v1641 = vadd.f32 %v1582, %v1639
      %v1642 = vadd.f32 %v1583, %v1640
      %1645 = vrot.lane.b32.xlu0 %v1641, 64
      %v1646 = vpop.permute.xlu0 %1645
      %1647 = vrot.lane.b32.xlu0 %v1642, 64
      %v1648 = vpop.permute.xlu0 %1647
      %v1651 = vsel %vm752, %v894, %v1646
      %v1652 = vsel %vm752, %v895, %v1648
      %v1653 = vpack.c.bf16 %v1652, %v1651
      %v1654 = vld [vmem:[%s14] sm:$0xf]
      %v1655 = vld [vmem:[%s14 + $0x4] sm:$0x3]
      %v1658 = vunpack.c.l.b16 %v1654
      %v1659 = vunpack.c.l.b16 %v1655
      %v1660 = vpack.c.b16 %v1659, %v1658
      %v1662 = vsel %vm990, %v1660, 0
      %1664 = vmatprep.subr.bf16.mxu0 0
      %1665 = vmatpush1.bf16.msra.mxu0 0
      %1666 = vmatprep.subr.bf16.mxu0 0
      %1667 = vmatpush1.bf16.msra.mxu0 0
      %1668 = vmatprep.subr.bf16.mxu0 0
      %1669 = vmatpush1.bf16.msra.mxu0 0
      %1670 = vmatprep.subr.bf16.mxu0 0
      %1671 = vmatpush1.bf16.msra.mxu0 0
      %1672 = vmatprep.subr.bf16.mxu0 0
      %1673 = vmatpush1.bf16.msra.mxu0 0
      %1674 = vmatprep.subr.bf16.mxu0 0
      %1675 = vmatpush1.bf16.msra.mxu0 0
      %1676 = vmatprep.subr.bf16.mxu0 0
      %1677 = vmatpush1.bf16.msra.mxu0 0
      %1678 = vmatprep.subr.bf16.mxu0 0
      %1679 = vmatpush1.bf16.msra.mxu0 %v1653
      %1680 = vmatprep.subr.bf16.mxu0 0
      %1681 = vmatpush2.bf16.msra.mxu0 0
      %1682 = vmatprep.subr.bf16.mxu0 0
      %1683 = vmatpush2.bf16.msra.mxu0 0
      %1684 = vmatprep.subr.bf16.mxu0 0
      %1685 = vmatpush2.bf16.msra.mxu0 0
      %1686 = vmatprep.subr.bf16.mxu0 0
      %1687 = vmatpush2.bf16.msra.mxu0 0
      %1688 = vmatprep.subr.bf16.mxu0 0
      %1689 = vmatpush2.bf16.msra.mxu0 0
      %1690 = vmatprep.subr.bf16.mxu0 0
      %1691 = vmatpush2.bf16.msra.mxu0 0
      %1692 = vmatprep.subr.bf16.mxu0 0
      %1693 = vmatpush2.bf16.msra.mxu0 0
      %1694 = vmatprep.subr.bf16.mxu0 0
      %1695 = vmatpush2.bf16.msra.mxu0 0
      %1696 = vmatprep.mubr.bf16.mxu0 0
      %1697 = vmatmul.mubr.bf16.gmra.mxu0 %v1662
      %v1698 = vpop.f32.mrf.mxu0
      %v1699 = vadd.f32 0.0, %v1698
      %v1700 = vpop.f32.mrf.mxu0
      %v1701 = vpop.f32.mrf.mxu0
      %v1702 = vadd.f32 0.0, %v1701
      %v1703 = vpop.f32.mrf.mxu0
      %1704 = vdwg.mxu0
      %v1705 = vpack.c.bf16 %v1702, %v1699
      %v1706 = vld [vmem:[%s15] sm:$0xf]
      %v1707 = vld [vmem:[%s15 + $0x4] sm:$0xf]
      %v1708 = vld [vmem:[%s15 + $0x8] sm:$0xf]
      %v1709 = vld [vmem:[%s15 + $0xc] sm:$0xf]
      %v1710 = vld [vmem:[%s15 + $0x10] sm:$0xf]
      %v1711 = vld [vmem:[%s15 + $0x14] sm:$0xf]
      %v1712 = vld [vmem:[%s15 + $0x18] sm:$0xf]
      %v1713 = vld [vmem:[%s15 + $0x1c] sm:$0xf]
      %v1714 = vld [vmem:[%s15 + $0x20] sm:$0xf]
      %v1715 = vld [vmem:[%s15 + $0x24] sm:$0xf]
      %s1716 = scalar_lea.vmem %s14, 8
      %v1717 = vld [vmem:[%s1716] sm:$0xf]
      %v1718 = vld [vmem:[%s1716 + $0x4] sm:$0x3]
      %v1721 = vunpack.c.l.b16 %v1717
      %v1722 = vunpack.c.l.b16 %v1718
      %v1723 = vpack.c.b16 %v1722, %v1721
      %v1725 = vsel %vm990, %v1723, 0
      %1727 = vmatprep.subr.bf16.mxu0 0
      %1728 = vmatpush1.bf16.msra.mxu0 0
      %1729 = vmatprep.subr.bf16.mxu0 0
      %1730 = vmatpush1.bf16.msra.mxu0 0
      %1731 = vmatprep.subr.bf16.mxu0 0
      %1732 = vmatpush1.bf16.msra.mxu0 0
      %1733 = vmatprep.subr.bf16.mxu0 0
      %1734 = vmatpush1.bf16.msra.mxu0 0
      %1735 = vmatprep.subr.bf16.mxu0 0
      %1736 = vmatpush1.bf16.msra.mxu0 0
      %1737 = vmatprep.subr.bf16.mxu0 0
      %1738 = vmatpush1.bf16.msra.mxu0 0
      %1739 = vmatprep.subr.bf16.mxu0 0
      %1740 = vmatpush1.bf16.msra.mxu0 0
      %1741 = vmatprep.subr.bf16.mxu0 0
      %1742 = vmatpush1.bf16.msra.mxu0 %v1653
      %1743 = vmatprep.subr.bf16.mxu0 0
      %1744 = vmatpush2.bf16.msra.mxu0 0
      %1745 = vmatprep.subr.bf16.mxu0 0
      %1746 = vmatpush2.bf16.msra.mxu0 0
      %1747 = vmatprep.subr.bf16.mxu0 0
      %1748 = vmatpush2.bf16.msra.mxu0 0
      %1749 = vmatprep.subr.bf16.mxu0 0
      %1750 = vmatpush2.bf16.msra.mxu0 0
      %1751 = vmatprep.subr.bf16.mxu0 0
      %1752 = vmatpush2.bf16.msra.mxu0 0
      %1753 = vmatprep.subr.bf16.mxu0 0
      %1754 = vmatpush2.bf16.msra.mxu0 0
      %1755 = vmatprep.subr.bf16.mxu0 0
      %1756 = vmatpush2.bf16.msra.mxu0 0
      %1757 = vmatprep.subr.bf16.mxu0 0
      %1758 = vmatpush2.bf16.msra.mxu0 0
      %1759 = vmatprep.mubr.bf16.mxu0 0
      %1760 = vmatmul.mubr.bf16.gmra.mxu0 %v1725
      %v1761 = vpop.f32.mrf.mxu0
      %v1762 = vadd.f32 0.0, %v1761
      %v1763 = vpop.f32.mrf.mxu0
      %v1764 = vpop.f32.mrf.mxu0
      %v1765 = vadd.f32 0.0, %v1764
      %v1766 = vpop.f32.mrf.mxu0
      %1767 = vdwg.mxu0
      %v1768 = vpack.c.bf16 %v1765, %v1762
      %s1769 = scalar_lea.vmem %s15, 40
      %v1770 = vld [vmem:[%s1769] sm:$0xf]
      %v1771 = vld [vmem:[%s1769 + $0x4] sm:$0xf]
      %v1772 = vld [vmem:[%s1769 + $0x8] sm:$0xf]
      %v1773 = vld [vmem:[%s1769 + $0xc] sm:$0xf]
      %v1774 = vld [vmem:[%s1769 + $0x10] sm:$0xf]
      %v1775 = vld [vmem:[%s1769 + $0x14] sm:$0xf]
      %v1776 = vld [vmem:[%s1769 + $0x18] sm:$0xf]
      %v1777 = vld [vmem:[%s1769 + $0x1c] sm:$0xf]
      %v1778 = vld [vmem:[%s1769 + $0x20] sm:$0xf]
      %v1779 = vld [vmem:[%s1769 + $0x24] sm:$0xf]
      %v1790 = vunpack.c.l.b16 %v1770
      %v1791 = vunpack.c.l.b16 %v1771
      %v1792 = vunpack.c.l.b16 %v1772
      %v1793 = vunpack.c.l.b16 %v1773
      %v1794 = vunpack.c.l.b16 %v1774
      %v1795 = vunpack.c.l.b16 %v1775
      %v1796 = vunpack.c.l.b16 %v1776
      %v1797 = vunpack.c.l.b16 %v1777
      %v1798 = vunpack.c.l.b16 %v1778
      %v1799 = vunpack.c.l.b16 %v1779
      %v1800 = vpack.c.b16 %v1791, %v1790
      %v1801 = vpack.c.b16 %v1793, %v1792
      %v1802 = vpack.c.b16 %v1795, %v1794
      %v1803 = vpack.c.b16 %v1797, %v1796
      %v1804 = vpack.c.b16 %v1799, %v1798
      %vm1810 = vcmask 654336
      %v1812 = vsel %vm1810, %v1768, 0
      %1814 = vmatprep.subr.bf16.mxu0 0
      %1815 = vmatpush1.bf16.msra.mxu0 0
      %1816 = vmatprep.subr.bf16.mxu0 0
      %1817 = vmatpush1.bf16.msra.mxu0 0
      %1818 = vmatprep.subr.bf16.mxu0 0
      %1819 = vmatpush1.bf16.msra.mxu0 0
      %1820 = vmatprep.subr.bf16.mxu0 0
      %1821 = vmatpush1.bf16.msra.mxu0 %v1804
      %1822 = vmatprep.subr.bf16.mxu0 0
      %1823 = vmatpush1.bf16.msra.mxu0 %v1803
      %1824 = vmatprep.subr.bf16.mxu0 0
      %1825 = vmatpush1.bf16.msra.mxu0 %v1802
      %1826 = vmatprep.subr.bf16.mxu0 0
      %1827 = vmatpush1.bf16.msra.mxu0 %v1801
      %1828 = vmatprep.subr.bf16.mxu0 0
      %1829 = vmatpush1.bf16.msra.mxu0 %v1800
      %1830 = vmatprep.subr.bf16.mxu0 0
      %1831 = vmatpush2.bf16.msra.mxu0 0
      %1832 = vmatprep.subr.bf16.mxu0 0
      %1833 = vmatpush2.bf16.msra.mxu0 0
      %1834 = vmatprep.subr.bf16.mxu0 0
      %1835 = vmatpush2.bf16.msra.mxu0 0
      %1836 = vmatprep.subr.bf16.mxu0 0
      %1837 = vmatpush2.bf16.msra.mxu0 0
      %1838 = vmatprep.subr.bf16.mxu0 0
      %1839 = vmatpush2.bf16.msra.mxu0 0
      %1840 = vmatprep.subr.bf16.mxu0 0
      %1841 = vmatpush2.bf16.msra.mxu0 0
      %1842 = vmatprep.subr.bf16.mxu0 0
      %1843 = vmatpush2.bf16.msra.mxu0 0
      %1844 = vmatprep.subr.bf16.mxu0 0
      %1845 = vmatpush2.bf16.msra.mxu0 0
      %1846 = vmatprep.mubr.bf16.mxu0 0
      %1847 = vmatmul.mubr.bf16.gmra.mxu0 %v1812
      %v1848 = vpop.f32.mrf.mxu0
      %v1849 = vadd.f32 0.0, %v1848
      %v1850 = vpop.f32.mrf.mxu0
      %v1851 = vpop.f32.mrf.mxu0
      %v1852 = vadd.f32 0.0, %v1851
      %v1853 = vpop.f32.mrf.mxu0
      %1854 = vdwg.mxu0
      %v1865 = vunpack.c.l.b16 %v1706
      %v1866 = vunpack.c.l.b16 %v1707
      %v1867 = vunpack.c.l.b16 %v1708
      %v1868 = vunpack.c.l.b16 %v1709
      %v1869 = vunpack.c.l.b16 %v1710
      %v1870 = vunpack.c.l.b16 %v1711
      %v1871 = vunpack.c.l.b16 %v1712
      %v1872 = vunpack.c.l.b16 %v1713
      %v1873 = vunpack.c.l.b16 %v1714
      %v1874 = vunpack.c.l.b16 %v1715
      %v1875 = vpack.c.b16 %v1866, %v1865
      %v1876 = vpack.c.b16 %v1868, %v1867
      %v1877 = vpack.c.b16 %v1870, %v1869
      %v1878 = vpack.c.b16 %v1872, %v1871
      %v1879 = vpack.c.b16 %v1874, %v1873
      %v1886 = vsel %vm1810, %v1705, 0
      %1888 = vmatprep.subr.bf16.mxu0 0
      %1889 = vmatpush1.bf16.msra.mxu0 0
      %1890 = vmatprep.subr.bf16.mxu0 0
      %1891 = vmatpush1.bf16.msra.mxu0 0
      %1892 = vmatprep.subr.bf16.mxu0 0
      %1893 = vmatpush1.bf16.msra.mxu0 0
      %1894 = vmatprep.subr.bf16.mxu0 0
      %1895 = vmatpush1.bf16.msra.mxu0 %v1879
      %1896 = vmatprep.subr.bf16.mxu0 0
      %1897 = vmatpush1.bf16.msra.mxu0 %v1878
      %1898 = vmatprep.subr.bf16.mxu0 0
      %1899 = vmatpush1.bf16.msra.mxu0 %v1877
      %1900 = vmatprep.subr.bf16.mxu0 0
      %1901 = vmatpush1.bf16.msra.mxu0 %v1876
      %1902 = vmatprep.subr.bf16.mxu0 0
      %1903 = vmatpush1.bf16.msra.mxu0 %v1875
      %1904 = vmatprep.subr.bf16.mxu0 0
      %1905 = vmatpush2.bf16.msra.mxu0 0
      %1906 = vmatprep.subr.bf16.mxu0 0
      %1907 = vmatpush2.bf16.msra.mxu0 0
      %1908 = vmatprep.subr.bf16.mxu0 0
      %1909 = vmatpush2.bf16.msra.mxu0 0
      %1910 = vmatprep.subr.bf16.mxu0 0
      %1911 = vmatpush2.bf16.msra.mxu0 0
      %1912 = vmatprep.subr.bf16.mxu0 0
      %1913 = vmatpush2.bf16.msra.mxu0 0
      %1914 = vmatprep.subr.bf16.mxu0 0
      %1915 = vmatpush2.bf16.msra.mxu0 0
      %1916 = vmatprep.subr.bf16.mxu0 0
      %1917 = vmatpush2.bf16.msra.mxu0 0
      %1918 = vmatprep.subr.bf16.mxu0 0
      %1919 = vmatpush2.bf16.msra.mxu0 0
      %1920 = vmatprep.mubr.bf16.mxu0 0
      %1921 = vmatmul.mubr.bf16.gmra.mxu0 %v1886
      %v1922 = vpop.f32.mrf.mxu0
      %v1923 = vadd.f32 %v1849, %v1922
      %v1924 = vpop.f32.mrf.mxu0
      %v1925 = vpop.f32.mrf.mxu0
      %v1926 = vadd.f32 %v1852, %v1925
      %v1927 = vpop.f32.mrf.mxu0
      %1928 = vdwg.mxu0
      %s1929 = scalar_lea.vmem %s14, 16
      %v1930 = vld [vmem:[%s1929] sm:$0xf]
      %v1931 = vld [vmem:[%s1929 + $0x4] sm:$0x3]
      %v1934 = vunpack.c.l.b16 %v1930
      %v1935 = vunpack.c.l.b16 %v1931
      %v1936 = vpack.c.b16 %v1935, %v1934
      %v1938 = vsel %vm990, %v1936, 0
      %1940 = vmatprep.subr.bf16.mxu0 0
      %1941 = vmatpush1.bf16.msra.mxu0 0
      %1942 = vmatprep.subr.bf16.mxu0 0
      %1943 = vmatpush1.bf16.msra.mxu0 0
      %1944 = vmatprep.subr.bf16.mxu0 0
      %1945 = vmatpush1.bf16.msra.mxu0 0
      %1946 = vmatprep.subr.bf16.mxu0 0
      %1947 = vmatpush1.bf16.msra.mxu0 0
      %1948 = vmatprep.subr.bf16.mxu0 0
      %1949 = vmatpush1.bf16.msra.mxu0 0
      %1950 = vmatprep.subr.bf16.mxu0 0
      %1951 = vmatpush1.bf16.msra.mxu0 0
      %1952 = vmatprep.subr.bf16.mxu0 0
      %1953 = vmatpush1.bf16.msra.mxu0 0
      %1954 = vmatprep.subr.bf16.mxu0 0
      %1955 = vmatpush1.bf16.msra.mxu0 %v1653
      %1956 = vmatprep.subr.bf16.mxu0 0
      %1957 = vmatpush2.bf16.msra.mxu0 0
      %1958 = vmatprep.subr.bf16.mxu0 0
      %1959 = vmatpush2.bf16.msra.mxu0 0
      %1960 = vmatprep.subr.bf16.mxu0 0
      %1961 = vmatpush2.bf16.msra.mxu0 0
      %1962 = vmatprep.subr.bf16.mxu0 0
      %1963 = vmatpush2.bf16.msra.mxu0 0
      %1964 = vmatprep.subr.bf16.mxu0 0
      %1965 = vmatpush2.bf16.msra.mxu0 0
      %1966 = vmatprep.subr.bf16.mxu0 0
      %1967 = vmatpush2.bf16.msra.mxu0 0
      %1968 = vmatprep.subr.bf16.mxu0 0
      %1969 = vmatpush2.bf16.msra.mxu0 0
      %1970 = vmatprep.subr.bf16.mxu0 0
      %1971 = vmatpush2.bf16.msra.mxu0 0
      %1972 = vmatprep.mubr.bf16.mxu0 0
      %1973 = vmatmul.mubr.bf16.gmra.mxu0 %v1938
      %v1974 = vpop.f32.mrf.mxu0
      %v1975 = vadd.f32 0.0, %v1974
      %v1976 = vpop.f32.mrf.mxu0
      %v1977 = vpop.f32.mrf.mxu0
      %v1978 = vadd.f32 0.0, %v1977
      %v1979 = vpop.f32.mrf.mxu0
      %1980 = vdwg.mxu0
      %v1981 = vpack.c.bf16 %v1978, %v1975
      %s1982 = scalar_lea.vmem %s15, 80
      %v1983 = vld [vmem:[%s1982] sm:$0xf]
      %v1984 = vld [vmem:[%s1982 + $0x4] sm:$0xf]
      %v1985 = vld [vmem:[%s1982 + $0x8] sm:$0xf]
      %v1986 = vld [vmem:[%s1982 + $0xc] sm:$0xf]
      %v1987 = vld [vmem:[%s1982 + $0x10] sm:$0xf]
      %v1988 = vld [vmem:[%s1982 + $0x14] sm:$0xf]
      %v1989 = vld [vmem:[%s1982 + $0x18] sm:$0xf]
      %v1990 = vld [vmem:[%s1982 + $0x1c] sm:$0xf]
      %v1991 = vld [vmem:[%s1982 + $0x20] sm:$0xf]
      %v1992 = vld [vmem:[%s1982 + $0x24] sm:$0xf]
      %v2003 = vunpack.c.l.b16 %v1983
      %v2004 = vunpack.c.l.b16 %v1984
      %v2005 = vunpack.c.l.b16 %v1985
      %v2006 = vunpack.c.l.b16 %v1986
      %v2007 = vunpack.c.l.b16 %v1987
      %v2008 = vunpack.c.l.b16 %v1988
      %v2009 = vunpack.c.l.b16 %v1989
      %v2010 = vunpack.c.l.b16 %v1990
      %v2011 = vunpack.c.l.b16 %v1991
      %v2012 = vunpack.c.l.b16 %v1992
      %v2013 = vpack.c.b16 %v2004, %v2003
      %v2014 = vpack.c.b16 %v2006, %v2005
      %v2015 = vpack.c.b16 %v2008, %v2007
      %v2016 = vpack.c.b16 %v2010, %v2009
      %v2017 = vpack.c.b16 %v2012, %v2011
      %v2024 = vsel %vm1810, %v1981, 0
      %2026 = vmatprep.subr.bf16.mxu0 0
      %2027 = vmatpush1.bf16.msra.mxu0 0
      %2028 = vmatprep.subr.bf16.mxu0 0
      %2029 = vmatpush1.bf16.msra.mxu0 0
      %2030 = vmatprep.subr.bf16.mxu0 0
      %2031 = vmatpush1.bf16.msra.mxu0 0
      %2032 = vmatprep.subr.bf16.mxu0 0
      %2033 = vmatpush1.bf16.msra.mxu0 %v2017
      %2034 = vmatprep.subr.bf16.mxu0 0
      %2035 = vmatpush1.bf16.msra.mxu0 %v2016
      %2036 = vmatprep.subr.bf16.mxu0 0
      %2037 = vmatpush1.bf16.msra.mxu0 %v2015
      %2038 = vmatprep.subr.bf16.mxu0 0
      %2039 = vmatpush1.bf16.msra.mxu0 %v2014
      %2040 = vmatprep.subr.bf16.mxu0 0
      %2041 = vmatpush1.bf16.msra.mxu0 %v2013
      %2042 = vmatprep.subr.bf16.mxu0 0
      %2043 = vmatpush2.bf16.msra.mxu0 0
      %2044 = vmatprep.subr.bf16.mxu0 0
      %2045 = vmatpush2.bf16.msra.mxu0 0
      %2046 = vmatprep.subr.bf16.mxu0 0
      %2047 = vmatpush2.bf16.msra.mxu0 0
      %2048 = vmatprep.subr.bf16.mxu0 0
      %2049 = vmatpush2.bf16.msra.mxu0 0
      %2050 = vmatprep.subr.bf16.mxu0 0
      %2051 = vmatpush2.bf16.msra.mxu0 0
      %2052 = vmatprep.subr.bf16.mxu0 0
      %2053 = vmatpush2.bf16.msra.mxu0 0
      %2054 = vmatprep.subr.bf16.mxu0 0
      %2055 = vmatpush2.bf16.msra.mxu0 0
      %2056 = vmatprep.subr.bf16.mxu0 0
      %2057 = vmatpush2.bf16.msra.mxu0 0
      %2058 = vmatprep.mubr.bf16.mxu0 0
      %2059 = vmatmul.mubr.bf16.gmra.mxu0 %v2024
      %v2060 = vpop.f32.mrf.mxu0
      %v2061 = vadd.f32 0.0, %v2060
      %v2062 = vpop.f32.mrf.mxu0
      %v2063 = vpop.f32.mrf.mxu0
      %v2064 = vadd.f32 0.0, %v2063
      %v2065 = vpop.f32.mrf.mxu0
      %2066 = vdwg.mxu0
      %v2067 = vadd.f32 %v1923, %v2061
      %v2068 = vadd.f32 %v1926, %v2064
      %s2069 = scalar_lea.vmem %s14, 24
      %v2070 = vld [vmem:[%s2069] sm:$0xf]
      %v2071 = vld [vmem:[%s2069 + $0x4] sm:$0x3]
      %v2074 = vunpack.c.l.b16 %v2070
      %v2075 = vunpack.c.l.b16 %v2071
      %v2076 = vpack.c.b16 %v2075, %v2074
      %v2078 = vsel %vm990, %v2076, 0
      %2080 = vmatprep.subr.bf16.mxu0 0
      %2081 = vmatpush1.bf16.msra.mxu0 0
      %2082 = vmatprep.subr.bf16.mxu0 0
      %2083 = vmatpush1.bf16.msra.mxu0 0
      %2084 = vmatprep.subr.bf16.mxu0 0
      %2085 = vmatpush1.bf16.msra.mxu0 0
      %2086 = vmatprep.subr.bf16.mxu0 0
      %2087 = vmatpush1.bf16.msra.mxu0 0
      %2088 = vmatprep.subr.bf16.mxu0 0
      %2089 = vmatpush1.bf16.msra.mxu0 0
      %2090 = vmatprep.subr.bf16.mxu0 0
      %2091 = vmatpush1.bf16.msra.mxu0 0
      %2092 = vmatprep.subr.bf16.mxu0 0
      %2093 = vmatpush1.bf16.msra.mxu0 0
      %2094 = vmatprep.subr.bf16.mxu0 0
      %2095 = vmatpush1.bf16.msra.mxu0 %v1653
      %2096 = vmatprep.subr.bf16.mxu0 0
      %2097 = vmatpush2.bf16.msra.mxu0 0
      %2098 = vmatprep.subr.bf16.mxu0 0
      %2099 = vmatpush2.bf16.msra.mxu0 0
      %2100 = vmatprep.subr.bf16.mxu0 0
      %2101 = vmatpush2.bf16.msra.mxu0 0
      %2102 = vmatprep.subr.bf16.mxu0 0
      %2103 = vmatpush2.bf16.msra.mxu0 0
      %2104 = vmatprep.subr.bf16.mxu0 0
      %2105 = vmatpush2.bf16.msra.mxu0 0
      %2106 = vmatprep.subr.bf16.mxu0 0
      %2107 = vmatpush2.bf16.msra.mxu0 0
      %2108 = vmatprep.subr.bf16.mxu0 0
      %2109 = vmatpush2.bf16.msra.mxu0 0
      %2110 = vmatprep.subr.bf16.mxu0 0
      %2111 = vmatpush2.bf16.msra.mxu0 0
      %2112 = vmatprep.mubr.bf16.mxu0 0
      %2113 = vmatmul.mubr.bf16.gmra.mxu0 %v2078
      %v2114 = vpop.f32.mrf.mxu0
      %v2115 = vadd.f32 0.0, %v2114
      %v2116 = vpop.f32.mrf.mxu0
      %v2117 = vpop.f32.mrf.mxu0
      %v2118 = vadd.f32 0.0, %v2117
      %v2119 = vpop.f32.mrf.mxu0
      %2120 = vdwg.mxu0
      %v2121 = vpack.c.bf16 %v2118, %v2115
      %s2122 = scalar_lea.vmem %s15, 120
      %v2123 = vld [vmem:[%s2122] sm:$0xf]
      %v2124 = vld [vmem:[%s2122 + $0x4] sm:$0xf]
      %v2125 = vld [vmem:[%s2122 + $0x8] sm:$0xf]
      %v2126 = vld [vmem:[%s2122 + $0xc] sm:$0xf]
      %v2127 = vld [vmem:[%s2122 + $0x10] sm:$0xf]
      %v2128 = vld [vmem:[%s2122 + $0x14] sm:$0xf]
      %v2129 = vld [vmem:[%s2122 + $0x18] sm:$0xf]
      %v2130 = vld [vmem:[%s2122 + $0x1c] sm:$0xf]
      %v2131 = vld [vmem:[%s2122 + $0x20] sm:$0xf]
      %v2132 = vld [vmem:[%s2122 + $0x24] sm:$0xf]
      %v2143 = vunpack.c.l.b16 %v2123
      %v2144 = vunpack.c.l.b16 %v2124
      %v2145 = vunpack.c.l.b16 %v2125
      %v2146 = vunpack.c.l.b16 %v2126
      %v2147 = vunpack.c.l.b16 %v2127
      %v2148 = vunpack.c.l.b16 %v2128
      %v2149 = vunpack.c.l.b16 %v2129
      %v2150 = vunpack.c.l.b16 %v2130
      %v2151 = vunpack.c.l.b16 %v2131
      %v2152 = vunpack.c.l.b16 %v2132
      %v2153 = vpack.c.b16 %v2144, %v2143
      %v2154 = vpack.c.b16 %v2146, %v2145
      %v2155 = vpack.c.b16 %v2148, %v2147
      %v2156 = vpack.c.b16 %v2150, %v2149
      %v2157 = vpack.c.b16 %v2152, %v2151
      %v2164 = vsel %vm1810, %v2121, 0
      %2166 = vmatprep.subr.bf16.mxu0 0
      %2167 = vmatpush1.bf16.msra.mxu0 0
      %2168 = vmatprep.subr.bf16.mxu0 0
      %2169 = vmatpush1.bf16.msra.mxu0 0
      %2170 = vmatprep.subr.bf16.mxu0 0
      %2171 = vmatpush1.bf16.msra.mxu0 0
      %2172 = vmatprep.subr.bf16.mxu0 0
      %2173 = vmatpush1.bf16.msra.mxu0 %v2157
      %2174 = vmatprep.subr.bf16.mxu0 0
      %2175 = vmatpush1.bf16.msra.mxu0 %v2156
      %2176 = vmatprep.subr.bf16.mxu0 0
      %2177 = vmatpush1.bf16.msra.mxu0 %v2155
      %2178 = vmatprep.subr.bf16.mxu0 0
      %2179 = vmatpush1.bf16.msra.mxu0 %v2154
      %2180 = vmatprep.subr.bf16.mxu0 0
      %2181 = vmatpush1.bf16.msra.mxu0 %v2153
      %2182 = vmatprep.subr.bf16.mxu0 0
      %2183 = vmatpush2.bf16.msra.mxu0 0
      %2184 = vmatprep.subr.bf16.mxu0 0
      %2185 = vmatpush2.bf16.msra.mxu0 0
      %2186 = vmatprep.subr.bf16.mxu0 0
      %2187 = vmatpush2.bf16.msra.mxu0 0
      %2188 = vmatprep.subr.bf16.mxu0 0
      %2189 = vmatpush2.bf16.msra.mxu0 0
      %2190 = vmatprep.subr.bf16.mxu0 0
      %2191 = vmatpush2.bf16.msra.mxu0 0
      %2192 = vmatprep.subr.bf16.mxu0 0
      %2193 = vmatpush2.bf16.msra.mxu0 0
      %2194 = vmatprep.subr.bf16.mxu0 0
      %2195 = vmatpush2.bf16.msra.mxu0 0
      %2196 = vmatprep.subr.bf16.mxu0 0
      %2197 = vmatpush2.bf16.msra.mxu0 0
      %2198 = vmatprep.mubr.bf16.mxu0 0
      %2199 = vmatmul.mubr.bf16.gmra.mxu0 %v2164
      %v2200 = vpop.f32.mrf.mxu0
      %v2201 = vadd.f32 0.0, %v2200
      %v2202 = vpop.f32.mrf.mxu0
      %v2203 = vpop.f32.mrf.mxu0
      %v2204 = vadd.f32 0.0, %v2203
      %v2205 = vpop.f32.mrf.mxu0
      %2206 = vdwg.mxu0
      %v2207 = vadd.f32 %v2067, %v2201
      %v2208 = vadd.f32 %v2068, %v2204
      %s2209 = scalar_lea.vmem %s14, 32
      %v2210 = vld [vmem:[%s2209] sm:$0xf]
      %v2211 = vld [vmem:[%s2209 + $0x4] sm:$0x3]
      %v2214 = vunpack.c.l.b16 %v2210
      %v2215 = vunpack.c.l.b16 %v2211
      %v2216 = vpack.c.b16 %v2215, %v2214
      %v2218 = vsel %vm990, %v2216, 0
      %2220 = vmatprep.subr.bf16.mxu0 0
      %2221 = vmatpush1.bf16.msra.mxu0 0
      %2222 = vmatprep.subr.bf16.mxu0 0
      %2223 = vmatpush1.bf16.msra.mxu0 0
      %2224 = vmatprep.subr.bf16.mxu0 0
      %2225 = vmatpush1.bf16.msra.mxu0 0
      %2226 = vmatprep.subr.bf16.mxu0 0
      %2227 = vmatpush1.bf16.msra.mxu0 0
      %2228 = vmatprep.subr.bf16.mxu0 0
      %2229 = vmatpush1.bf16.msra.mxu0 0
      %2230 = vmatprep.subr.bf16.mxu0 0
      %2231 = vmatpush1.bf16.msra.mxu0 0
      %2232 = vmatprep.subr.bf16.mxu0 0
      %2233 = vmatpush1.bf16.msra.mxu0 0
      %2234 = vmatprep.subr.bf16.mxu0 0
      %2235 = vmatpush1.bf16.msra.mxu0 %v1653
      %2236 = vmatprep.subr.bf16.mxu0 0
      %2237 = vmatpush2.bf16.msra.mxu0 0
      %2238 = vmatprep.subr.bf16.mxu0 0
      %2239 = vmatpush2.bf16.msra.mxu0 0
      %2240 = vmatprep.subr.bf16.mxu0 0
      %2241 = vmatpush2.bf16.msra.mxu0 0
      %2242 = vmatprep.subr.bf16.mxu0 0
      %2243 = vmatpush2.bf16.msra.mxu0 0
      %2244 = vmatprep.subr.bf16.mxu0 0
      %2245 = vmatpush2.bf16.msra.mxu0 0
      %2246 = vmatprep.subr.bf16.mxu0 0
      %2247 = vmatpush2.bf16.msra.mxu0 0
      %2248 = vmatprep.subr.bf16.mxu0 0
      %2249 = vmatpush2.bf16.msra.mxu0 0
      %2250 = vmatprep.subr.bf16.mxu0 0
      %2251 = vmatpush2.bf16.msra.mxu0 0
      %2252 = vmatprep.mubr.bf16.mxu0 0
      %2253 = vmatmul.mubr.bf16.gmra.mxu0 %v2218
      %v2254 = vpop.f32.mrf.mxu0
      %v2255 = vadd.f32 0.0, %v2254
      %v2256 = vpop.f32.mrf.mxu0
      %v2257 = vpop.f32.mrf.mxu0
      %v2258 = vadd.f32 0.0, %v2257
      %v2259 = vpop.f32.mrf.mxu0
      %2260 = vdwg.mxu0
      %v2261 = vpack.c.bf16 %v2258, %v2255
      %s2262 = scalar_lea.vmem %s15, 160
      %v2263 = vld [vmem:[%s2262] sm:$0xf]
      %v2264 = vld [vmem:[%s2262 + $0x4] sm:$0xf]
      %v2265 = vld [vmem:[%s2262 + $0x8] sm:$0xf]
      %v2266 = vld [vmem:[%s2262 + $0xc] sm:$0xf]
      %v2267 = vld [vmem:[%s2262 + $0x10] sm:$0xf]
      %v2268 = vld [vmem:[%s2262 + $0x14] sm:$0xf]
      %v2269 = vld [vmem:[%s2262 + $0x18] sm:$0xf]
      %v2270 = vld [vmem:[%s2262 + $0x1c] sm:$0xf]
      %v2271 = vld [vmem:[%s2262 + $0x20] sm:$0xf]
      %v2272 = vld [vmem:[%s2262 + $0x24] sm:$0xf]
      %v2283 = vunpack.c.l.b16 %v2263
      %v2284 = vunpack.c.l.b16 %v2264
      %v2285 = vunpack.c.l.b16 %v2265
      %v2286 = vunpack.c.l.b16 %v2266
      %v2287 = vunpack.c.l.b16 %v2267
      %v2288 = vunpack.c.l.b16 %v2268
      %v2289 = vunpack.c.l.b16 %v2269
      %v2290 = vunpack.c.l.b16 %v2270
      %v2291 = vunpack.c.l.b16 %v2271
      %v2292 = vunpack.c.l.b16 %v2272
      %v2293 = vpack.c.b16 %v2284, %v2283
      %v2294 = vpack.c.b16 %v2286, %v2285
      %v2295 = vpack.c.b16 %v2288, %v2287
      %v2296 = vpack.c.b16 %v2290, %v2289
      %v2297 = vpack.c.b16 %v2292, %v2291
      %v2304 = vsel %vm1810, %v2261, 0
      %2306 = vmatprep.subr.bf16.mxu0 0
      %2307 = vmatpush1.bf16.msra.mxu0 0
      %2308 = vmatprep.subr.bf16.mxu0 0
      %2309 = vmatpush1.bf16.msra.mxu0 0
      %2310 = vmatprep.subr.bf16.mxu0 0
      %2311 = vmatpush1.bf16.msra.mxu0 0
      %2312 = vmatprep.subr.bf16.mxu0 0
      %2313 = vmatpush1.bf16.msra.mxu0 %v2297
      %2314 = vmatprep.subr.bf16.mxu0 0
      %2315 = vmatpush1.bf16.msra.mxu0 %v2296
      %2316 = vmatprep.subr.bf16.mxu0 0
      %2317 = vmatpush1.bf16.msra.mxu0 %v2295
      %2318 = vmatprep.subr.bf16.mxu0 0
      %2319 = vmatpush1.bf16.msra.mxu0 %v2294
      %2320 = vmatprep.subr.bf16.mxu0 0
      %2321 = vmatpush1.bf16.msra.mxu0 %v2293
      %2322 = vmatprep.subr.bf16.mxu0 0
      %2323 = vmatpush2.bf16.msra.mxu0 0
      %2324 = vmatprep.subr.bf16.mxu0 0
      %2325 = vmatpush2.bf16.msra.mxu0 0
      %2326 = vmatprep.subr.bf16.mxu0 0
      %2327 = vmatpush2.bf16.msra.mxu0 0
      %2328 = vmatprep.subr.bf16.mxu0 0
      %2329 = vmatpush2.bf16.msra.mxu0 0
      %2330 = vmatprep.subr.bf16.mxu0 0
      %2331 = vmatpush2.bf16.msra.mxu0 0
      %2332 = vmatprep.subr.bf16.mxu0 0
      %2333 = vmatpush2.bf16.msra.mxu0 0
      %2334 = vmatprep.subr.bf16.mxu0 0
      %2335 = vmatpush2.bf16.msra.mxu0 0
      %2336 = vmatprep.subr.bf16.mxu0 0
      %2337 = vmatpush2.bf16.msra.mxu0 0
      %2338 = vmatprep.mubr.bf16.mxu0 0
      %2339 = vmatmul.mubr.bf16.gmra.mxu0 %v2304
      %v2340 = vpop.f32.mrf.mxu0
      %v2341 = vadd.f32 0.0, %v2340
      %v2342 = vpop.f32.mrf.mxu0
      %v2343 = vpop.f32.mrf.mxu0
      %v2344 = vadd.f32 0.0, %v2343
      %v2345 = vpop.f32.mrf.mxu0
      %2346 = vdwg.mxu0
      %v2347 = vadd.f32 %v2207, %v2341
      %v2348 = vadd.f32 %v2208, %v2344
      %v2349 = vld [vmem:[%s16] sm:$0x1]
      %v2350 = vlaneseq
      %v2351 = vshrl.u32 %v2350, 7
      %v2352 = vsub.s32 0, %v2351
      %v2353 = vrot.slane %v2349, %v2352
      %v2354 = vmul.f32 %v2347, %v2353
      %v2355 = vmul.f32 %v2348, %v2353
      %v2356 = vld [vmem:[%s16 + $0x1] sm:$0x1]
      %v2357 = vlaneseq
      %v2358 = vshrl.u32 %v2357, 7
      %v2359 = vsub.s32 0, %v2358
      %v2360 = vrot.slane %v2356, %v2359
      %v2361 = vadd.f32 %v2354, %v2360
      %v2362 = vadd.f32 %v2355, %v2360
      %v2363 = vmax.f32 %v2361, 0.0
      %v2364 = vmax.f32 %v2362, 0.0
      %v2365 = vmin.f32 %v2363, 6.0
      %v2366 = vmin.f32 %v2364, 6.0
      %v2367 = vpack.c.bf16 %v2366, %v2365
      %v2368 = vld [vmem:[%s17] sm:$0xf]
      %v2369 = vld [vmem:[%s17 + $0x4] sm:$0xf]
      %v2370 = vld [vmem:[%s17 + $0x8] sm:$0xf]
      %v2371 = vld [vmem:[%s17 + $0xc] sm:$0xf]
      %v2372 = vld [vmem:[%s17 + $0x10] sm:$0xf]
      %v2373 = vld [vmem:[%s17 + $0x14] sm:$0xf]
      %v2374 = vld [vmem:[%s17 + $0x18] sm:$0xf]
      %v2375 = vld [vmem:[%s17 + $0x1c] sm:$0xf]
      %v2376 = vld [vmem:[%s17 + $0x20] sm:$0xf]
      %v2377 = vld [vmem:[%s17 + $0x24] sm:$0xf]
      %v2378 = vld [vmem:[%s17 + $0x28] sm:$0xf]
      %v2379 = vld [vmem:[%s17 + $0x2c] sm:$0xf]
      %v2380 = vld [vmem:[%s17 + $0x30] sm:$0xf]
      %v2381 = vld [vmem:[%s17 + $0x34] sm:$0xf]
      %v2382 = vld [vmem:[%s17 + $0x38] sm:$0xf]
      %v2383 = vld [vmem:[%s17 + $0x3c] sm:$0xf]
      %v2400 = vunpack.c.l.b16 %v2368
      %v2401 = vunpack.c.l.b16 %v2369
      %v2402 = vunpack.c.l.b16 %v2370
      %v2403 = vunpack.c.l.b16 %v2371
      %v2404 = vunpack.c.l.b16 %v2372
      %v2405 = vunpack.c.l.b16 %v2373
      %v2406 = vunpack.c.l.b16 %v2374
      %v2407 = vunpack.c.l.b16 %v2375
      %v2408 = vunpack.c.l.b16 %v2376
      %v2409 = vunpack.c.l.b16 %v2377
      %v2410 = vunpack.c.l.b16 %v2378
      %v2411 = vunpack.c.l.b16 %v2379
      %v2412 = vunpack.c.l.b16 %v2380
      %v2413 = vunpack.c.l.b16 %v2381
      %v2414 = vunpack.c.l.b16 %v2382
      %v2415 = vunpack.c.l.b16 %v2383
      %v2416 = vpack.c.b16 %v2401, %v2400
      %v2417 = vpack.c.b16 %v2403, %v2402
      %v2418 = vpack.c.b16 %v2405, %v2404
      %v2419 = vpack.c.b16 %v2407, %v2406
      %v2420 = vpack.c.b16 %v2409, %v2408
      %v2421 = vpack.c.b16 %v2411, %v2410
      %v2422 = vpack.c.b16 %v2413, %v2412
      %v2423 = vpack.c.b16 %v2415, %v2414
      %2432 = vmatprep.subr.bf16.mxu0 0
      %2433 = vmatpush1.bf16.msra.mxu0 %v2423
      %2434 = vmatprep.subr.bf16.mxu0 0
      %2435 = vmatpush1.bf16.msra.mxu0 %v2422
      %2436 = vmatprep.subr.bf16.mxu0 0
      %2437 = vmatpush1.bf16.msra.mxu0 %v2421
      %2438 = vmatprep.subr.bf16.mxu0 0
      %2439 = vmatpush1.bf16.msra.mxu0 %v2420
      %2440 = vmatprep.subr.bf16.mxu0 0
      %2441 = vmatpush1.bf16.msra.mxu0 %v2419
      %2442 = vmatprep.subr.bf16.mxu0 0
      %2443 = vmatpush1.bf16.msra.mxu0 %v2418
      %2444 = vmatprep.subr.bf16.mxu0 0
      %2445 = vmatpush1.bf16.msra.mxu0 %v2417
      %2446 = vmatprep.subr.bf16.mxu0 0
      %2447 = vmatpush1.bf16.msra.mxu0 %v2416
      %2448 = vmatprep.subr.bf16.mxu0 0
      %2449 = vmatpush2.bf16.msra.mxu0 0
      %2450 = vmatprep.subr.bf16.mxu0 0
      %2451 = vmatpush2.bf16.msra.mxu0 0
      %2452 = vmatprep.subr.bf16.mxu0 0
      %2453 = vmatpush2.bf16.msra.mxu0 0
      %2454 = vmatprep.subr.bf16.mxu0 0
      %2455 = vmatpush2.bf16.msra.mxu0 0
      %2456 = vmatprep.subr.bf16.mxu0 0
      %2457 = vmatpush2.bf16.msra.mxu0 0
      %2458 = vmatprep.subr.bf16.mxu0 0
      %2459 = vmatpush2.bf16.msra.mxu0 0
      %2460 = vmatprep.subr.bf16.mxu0 0
      %2461 = vmatpush2.bf16.msra.mxu0 0
      %2462 = vmatprep.subr.bf16.mxu0 0
      %2463 = vmatpush2.bf16.msra.mxu0 0
      %2464 = vmatprep.mubr.bf16.mxu0 0
      %2465 = vmatmul.mubr.bf16.gmra.mxu0 %v2367
      %v2466 = vpop.f32.mrf.mxu0
      %v2467 = vadd.f32 0.0, %v2466
      %v2468 = vpop.f32.mrf.mxu0
      %v2469 = vpop.f32.mrf.mxu0
      %v2470 = vadd.f32 0.0, %v2469
      %v2471 = vpop.f32.mrf.mxu0
      %2472 = vdwg.mxu0
      %v2473 = vld [vmem:[%s18] sm:$0x1]
      %v2474 = vlaneseq
      %v2475 = vshrl.u32 %v2474, 7
      %v2476 = vsub.s32 0, %v2475
      %v2477 = vrot.slane %v2473, %v2476
      %v2478 = vmul.f32 %v2467, %v2477
      %v2479 = vmul.f32 %v2470, %v2477
      %v2480 = vld [vmem:[%s18 + $0x1] sm:$0x1]
      %v2481 = vlaneseq
      %v2482 = vshrl.u32 %v2481, 7
      %v2483 = vsub.s32 0, %v2482
      %v2484 = vrot.slane %v2480, %v2483
      %v2485 = vadd.f32 %v2478, %v2484
      %v2486 = vadd.f32 %v2479, %v2484
      %v2487 = vmax.f32 %v2485, 0.0
      %v2488 = vmax.f32 %v2486, 0.0
      %v2489 = vmin.f32 %v2487, 6.0
      %v2490 = vmin.f32 %v2488, 6.0
      %2491 = vst [vmem:[%s643] sm:$0xff] %v2489
      %2492 = vst [vmem:[%s643 + $0x8] sm:$0xf] %v2490
      %p2493 = scmp.lt.s32.totalorder %s31, 1
      %s2494 = scalar_select %p2493, %s31, 1
      %s2495 = smul.addr %s2494, 2
      %s2496 = smul.addr %s2495, 8
      %s2497 = scalar_lea.vmem %s19, %s2496
      // Predicated region
      $region97: #{forward.1} parent=95 // pred_check
        %p2498 = pneg %p463
      $region98: #{forward.1} parent=95 // pred_check_branch
        %2500 = sbr.rel (%p2498) target = $region100
      $region99: #{forward.1} parent=95 // pred_region
        _
      $region100: #{forward.1} parent=95 // pred_fallthru
        _
    $region96: #{forward.1} parent=5 // pred_fallthru
      _
    %p2501 = scmp.le.s32.totalorder 2, %s26
    // Predicated region
    $region101: #{forward.1} parent=5 // pred_check
      %p2502 = pneg %p2501
    $region102: #{forward.1} parent=5 // pred_check_branch
      %2504 = sbr.rel (%p2502) target = $region104
    $region103: #{forward.1} parent=5 // pred_region
      %s2505 = ssub.s32 %s26, 2
      // Predicated region
      $region105: #{forward.1} parent=103 // pred_check
        %p2506 = pneg %p469
      $region106: #{forward.1} parent=103 // pred_check_branch
        %2508 = sbr.rel (%p2506) target = $region108
      $region107: #{forward.1} parent=103 // pred_region
        %p2509 = scmp.lt.s32.totalorder %s32, 1
        %s2510 = scalar_select %p2509, %s32, 1
        %s2511 = smul.addr %s2510, 2
        %s2512 = smul.addr %s2511, 8
        %s2513 = scalar_lea.vmem %s19, %s2512
      $region108: #{forward.1} parent=103 // pred_fallthru
        _
    $region104: #{forward.1} parent=5 // pred_fallthru
      _
  $region6: #{forward.1} parent=0 // loop_footer
    %s30 = sadd.s32 1, %s26
  $region7: #{forward.1} parent=0 // loop_footer_branch
    %25 = sbr.rel target = $region3
  $region8: #{forward.1} parent=0 // loop_exit
    _

</llo_original>
